<compile_context>
chip_gen: v5e
topology: v5e:2x2
jax: 0.10.0
libtpu: 0.0.40
codegen_flags: <defaults>
</compile_context>

<pallas_src>
import functools

import jax
import jax.numpy as jnp
from jax.experimental import pallas as pl
from jax.experimental.pallas import tpu as pltpu


# ----------------------------------------------------------------------------
# Small synthetic config (same structure as the `live` config, scaled down)
# ----------------------------------------------------------------------------
class IQTConfigSmall:
    n_enc_seq = 16          # 4 x 4 spatial tokens  (original: 29*29)
    n_dec_seq = 16
    n_layer = 2
    d_hidn = 32             # original: 256
    i_pad = 0
    d_ff = 64               # original: 1024
    d_MLP_head = 64         # original: 512
    n_head = 4
    d_head = 16             # original: 256
    dropout = 0.1           # identity (eval)
    emb_dropout = 0.1       # identity (eval)
    layer_norm_epsilon = 1e-12
    n_output = 1


FEAT_CH = 48                # original: 320 * 6 = 1920
CFG = IQTConfigSmall()
NEG_FILL = -1000000000.0    # matches torch masked_fill_(mask, -1e9)


# ----------------------------------------------------------------------------
# In-kernel helpers (traced inside the fused kernels; everything stays in VMEM)
# ----------------------------------------------------------------------------
def _softmax_rows(s):
    # row softmax in f32; divide moved to the EUP via approximate reciprocal
    s = s - jnp.max(s, axis=-1, keepdims=True)
    p = jnp.exp(s)
    return p * pl.reciprocal(jnp.sum(p, axis=-1, keepdims=True), approx=True)


def _attention(q, k, v, wo_bf, bo, *, n_head, d_head, scale, causal):
    """ScaledDotProductAttention over all heads, fused with the output projection.

    q/k/v: (S, n_head*d_head) f32.  Returns (S_q, d_out) f32 == concat_h(ctx_h) @ Wo + bo.
    MXU operands cast to bf16 (f32 accumulation); softmax math stays f32.
    The per-head output projection slice is accumulated to avoid a lane concat.
    """
    s_q, s_k = q.shape[0], k.shape[0]
    d_out = wo_bf.shape[1]
    mask = None
    if causal:
        rows = jax.lax.broadcasted_iota(jnp.int32, (s_q, s_k), 0)
        cols = jax.lax.broadcasted_iota(jnp.int32, (s_q, s_k), 1)
        mask = cols > rows                      # True = masked (upper triangular, k=1)
    out = jnp.zeros((s_q, d_out), jnp.float32)
    for h in range(n_head):                     # static unroll; H=4 tiny heads
        lo, hi = h * d_head, (h + 1) * d_head
        qh, kh, vh = q[:, lo:hi], k[:, lo:hi], v[:, lo:hi]
        sc = jnp.dot(qh.astype(jnp.bfloat16), kh.T.astype(jnp.bfloat16),
                     preferred_element_type=jnp.float32) * scale
        if causal:
            sc = jnp.where(mask, NEG_FILL, sc)
        p = _softmax_rows(sc)                   # dropout(attn_prob): identity in eval
        ctx = jnp.dot(p.astype(jnp.bfloat16), vh.astype(jnp.bfloat16),
                      preferred_element_type=jnp.float32)
        out = out + jnp.dot(ctx.astype(jnp.bfloat16), wo_bf[lo:hi, :],
                            preferred_element_type=jnp.float32)
    return out + bo


def _add_layernorm(x, y, g, b, eps):
    # LayerNorm(x + y) over the last dim (biased variance, eps=1e-12, f32)
    z = x + y
    mu = jnp.mean(z, axis=-1, keepdims=True)
    var = jnp.mean(jnp.square(z - mu), axis=-1, keepdims=True)
    return (z - mu) * jax.lax.rsqrt(var + eps) * g + b


def _ffn(x, w1_bf, b1, w2_bf, b2):
    h = jnp.dot(x.astype(jnp.bfloat16), w1_bf,
                preferred_element_type=jnp.float32) + b1
    # TODO(synk): torch F.gelu defaults to exact erf-GELU; tanh approximation used here.
    h = jax.nn.gelu(h, approximate=True)
    return jnp.dot(h.astype(jnp.bfloat16), w2_bf,
                   preferred_element_type=jnp.float32) + b2


# ----------------------------------------------------------------------------
# Fused Pallas kernels
# ----------------------------------------------------------------------------
def embed_kernel(fr_ref, fd_ref, we_ref, be_ref, wd_ref, bd_ref,
                 enc_o_ref, dec_o_ref):
    # 1x1 convs == per-token linear; encoder branch fuses (feat_ref - feat_dis).
    fr = fr_ref[0]                                      # (S0, C) f32
    fd = fd_ref[0]
    enc_tok = jnp.dot((fr - fd).astype(jnp.bfloat16), we_ref[...].astype(jnp.bfloat16),
                      preferred_element_type=jnp.float32) + be_ref[...]
    dec_tok = jnp.dot(fr.astype(jnp.bfloat16), wd_ref[...].astype(jnp.bfloat16),
                      preferred_element_type=jnp.float32) + bd_ref[...]
    enc_o_ref[...] = enc_tok[None]
    dec_o_ref[...] = dec_tok[None]


def enc_layer_kernel(x_ref, wqkv_ref, bqkv_ref, wo_ref, bo_ref,
                     g1_ref, be1_ref, w1_ref, bf1_ref, w2_ref, bf2_ref,
                     g2_ref, be2_ref, o_ref, *, n_head, d_head, scale, eps):
    x = x_ref[0]                                        # (S, D) f32
    dh = n_head * d_head
    qkv = jnp.dot(x.astype(jnp.bfloat16), wqkv_ref[...].astype(jnp.bfloat16),
                  preferred_element_type=jnp.float32) + bqkv_ref[...]
    att = _attention(qkv[:, 0:dh], qkv[:, dh:2 * dh], qkv[:, 2 * dh:3 * dh],
                     wo_ref[...].astype(jnp.bfloat16), bo_ref[...],
                     n_head=n_head, d_head=d_head, scale=scale, causal=False)
    att_out = _add_layernorm(x, att, g1_ref[...], be1_ref[...], eps)
    ffn = _ffn(att_out, w1_ref[...].astype(jnp.bfloat16), bf1_ref[...],
               w2_ref[...].astype(jnp.bfloat16), bf2_ref[...])
    o_ref[...] = _add_layernorm(ffn, att_out, g2_ref[...], be2_ref[...], eps)[None]


def dec_layer_kernel(x_ref, enc_ref,
                     swqkv_ref, sbqkv_ref, swo_ref, sbo_ref, g1_ref, be1_ref,
                     cwq_ref, cbq_ref, cwkv_ref, cbkv_ref, cwo_ref, cbo_ref,
                     g2_ref, be2_ref,
                     w1_ref, bf1_ref, w2_ref, bf2_ref, g3_ref, be3_ref,
                     o_ref, *, n_head, d_head, scale, eps):
    x = x_ref[0]                                        # (S, D) f32
    enc = enc_ref[0]
    dh = n_head * d_head
    # masked (causal) self-attention
    qkv = jnp.dot(x.astype(jnp.bfloat16), swqkv_ref[...].astype(jnp.bfloat16),
                  preferred_element_type=jnp.float32) + sbqkv_ref[...]
    sa = _attention(qkv[:, 0:dh], qkv[:, dh:2 * dh], qkv[:, 2 * dh:3 * dh],
                    swo_ref[...].astype(jnp.bfloat16), sbo_ref[...],
                    n_head=n_head, d_head=d_head, scale=scale, causal=True)
    x1 = _add_layernorm(x, sa, g1_ref[...], be1_ref[...], eps)
    # decoder-encoder cross attention (no padded positions -> no mask)
    q = jnp.dot(x1.astype(jnp.bfloat16), cwq_ref[...].astype(jnp.bfloat16),
                preferred_element_type=jnp.float32) + cbq_ref[...]
    kv = jnp.dot(enc.astype(jnp.bfloat16), cwkv_ref[...].astype(jnp.bfloat16),
                 preferred_element_type=jnp.float32) + cbkv_ref[...]
    da = _attention(q, kv[:, 0:dh], kv[:, dh:2 * dh],
                    cwo_ref[...].astype(jnp.bfloat16), cbo_ref[...],
                    n_head=n_head, d_head=d_head, scale=scale, causal=False)
    x2 = _add_layernorm(x1, da, g2_ref[...], be2_ref[...], eps)
    ffn = _ffn(x2, w1_ref[...].astype(jnp.bfloat16), bf1_ref[...],
               w2_ref[...].astype(jnp.bfloat16), bf2_ref[...])
    o_ref[...] = _add_layernorm(x2, ffn, g3_ref[...], be3_ref[...], eps)[None]


def head_kernel(x_ref, w1_ref, w2_ref, o_ref):
    # projection head: Linear(no bias) -> ReLU -> Linear(no bias); f32 (tiny)
    h = jnp.dot(x_ref[...], w1_ref[...], preferred_element_type=jnp.float32)
    h = jnp.maximum(h, 0.0)
    o_ref[...] = jnp.dot(h, w2_ref[...], preferred_element_type=jnp.float32)


# ----------------------------------------------------------------------------
# pallas_call wrappers
# ----------------------------------------------------------------------------
def _w(shape):
    # full (un-tiled) weight block; block index constant -> fetched once per call
    return pl.BlockSpec(shape, lambda *_: (0,) * len(shape))


def pallas_embed(fr, fd, we, be, wd, bd):
    B, S0, C = fr.shape
    D = we.shape[1]
    tok_in = pl.BlockSpec((1, S0, C), lambda i: (i, 0, 0))
    tok_out = pl.BlockSpec((1, S0, D), lambda i: (i, 0, 0))
    out_sds = jax.ShapeDtypeStruct((B, S0, D), jnp.float32)
    return pl.pallas_call(
        embed_kernel,
        out_shape=(out_sds, out_sds),
        grid=(B,),
        in_specs=[tok_in, tok_in, _w((C, D)), _w((1, D)), _w((C, D)), _w((1, D))],
        out_specs=(tok_out, tok_out),
        compiler_params=pltpu.CompilerParams(dimension_semantics=("parallel",)),
    )(fr, fd, we, be, wd, bd)


def pallas_encoder_layer(x, lp, cfg):
    B, S, D = x.shape
    Dh = cfg.n_head * cfg.d_head
    Fd = cfg.d_ff
    kern = functools.partial(enc_layer_kernel, n_head=cfg.n_head, d_head=cfg.d_head,
                             scale=1.0 / (cfg.d_head ** 0.5),
                             eps=cfg.layer_norm_epsilon)
    tok = pl.BlockSpec((1, S, D), lambda i: (i, 0, 0))
    return pl.pallas_call(
        kern,
        out_shape=jax.ShapeDtypeStruct((B, S, D), jnp.float32),
        grid=(B,),
        in_specs=[tok,
                  _w((D, 3 * Dh)), _w((1, 3 * Dh)), _w((Dh, D)), _w((1, D)),
                  _w((1, D)), _w((1, D)),
                  _w((D, Fd)), _w((1, Fd)), _w((Fd, D)), _w((1, D)),
                  _w((1, D)), _w((1, D))],
        out_specs=tok,
        compiler_params=pltpu.CompilerParams(dimension_semantics=("parallel",)),
    )(x, lp["wqkv"], lp["bqkv"], lp["wo"], lp["bo"],
      lp["ln1_g"], lp["ln1_b"],
      lp["w1"], lp["b1"], lp["w2"], lp["b2"],
      lp["ln2_g"], lp["ln2_b"])


def pallas_decoder_layer(x, enc_out, lp, cfg):
    B, S, D = x.shape
    Dh = cfg.n_head * cfg.d_head
    Fd = cfg.d_ff
    kern = functools.partial(dec_layer_kernel, n_head=cfg.n_head, d_head=cfg.d_head,
                             scale=1.0 / (cfg.d_head ** 0.5),
                             eps=cfg.layer_norm_epsilon)
    tok = pl.BlockSpec((1, S, D), lambda i: (i, 0, 0))
    return pl.pallas_call(
        kern,
        out_shape=jax.ShapeDtypeStruct((B, S, D), jnp.float32),
        grid=(B,),
        in_specs=[tok, tok,
                  _w((D, 3 * Dh)), _w((1, 3 * Dh)), _w((Dh, D)), _w((1, D)),
                  _w((1, D)), _w((1, D)),
                  _w((D, Dh)), _w((1, Dh)), _w((D, 2 * Dh)), _w((1, 2 * Dh)),
                  _w((Dh, D)), _w((1, D)),
                  _w((1, D)), _w((1, D)),
                  _w((D, Fd)), _w((1, Fd)), _w((Fd, D)), _w((1, D)),
                  _w((1, D)), _w((1, D))],
        out_specs=tok,
        compiler_params=pltpu.CompilerParams(dimension_semantics=("parallel",)),
    )(x, enc_out,
      lp["s_wqkv"], lp["s_bqkv"], lp["s_wo"], lp["s_bo"],
      lp["ln1_g"], lp["ln1_b"],
      lp["c_wq"], lp["c_bq"], lp["c_wkv"], lp["c_bkv"], lp["c_wo"], lp["c_bo"],
      lp["ln2_g"], lp["ln2_b"],
      lp["w1"], lp["b1"], lp["w2"], lp["b2"],
      lp["ln3_g"], lp["ln3_b"])


def pallas_mlp_head(x, w1, w2):
    B, D = x.shape
    Dm = w1.shape[1]
    n_out = w2.shape[1]
    return pl.pallas_call(
        head_kernel,
        out_shape=jax.ShapeDtypeStruct((B, n_out), jnp.float32),
        grid=(1,),
        in_specs=[pl.BlockSpec((B, D), lambda i: (0, 0)),
                  pl.BlockSpec((D, Dm), lambda i: (0, 0)),
                  pl.BlockSpec((Dm, n_out), lambda i: (0, 0))],
        out_specs=pl.BlockSpec((B, n_out), lambda i: (0, 0)),
    )(x, w1, w2)


# ----------------------------------------------------------------------------
# Model (thin glue in plain JAX; all hot paths in the fused kernels above)
# ----------------------------------------------------------------------------
def iqa_regression(params, cfg, feat_dis, feat_ref):
    """IQARegression forward on backbone features (NCHW)."""
    B, C, H, W = feat_dis.shape
    fd = feat_dis.reshape(B, C, H * W).transpose(0, 2, 1)   # (B, HW, C) token-major
    fr = feat_ref.reshape(B, C, H * W).transpose(0, 2, 1)

    enc_tok, dec_tok = pallas_embed(
        fr, fd, params["conv_enc_w"], params["conv_enc_b"],
        params["conv_dec_w"], params["conv_dec_b"])

    # cls-token prepend + learned positional embedding (tiny one-time glue)
    cls_e = jnp.broadcast_to(params["enc_cls"], (B, 1, cfg.d_hidn))
    enc_x = jnp.concatenate([cls_e, enc_tok], axis=1) + params["enc_pos"]
    cls_d = jnp.broadcast_to(params["dec_cls"], (B, 1, cfg.d_hidn))
    dec_x = jnp.concatenate([cls_d, dec_tok], axis=1) + params["dec_pos"]

    for lp in params["enc_layers"]:
        enc_x = pallas_encoder_layer(enc_x, lp, cfg)
    for lp in params["dec_layers"]:
        dec_x = pallas_decoder_layer(dec_x, enc_x, lp, cfg)

    cls_tok = dec_x[:, 0, :]                                # (B, d_hidn)
    return pallas_mlp_head(cls_tok, params["proj_w1"], params["proj_w2"])


# ----------------------------------------------------------------------------
# Deterministic parameter init (QKV / KV weights stored pre-packed for fusion)
# ----------------------------------------------------------------------------
def init_params(key, cfg, feat_ch):
    keys = iter(jax.random.split(key, 64))

    def nrm(shape, s=0.02):
        return jax.random.normal(next(keys), shape, jnp.float32) * s

    D, Dh, Fd = cfg.d_hidn, cfg.n_head * cfg.d_head, cfg.d_ff

    def enc_layer():
        return dict(
            wqkv=nrm((D, 3 * Dh)), bqkv=jnp.zeros((1, 3 * Dh), jnp.float32),
            wo=nrm((Dh, D)), bo=jnp.zeros((1, D), jnp.float32),
            ln1_g=jnp.ones((1, D), jnp.float32), ln1_b=jnp.zeros((1, D), jnp.float32),
            w1=nrm((D, Fd)), b1=jnp.zeros((1, Fd), jnp.float32),
            w2=nrm((Fd, D)), b2=jnp.zeros((1, D), jnp.float32),
            ln2_g=jnp.ones((1, D), jnp.float32), ln2_b=jnp.zeros((1, D), jnp.float32))

    def dec_layer():
        return dict(
            s_wqkv=nrm((D, 3 * Dh)), s_bqkv=jnp.zeros((1, 3 * Dh), jnp.float32),
            s_wo=nrm((Dh, D)), s_bo=jnp.zeros((1, D), jnp.float32),
            ln1_g=jnp.ones((1, D), jnp.float32), ln1_b=jnp.zeros((1, D), jnp.float32),
            c_wq=nrm((D, Dh)), c_bq=jnp.zeros((1, Dh), jnp.float32),
            c_wkv=nrm((D, 2 * Dh)), c_bkv=jnp.zeros((1, 2 * Dh), jnp.float32),
            c_wo=nrm((Dh, D)), c_bo=jnp.zeros((1, D), jnp.float32),
            ln2_g=jnp.ones((1, D), jnp.float32), ln2_b=jnp.zeros((1, D), jnp.float32),
            w1=nrm((D, Fd)), b1=jnp.zeros((1, Fd), jnp.float32),
            w2=nrm((Fd, D)), b2=jnp.zeros((1, D), jnp.float32),
            ln3_g=jnp.ones((1, D), jnp.float32), ln3_b=jnp.zeros((1, D), jnp.float32))

    return dict(
        conv_enc_w=nrm((feat_ch, D)), conv_enc_b=jnp.zeros((1, D), jnp.float32),
        conv_dec_w=nrm((feat_ch, D)), conv_dec_b=jnp.zeros((1, D), jnp.float32),
        enc_pos=nrm((1, cfg.n_enc_seq + 1, D), 1.0),
        enc_cls=nrm((1, 1, D), 1.0),
        dec_pos=nrm((1, cfg.n_dec_seq + 1, D), 1.0),
        dec_cls=nrm((1, 1, D), 1.0),
        enc_layers=[enc_layer() for _ in range(cfg.n_layer)],
        dec_layers=[dec_layer() for _ in range(cfg.n_layer)],
        proj_w1=nrm((D, cfg.d_MLP_head)),
        proj_w2=nrm((cfg.d_MLP_head, cfg.n_output)),
    )


# ----------------------------------------------------------------------------
if __name__ == "__main__":
    key = jax.random.PRNGKey(0)
    kp, kd, kr = jax.random.split(key, 3)

    params = init_params(kp, CFG, FEAT_CH)

    B, Hs, Ws = 2, 4, 4                    # Hs*Ws == CFG.n_enc_seq
    feat_dis = jax.random.normal(kd, (B, FEAT_CH, Hs, Ws), jnp.float32)
    feat_ref = jax.random.normal(kr, (B, FEAT_CH, Hs, Ws), jnp.float32)

    fwd = jax.jit(lambda p, fd, fr: iqa_regression(p, CFG, fd, fr))
    pred = jax.block_until_ready(fwd(params, feat_dis, feat_ref))

    assert pred.shape == (B, CFG.n_output)
    assert bool(jnp.all(jnp.isfinite(pred)))
    print("KERNEL_OK")
</pallas_src>

<mosaic_0001>
module attributes {stable_mosaic.version = 11 : i64} {
  func.func @embed_kernel(%arg0: i32, %arg1: memref<1x16x48xf32, #tpu.memory_space<vmem>>, %arg2: memref<1x16x48xf32, #tpu.memory_space<vmem>>, %arg3: memref<48x32xf32, #tpu.memory_space<vmem>>, %arg4: memref<1x32xf32, #tpu.memory_space<vmem>>, %arg5: memref<48x32xf32, #tpu.memory_space<vmem>>, %arg6: memref<1x32xf32, #tpu.memory_space<vmem>>, %arg7: memref<1x16x32xf32, #tpu.memory_space<vmem>>, %arg8: memref<1x16x32xf32, #tpu.memory_space<vmem>>) attributes {dimension_semantics = [#tpu.dimension_semantics<parallel>], iteration_bounds = array<i64: 2>, scalar_prefetch = 0 : i64, scratch_operands = 0 : i64, tpu.core_type = #tpu.core_type<tc>, window_params = [{transform_indices = @transform_0, window_bounds = array<i64: 1, 16, 48>}, {transform_indices = @transform_1, window_bounds = array<i64: 1, 16, 48>}, {pipeline_mode = #tpu.pipeline_mode<synchronous>, transform_indices = @transform_2, window_bounds = array<i64: 48, 32>}, {pipeline_mode = #tpu.pipeline_mode<synchronous>, transform_indices = @transform_3, window_bounds = array<i64: 1, 32>}, {pipeline_mode = #tpu.pipeline_mode<synchronous>, transform_indices = @transform_4, window_bounds = array<i64: 48, 32>}, {pipeline_mode = #tpu.pipeline_mode<synchronous>, transform_indices = @transform_5, window_bounds = array<i64: 1, 32>}, {transform_indices = @transform_6, window_bounds = array<i64: 1, 16, 32>}, {transform_indices = @transform_7, window_bounds = array<i64: 1, 16, 32>}]} {
    %c0 = arith.constant 0 : index
    %c0_0 = arith.constant 0 : index
    %c0_1 = arith.constant 0 : index
    %0 = vector.load %arg1[%c0, %c0_0, %c0_1] : memref<1x16x48xf32, #tpu.memory_space<vmem>>, vector<1x16x48xf32>
    %1 = vector.shape_cast %0 : vector<1x16x48xf32> to vector<16x48xf32>
    %c0_2 = arith.constant 0 : index
    %c0_3 = arith.constant 0 : index
    %c0_4 = arith.constant 0 : index
    %2 = vector.load %arg2[%c0_2, %c0_3, %c0_4] : memref<1x16x48xf32, #tpu.memory_space<vmem>>, vector<1x16x48xf32>
    %3 = vector.shape_cast %2 : vector<1x16x48xf32> to vector<16x48xf32>
    %4 = arith.subf %1, %3 : vector<16x48xf32>
    %5 = arith.truncf %4 : vector<16x48xf32> to vector<16x48xbf16>
    %c0_5 = arith.constant 0 : index
    %c0_6 = arith.constant 0 : index
    %6 = vector.load %arg3[%c0_5, %c0_6] : memref<48x32xf32, #tpu.memory_space<vmem>>, vector<48x32xf32>
    %7 = arith.truncf %6 : vector<48x32xf32> to vector<48x32xbf16>
    %cst = arith.constant dense<0.000000e+00> : vector<16x32xf32>
    %8 = tpu.matmul %5, %7, %cst {dimension_numbers = #tpu.dot_dimension_numbers<[1], [0], [0], [1], [0, 0, 1, 1], [], []>} : vector<16x48xbf16>, vector<48x32xbf16>, vector<16x32xf32> -> vector<16x32xf32>
    %c0_7 = arith.constant 0 : index
    %c0_8 = arith.constant 0 : index
    %9 = vector.load %arg4[%c0_7, %c0_8] : memref<1x32xf32, #tpu.memory_space<vmem>>, vector<1x32xf32>
    %10 = vector.broadcast %9 : vector<1x32xf32> to vector<16x32xf32>
    %11 = arith.addf %8, %10 : vector<16x32xf32>
    %12 = arith.truncf %1 : vector<16x48xf32> to vector<16x48xbf16>
    %c0_9 = arith.constant 0 : index
    %c0_10 = arith.constant 0 : index
    %13 = vector.load %arg5[%c0_9, %c0_10] : memref<48x32xf32, #tpu.memory_space<vmem>>, vector<48x32xf32>
    %14 = arith.truncf %13 : vector<48x32xf32> to vector<48x32xbf16>
    %cst_11 = arith.constant dense<0.000000e+00> : vector<16x32xf32>
    %15 = tpu.matmul %12, %14, %cst_11 {dimension_numbers = #tpu.dot_dimension_numbers<[1], [0], [0], [1], [0, 0, 1, 1], [], []>} : vector<16x48xbf16>, vector<48x32xbf16>, vector<16x32xf32> -> vector<16x32xf32>
    %c0_12 = arith.constant 0 : index
    %c0_13 = arith.constant 0 : index
    %16 = vector.load %arg6[%c0_12, %c0_13] : memref<1x32xf32, #tpu.memory_space<vmem>>, vector<1x32xf32>
    %17 = vector.broadcast %16 : vector<1x32xf32> to vector<16x32xf32>
    %18 = arith.addf %15, %17 : vector<16x32xf32>
    %19 = vector.shape_cast %11 : vector<16x32xf32> to vector<1x16x32xf32>
    %c0_14 = arith.constant 0 : index
    %c0_15 = arith.constant 0 : index
    %c0_16 = arith.constant 0 : index
    %20 = vector.load %arg7[%c0_14, %c0_15, %c0_16] : memref<1x16x32xf32, #tpu.memory_space<vmem>>, vector<1x16x32xf32>
    tpu.vector_store %arg7[%c0_14, %c0_15, %c0_16], %19 {strides = array<i32>} : memref<1x16x32xf32, #tpu.memory_space<vmem>>, vector<1x16x32xf32>,
    %21 = vector.shape_cast %18 : vector<16x32xf32> to vector<1x16x32xf32>
    %c0_17 = arith.constant 0 : index
    %c0_18 = arith.constant 0 : index
    %c0_19 = arith.constant 0 : index
    %22 = vector.load %arg8[%c0_17, %c0_18, %c0_19] : memref<1x16x32xf32, #tpu.memory_space<vmem>>, vector<1x16x32xf32>
    tpu.vector_store %arg8[%c0_17, %c0_18, %c0_19], %21 {strides = array<i32>} : memref<1x16x32xf32, #tpu.memory_space<vmem>>, vector<1x16x32xf32>,
    return
  }
  func.func @transform_0(%arg0: i32) -> (i32, i32, i32) {
    %c0_i32 = arith.constant 0 : i32
    %c0_i32_0 = arith.constant 0 : i32
    %c0_i32_1 = arith.constant 0 : i32
    return %arg0, %c0_i32, %c0_i32_0 : i32, i32, i32
  }
  func.func @transform_1(%arg0: i32) -> (i32, i32, i32) {
    %c0_i32 = arith.constant 0 : i32
    %c0_i32_0 = arith.constant 0 : i32
    %c0_i32_1 = arith.constant 0 : i32
    return %arg0, %c0_i32, %c0_i32_0 : i32, i32, i32
  }
  func.func @transform_2(%arg0: i32) -> (i32, i32) {
    %c0_i32 = arith.constant 0 : i32
    %c0_i32_0 = arith.constant 0 : i32
    %c0_i32_1 = arith.constant 0 : i32
    return %c0_i32, %c0_i32_0 : i32, i32
  }
  func.func @transform_3(%arg0: i32) -> (i32, i32) {
    %c0_i32 = arith.constant 0 : i32
    %c0_i32_0 = arith.constant 0 : i32
    %c0_i32_1 = arith.constant 0 : i32
    return %c0_i32, %c0_i32_0 : i32, i32
  }
  func.func @transform_4(%arg0: i32) -> (i32, i32) {
    %c0_i32 = arith.constant 0 : i32
    %c0_i32_0 = arith.constant 0 : i32
    %c0_i32_1 = arith.constant 0 : i32
    return %c0_i32, %c0_i32_0 : i32, i32
  }
  func.func @transform_5(%arg0: i32) -> (i32, i32) {
    %c0_i32 = arith.constant 0 : i32
    %c0_i32_0 = arith.constant 0 : i32
    %c0_i32_1 = arith.constant 0 : i32
    return %c0_i32, %c0_i32_0 : i32, i32
  }
  func.func @transform_6(%arg0: i32) -> (i32, i32, i32) {
    %c0_i32 = arith.constant 0 : i32
    %c0_i32_0 = arith.constant 0 : i32
    %c0_i32_1 = arith.constant 0 : i32
    return %arg0, %c0_i32, %c0_i32_0 : i32, i32, i32
  }
  func.func @transform_7(%arg0: i32) -> (i32, i32, i32) {
    %c0_i32 = arith.constant 0 : i32
    %c0_i32_0 = arith.constant 0 : i32
    %c0_i32_1 = arith.constant 0 : i32
    return %arg0, %c0_i32, %c0_i32_0 : i32, i32, i32
  }
}

module attributes {stable_mosaic.version = 11 : i64} {
  func.func @enc_layer_kernel(%arg0: i32, %arg1: memref<1x17x32xf32, #tpu.memory_space<vmem>>, %arg2: memref<32x192xf32, #tpu.memory_space<vmem>>, %arg3: memref<1x192xf32, #tpu.memory_space<vmem>>, %arg4: memref<64x32xf32, #tpu.memory_space<vmem>>, %arg5: memref<1x32xf32, #tpu.memory_space<vmem>>, %arg6: memref<1x32xf32, #tpu.memory_space<vmem>>, %arg7: memref<1x32xf32, #tpu.memory_space<vmem>>, %arg8: memref<32x64xf32, #tpu.memory_space<vmem>>, %arg9: memref<1x64xf32, #tpu.memory_space<vmem>>, %arg10: memref<64x32xf32, #tpu.memory_space<vmem>>, %arg11: memref<1x32xf32, #tpu.memory_space<vmem>>, %arg12: memref<1x32xf32, #tpu.memory_space<vmem>>, %arg13: memref<1x32xf32, #tpu.memory_space<vmem>>, %arg14: memref<1x17x32xf32, #tpu.memory_space<vmem>>) attributes {dimension_semantics = [#tpu.dimension_semantics<parallel>], iteration_bounds = array<i64: 2>, scalar_prefetch = 0 : i64, scratch_operands = 0 : i64, tpu.core_type = #tpu.core_type<tc>, window_params = [{transform_indices = @transform_0, window_bounds = array<i64: 1, 17, 32>}, {pipeline_mode = #tpu.pipeline_mode<synchronous>, transform_indices = @transform_1, window_bounds = array<i64: 32, 192>}, {pipeline_mode = #tpu.pipeline_mode<synchronous>, transform_indices = @transform_2, window_bounds = array<i64: 1, 192>}, {pipeline_mode = #tpu.pipeline_mode<synchronous>, transform_indices = @transform_3, window_bounds = array<i64: 64, 32>}, {pipeline_mode = #tpu.pipeline_mode<synchronous>, transform_indices = @transform_4, window_bounds = array<i64: 1, 32>}, {pipeline_mode = #tpu.pipeline_mode<synchronous>, transform_indices = @transform_5, window_bounds = array<i64: 1, 32>}, {pipeline_mode = #tpu.pipeline_mode<synchronous>, transform_indices = @transform_6, window_bounds = array<i64: 1, 32>}, {pipeline_mode = #tpu.pipeline_mode<synchronous>, transform_indices = @transform_7, window_bounds = array<i64: 32, 64>}, {pipeline_mode = #tpu.pipeline_mode<synchronous>, transform_indices = @transform_8, window_bounds = array<i64: 1, 64>}, {pipeline_mode = #tpu.pipeline_mode<synchronous>, transform_indices = @transform_9, window_bounds = array<i64: 64, 32>}, {pipeline_mode = #tpu.pipeline_mode<synchronous>, transform_indices = @transform_10, window_bounds = array<i64: 1, 32>}, {pipeline_mode = #tpu.pipeline_mode<synchronous>, transform_indices = @transform_11, window_bounds = array<i64: 1, 32>}, {pipeline_mode = #tpu.pipeline_mode<synchronous>, transform_indices = @transform_12, window_bounds = array<i64: 1, 32>}, {transform_indices = @transform_13, window_bounds = array<i64: 1, 17, 32>}]} {
    %c0 = arith.constant 0 : index
    %c0_0 = arith.constant 0 : index
    %c0_1 = arith.constant 0 : index
    %0 = vector.load %arg1[%c0, %c0_0, %c0_1] : memref<1x17x32xf32, #tpu.memory_space<vmem>>, vector<1x17x32xf32>
    %1 = vector.shape_cast %0 : vector<1x17x32xf32> to vector<17x32xf32>
    %2 = arith.truncf %1 : vector<17x32xf32> to vector<17x32xbf16>
    %c0_2 = arith.constant 0 : index
    %c0_3 = arith.constant 0 : index
    %3 = vector.load %arg2[%c0_2, %c0_3] : memref<32x192xf32, #tpu.memory_space<vmem>>, vector<32x192xf32>
    %4 = arith.truncf %3 : vector<32x192xf32> to vector<32x192xbf16>
    %cst = arith.constant dense<0.000000e+00> : vector<17x192xf32>
    %5 = tpu.matmul %2, %4, %cst {dimension_numbers = #tpu.dot_dimension_numbers<[1], [0], [0], [1], [0, 0, 1, 1], [], []>} : vector<17x32xbf16>, vector<32x192xbf16>, vector<17x192xf32> -> vector<17x192xf32>
    %c0_4 = arith.constant 0 : index
    %c0_5 = arith.constant 0 : index
    %6 = vector.load %arg3[%c0_4, %c0_5] : memref<1x192xf32, #tpu.memory_space<vmem>>, vector<1x192xf32>
    %7 = vector.broadcast %6 : vector<1x192xf32> to vector<17x192xf32>
    %8 = arith.addf %5, %7 : vector<17x192xf32>
    %9 = vector.extract_strided_slice %8 {offsets = [0, 0], sizes = [17, 64], strides = [1, 1]} : vector<17x192xf32> to vector<17x64xf32>
    %10 = vector.extract_strided_slice %8 {offsets = [0, 64], sizes = [17, 64], strides = [1, 1]} : vector<17x192xf32> to vector<17x64xf32>
    %11 = vector.extract_strided_slice %8 {offsets = [0, 128], sizes = [17, 64], strides = [1, 1]} : vector<17x192xf32> to vector<17x64xf32>
    %c0_6 = arith.constant 0 : index
    %c0_7 = arith.constant 0 : index
    %12 = vector.load %arg4[%c0_6, %c0_7] : memref<64x32xf32, #tpu.memory_space<vmem>>, vector<64x32xf32>
    %13 = arith.truncf %12 : vector<64x32xf32> to vector<64x32xbf16>
    %c0_8 = arith.constant 0 : index
    %c0_9 = arith.constant 0 : index
    %14 = vector.load %arg5[%c0_8, %c0_9] : memref<1x32xf32, #tpu.memory_space<vmem>>, vector<1x32xf32>
    %cst_10 = arith.constant 0.000000e+00 : f32
    %15 = vector.broadcast %cst_10 : f32 to vector<17x32xf32>
    %16 = vector.extract_strided_slice %9 {offsets = [0, 0], sizes = [17, 16], strides = [1, 1]} : vector<17x64xf32> to vector<17x16xf32>
    %17 = vector.extract_strided_slice %10 {offsets = [0, 0], sizes = [17, 16], strides = [1, 1]} : vector<17x64xf32> to vector<17x16xf32>
    %18 = vector.extract_strided_slice %11 {offsets = [0, 0], sizes = [17, 16], strides = [1, 1]} : vector<17x64xf32> to vector<17x16xf32>
    %19 = arith.truncf %16 : vector<17x16xf32> to vector<17x16xbf16>
    %20 = tpu.transpose %17, [1, 0] : vector<17x16xf32> -> vector<16x17xf32>
    %21 = arith.truncf %20 : vector<16x17xf32> to vector<16x17xbf16>
    %cst_11 = arith.constant dense<0.000000e+00> : vector<17x17xf32>
    %22 = tpu.matmul %19, %21, %cst_11 {dimension_numbers = #tpu.dot_dimension_numbers<[1], [0], [0], [1], [0, 0, 1, 1], [], []>} : vector<17x16xbf16>, vector<16x17xbf16>, vector<17x17xf32> -> vector<17x17xf32>
    %cst_12 = arith.constant 2.500000e-01 : f32
    %23 = vector.broadcast %cst_12 : f32 to vector<17x17xf32>
    %24 = arith.mulf %22, %23 : vector<17x17xf32>
    %cst_13 = arith.constant dense<0xFF800000> : vector<17xf32>
    %25 = vector.multi_reduction <maximumf>, %24, %cst_13 [1] : vector<17x17xf32> to vector<17xf32>
    %26 = vector.shape_cast %25 : vector<17xf32> to vector<17x1xf32>
    %27 = vector.broadcast %26 : vector<17x1xf32> to vector<17x17xf32>
    %28 = arith.subf %24, %27 : vector<17x17xf32>
    %29 = math.exp %28 : vector<17x17xf32>
    %cst_14 = arith.constant dense<0.000000e+00> : vector<17xf32>
    %30 = vector.multi_reduction <add>, %29, %cst_14 [1] : vector<17x17xf32> to vector<17xf32>
    %31 = vector.shape_cast %30 : vector<17xf32> to vector<17x1xf32>
    %32 = tpu.reciprocal %31 {approx = true} : vector<17x1xf32> -> vector<17x1xf32>
    %33 = vector.broadcast %32 : vector<17x1xf32> to vector<17x17xf32>
    %34 = arith.mulf %29, %33 : vector<17x17xf32>
    %35 = arith.truncf %34 : vector<17x17xf32> to vector<17x17xbf16>
    %36 = arith.truncf %18 : vector<17x16xf32> to vector<17x16xbf16>
    %cst_15 = arith.constant dense<0.000000e+00> : vector<17x16xf32>
    %37 = tpu.matmul %35, %36, %cst_15 {dimension_numbers = #tpu.dot_dimension_numbers<[1], [0], [0], [1], [0, 0, 1, 1], [], []>} : vector<17x17xbf16>, vector<17x16xbf16>, vector<17x16xf32> -> vector<17x16xf32>
    %38 = arith.truncf %37 : vector<17x16xf32> to vector<17x16xbf16>
    %39 = vector.extract_strided_slice %13 {offsets = [0, 0], sizes = [16, 32], strides = [1, 1]} : vector<64x32xbf16> to vector<16x32xbf16>
    %cst_16 = arith.constant dense<0.000000e+00> : vector<17x32xf32>
    %40 = tpu.matmul %38, %39, %cst_16 {dimension_numbers = #tpu.dot_dimension_numbers<[1], [0], [0], [1], [0, 0, 1, 1], [], []>} : vector<17x16xbf16>, vector<16x32xbf16>, vector<17x32xf32> -> vector<17x32xf32>
    %41 = arith.addf %15, %40 : vector<17x32xf32>
    %42 = vector.extract_strided_slice %9 {offsets = [0, 16], sizes = [17, 16], strides = [1, 1]} : vector<17x64xf32> to vector<17x16xf32>
    %43 = vector.extract_strided_slice %10 {offsets = [0, 16], sizes = [17, 16], strides = [1, 1]} : vector<17x64xf32> to vector<17x16xf32>
    %44 = vector.extract_strided_slice %11 {offsets = [0, 16], sizes = [17, 16], strides = [1, 1]} : vector<17x64xf32> to vector<17x16xf32>
    %45 = arith.truncf %42 : vector<17x16xf32> to vector<17x16xbf16>
    %46 = tpu.transpose %43, [1, 0] : vector<17x16xf32> -> vector<16x17xf32>
    %47 = arith.truncf %46 : vector<16x17xf32> to vector<16x17xbf16>
    %cst_17 = arith.constant dense<0.000000e+00> : vector<17x17xf32>
    %48 = tpu.matmul %45, %47, %cst_17 {dimension_numbers = #tpu.dot_dimension_numbers<[1], [0], [0], [1], [0, 0, 1, 1], [], []>} : vector<17x16xbf16>, vector<16x17xbf16>, vector<17x17xf32> -> vector<17x17xf32>
    %cst_18 = arith.constant 2.500000e-01 : f32
    %49 = vector.broadcast %cst_18 : f32 to vector<17x17xf32>
    %50 = arith.mulf %48, %49 : vector<17x17xf32>
    %cst_19 = arith.constant dense<0xFF800000> : vector<17xf32>
    %51 = vector.multi_reduction <maximumf>, %50, %cst_19 [1] : vector<17x17xf32> to vector<17xf32>
    %52 = vector.shape_cast %51 : vector<17xf32> to vector<17x1xf32>
    %53 = vector.broadcast %52 : vector<17x1xf32> to vector<17x17xf32>
    %54 = arith.subf %50, %53 : vector<17x17xf32>
    %55 = math.exp %54 : vector<17x17xf32>
    %cst_20 = arith.constant dense<0.000000e+00> : vector<17xf32>
    %56 = vector.multi_reduction <add>, %55, %cst_20 [1] : vector<17x17xf32> to vector<17xf32>
    %57 = vector.shape_cast %56 : vector<17xf32> to vector<17x1xf32>
    %58 = tpu.reciprocal %57 {approx = true} : vector<17x1xf32> -> vector<17x1xf32>
    %59 = vector.broadcast %58 : vector<17x1xf32> to vector<17x17xf32>
    %60 = arith.mulf %55, %59 : vector<17x17xf32>
    %61 = arith.truncf %60 : vector<17x17xf32> to vector<17x17xbf16>
    %62 = arith.truncf %44 : vector<17x16xf32> to vector<17x16xbf16>
    %cst_21 = arith.constant dense<0.000000e+00> : vector<17x16xf32>
    %63 = tpu.matmul %61, %62, %cst_21 {dimension_numbers = #tpu.dot_dimension_numbers<[1], [0], [0], [1], [0, 0, 1, 1], [], []>} : vector<17x17xbf16>, vector<17x16xbf16>, vector<17x16xf32> -> vector<17x16xf32>
    %64 = arith.truncf %63 : vector<17x16xf32> to vector<17x16xbf16>
    %65 = vector.extract_strided_slice %13 {offsets = [16, 0], sizes = [16, 32], strides = [1, 1]} : vector<64x32xbf16> to vector<16x32xbf16>
    %cst_22 = arith.constant dense<0.000000e+00> : vector<17x32xf32>
    %66 = tpu.matmul %64, %65, %cst_22 {dimension_numbers = #tpu.dot_dimension_numbers<[1], [0], [0], [1], [0, 0, 1, 1], [], []>} : vector<17x16xbf16>, vector<16x32xbf16>, vector<17x32xf32> -> vector<17x32xf32>
    %67 = arith.addf %41, %66 : vector<17x32xf32>
    %68 = vector.extract_strided_slice %9 {offsets = [0, 32], sizes = [17, 16], strides = [1, 1]} : vector<17x64xf32> to vector<17x16xf32>
    %69 = vector.extract_strided_slice %10 {offsets = [0, 32], sizes = [17, 16], strides = [1, 1]} : vector<17x64xf32> to vector<17x16xf32>
    %70 = vector.extract_strided_slice %11 {offsets = [0, 32], sizes = [17, 16], strides = [1, 1]} : vector<17x64xf32> to vector<17x16xf32>
    %71 = arith.truncf %68 : vector<17x16xf32> to vector<17x16xbf16>
    %72 = tpu.transpose %69, [1, 0] : vector<17x16xf32> -> vector<16x17xf32>
    %73 = arith.truncf %72 : vector<16x17xf32> to vector<16x17xbf16>
    %cst_23 = arith.constant dense<0.000000e+00> : vector<17x17xf32>
    %74 = tpu.matmul %71, %73, %cst_23 {dimension_numbers = #tpu.dot_dimension_numbers<[1], [0], [0], [1], [0, 0, 1, 1], [], []>} : vector<17x16xbf16>, vector<16x17xbf16>, vector<17x17xf32> -> vector<17x17xf32>
    %cst_24 = arith.constant 2.500000e-01 : f32
    %75 = vector.broadcast %cst_24 : f32 to vector<17x17xf32>
    %76 = arith.mulf %74, %75 : vector<17x17xf32>
    %cst_25 = arith.constant dense<0xFF800000> : vector<17xf32>
    %77 = vector.multi_reduction <maximumf>, %76, %cst_25 [1] : vector<17x17xf32> to vector<17xf32>
    %78 = vector.shape_cast %77 : vector<17xf32> to vector<17x1xf32>
    %79 = vector.broadcast %78 : vector<17x1xf32> to vector<17x17xf32>
    %80 = arith.subf %76, %79 : vector<17x17xf32>
    %81 = math.exp %80 : vector<17x17xf32>
    %cst_26 = arith.constant dense<0.000000e+00> : vector<17xf32>
    %82 = vector.multi_reduction <add>, %81, %cst_26 [1] : vector<17x17xf32> to vector<17xf32>
    %83 = vector.shape_cast %82 : vector<17xf32> to vector<17x1xf32>
    %84 = tpu.reciprocal %83 {approx = true} : vector<17x1xf32> -> vector<17x1xf32>
    %85 = vector.broadcast %84 : vector<17x1xf32> to vector<17x17xf32>
    %86 = arith.mulf %81, %85 : vector<17x17xf32>
    %87 = arith.truncf %86 : vector<17x17xf32> to vector<17x17xbf16>
    %88 = arith.truncf %70 : vector<17x16xf32> to vector<17x16xbf16>
    %cst_27 = arith.constant dense<0.000000e+00> : vector<17x16xf32>
    %89 = tpu.matmul %87, %88, %cst_27 {dimension_numbers = #tpu.dot_dimension_numbers<[1], [0], [0], [1], [0, 0, 1, 1], [], []>} : vector<17x17xbf16>, vector<17x16xbf16>, vector<17x16xf32> -> vector<17x16xf32>
    %90 = arith.truncf %89 : vector<17x16xf32> to vector<17x16xbf16>
    %91 = vector.extract_strided_slice %13 {offsets = [32, 0], sizes = [16, 32], strides = [1, 1]} : vector<64x32xbf16> to vector<16x32xbf16>
    %cst_28 = arith.constant dense<0.000000e+00> : vector<17x32xf32>
    %92 = tpu.matmul %90, %91, %cst_28 {dimension_numbers = #tpu.dot_dimension_numbers<[1], [0], [0], [1], [0, 0, 1, 1], [], []>} : vector<17x16xbf16>, vector<16x32xbf16>, vector<17x32xf32> -> vector<17x32xf32>
    %93 = arith.addf %67, %92 : vector<17x32xf32>
    %94 = vector.extract_strided_slice %9 {offsets = [0, 48], sizes = [17, 16], strides = [1, 1]} : vector<17x64xf32> to vector<17x16xf32>
    %95 = vector.extract_strided_slice %10 {offsets = [0, 48], sizes = [17, 16], strides = [1, 1]} : vector<17x64xf32> to vector<17x16xf32>
    %96 = vector.extract_strided_slice %11 {offsets = [0, 48], sizes = [17, 16], strides = [1, 1]} : vector<17x64xf32> to vector<17x16xf32>
    %97 = arith.truncf %94 : vector<17x16xf32> to vector<17x16xbf16>
    %98 = tpu.transpose %95, [1, 0] : vector<17x16xf32> -> vector<16x17xf32>
    %99 = arith.truncf %98 : vector<16x17xf32> to vector<16x17xbf16>
    %cst_29 = arith.constant dense<0.000000e+00> : vector<17x17xf32>
    %100 = tpu.matmul %97, %99, %cst_29 {dimension_numbers = #tpu.dot_dimension_numbers<[1], [0], [0], [1], [0, 0, 1, 1], [], []>} : vector<17x16xbf16>, vector<16x17xbf16>, vector<17x17xf32> -> vector<17x17xf32>
    %cst_30 = arith.constant 2.500000e-01 : f32
    %101 = vector.broadcast %cst_30 : f32 to vector<17x17xf32>
    %102 = arith.mulf %100, %101 : vector<17x17xf32>
    %cst_31 = arith.constant dense<0xFF800000> : vector<17xf32>
    %103 = vector.multi_reduction <maximumf>, %102, %cst_31 [1] : vector<17x17xf32> to vector<17xf32>
    %104 = vector.shape_cast %103 : vector<17xf32> to vector<17x1xf32>
    %105 = vector.broadcast %104 : vector<17x1xf32> to vector<17x17xf32>
    %106 = arith.subf %102, %105 : vector<17x17xf32>
    %107 = math.exp %106 : vector<17x17xf32>
    %cst_32 = arith.constant dense<0.000000e+00> : vector<17xf32>
    %108 = vector.multi_reduction <add>, %107, %cst_32 [1] : vector<17x17xf32> to vector<17xf32>
    %109 = vector.shape_cast %108 : vector<17xf32> to vector<17x1xf32>
    %110 = tpu.reciprocal %109 {approx = true} : vector<17x1xf32> -> vector<17x1xf32>
    %111 = vector.broadcast %110 : vector<17x1xf32> to vector<17x17xf32>
    %112 = arith.mulf %107, %111 : vector<17x17xf32>
    %113 = arith.truncf %112 : vector<17x17xf32> to vector<17x17xbf16>
    %114 = arith.truncf %96 : vector<17x16xf32> to vector<17x16xbf16>
    %cst_33 = arith.constant dense<0.000000e+00> : vector<17x16xf32>
    %115 = tpu.matmul %113, %114, %cst_33 {dimension_numbers = #tpu.dot_dimension_numbers<[1], [0], [0], [1], [0, 0, 1, 1], [], []>} : vector<17x17xbf16>, vector<17x16xbf16>, vector<17x16xf32> -> vector<17x16xf32>
    %116 = arith.truncf %115 : vector<17x16xf32> to vector<17x16xbf16>
    %117 = vector.extract_strided_slice %13 {offsets = [48, 0], sizes = [16, 32], strides = [1, 1]} : vector<64x32xbf16> to vector<16x32xbf16>
    %cst_34 = arith.constant dense<0.000000e+00> : vector<17x32xf32>
    %118 = tpu.matmul %116, %117, %cst_34 {dimension_numbers = #tpu.dot_dimension_numbers<[1], [0], [0], [1], [0, 0, 1, 1], [], []>} : vector<17x16xbf16>, vector<16x32xbf16>, vector<17x32xf32> -> vector<17x32xf32>
    %119 = arith.addf %93, %118 : vector<17x32xf32>
    %120 = vector.broadcast %14 : vector<1x32xf32> to vector<17x32xf32>
    %121 = arith.addf %119, %120 : vector<17x32xf32>
    %c0_35 = arith.constant 0 : index
    %c0_36 = arith.constant 0 : index
    %122 = vector.load %arg6[%c0_35, %c0_36] : memref<1x32xf32, #tpu.memory_space<vmem>>, vector<1x32xf32>
    %c0_37 = arith.constant 0 : index
    %c0_38 = arith.constant 0 : index
    %123 = vector.load %arg7[%c0_37, %c0_38] : memref<1x32xf32, #tpu.memory_space<vmem>>, vector<1x32xf32>
    %124 = arith.addf %1, %121 : vector<17x32xf32>
    %cst_39 = arith.constant dense<0.000000e+00> : vector<17xf32>
    %125 = vector.multi_reduction <add>, %124, %cst_39 [1] : vector<17x32xf32> to vector<17xf32>
    %126 = vector.shape_cast %125 : vector<17xf32> to vector<17x1xf32>
    %cst_40 = arith.constant 3.200000e+01 : f32
    %127 = vector.broadcast %cst_40 : f32 to vector<17x1xf32>
    %128 = arith.divf %126, %127 : vector<17x1xf32>
    %129 = vector.broadcast %128 : vector<17x1xf32> to vector<17x32xf32>
    %130 = arith.subf %124, %129 : vector<17x32xf32>
    %131 = arith.mulf %130, %130 : vector<17x32xf32>
    %cst_41 = arith.constant dense<0.000000e+00> : vector<17xf32>
    %132 = vector.multi_reduction <add>, %131, %cst_41 [1] : vector<17x32xf32> to vector<17xf32>
    %133 = vector.shape_cast %132 : vector<17xf32> to vector<17x1xf32>
    %cst_42 = arith.constant 3.200000e+01 : f32
    %134 = vector.broadcast %cst_42 : f32 to vector<17x1xf32>
    %135 = arith.divf %133, %134 : vector<17x1xf32>
    %136 = vector.broadcast %128 : vector<17x1xf32> to vector<17x32xf32>
    %137 = arith.subf %124, %136 : vector<17x32xf32>
    %cst_43 = arith.constant 9.99999996E-13 : f32
    %138 = vector.broadcast %cst_43 : f32 to vector<17x1xf32>
    %139 = arith.addf %135, %138 : vector<17x1xf32>
    %140 = math.rsqrt %139 : vector<17x1xf32>
    %141 = vector.broadcast %140 : vector<17x1xf32> to vector<17x32xf32>
    %142 = arith.mulf %137, %141 : vector<17x32xf32>
    %143 = vector.broadcast %122 : vector<1x32xf32> to vector<17x32xf32>
    %144 = arith.mulf %142, %143 : vector<17x32xf32>
    %145 = vector.broadcast %123 : vector<1x32xf32> to vector<17x32xf32>
    %146 = arith.addf %144, %145 : vector<17x32xf32>
    %c0_44 = arith.constant 0 : index
    %c0_45 = arith.constant 0 : index
    %147 = vector.load %arg8[%c0_44, %c0_45] : memref<32x64xf32, #tpu.memory_space<vmem>>, vector<32x64xf32>
    %148 = arith.truncf %147 : vector<32x64xf32> to vector<32x64xbf16>
    %c0_46 = arith.constant 0 : index
    %c0_47 = arith.constant 0 : index
    %149 = vector.load %arg9[%c0_46, %c0_47] : memref<1x64xf32, #tpu.memory_space<vmem>>, vector<1x64xf32>
    %c0_48 = arith.constant 0 : index
    %c0_49 = arith.constant 0 : index
    %150 = vector.load %arg10[%c0_48, %c0_49] : memref<64x32xf32, #tpu.memory_space<vmem>>, vector<64x32xf32>
    %151 = arith.truncf %150 : vector<64x32xf32> to vector<64x32xbf16>
    %c0_50 = arith.constant 0 : index
    %c0_51 = arith.constant 0 : index
    %152 = vector.load %arg11[%c0_50, %c0_51] : memref<1x32xf32, #tpu.memory_space<vmem>>, vector<1x32xf32>
    %153 = arith.truncf %146 : vector<17x32xf32> to vector<17x32xbf16>
    %cst_52 = arith.constant dense<0.000000e+00> : vector<17x64xf32>
    %154 = tpu.matmul %153, %148, %cst_52 {dimension_numbers = #tpu.dot_dimension_numbers<[1], [0], [0], [1], [0, 0, 1, 1], [], []>} : vector<17x32xbf16>, vector<32x64xbf16>, vector<17x64xf32> -> vector<17x64xf32>
    %155 = vector.broadcast %149 : vector<1x64xf32> to vector<17x64xf32>
    %156 = arith.addf %154, %155 : vector<17x64xf32>
    %157 = arith.mulf %156, %156 : vector<17x64xf32>
    %158 = arith.mulf %156, %157 : vector<17x64xf32>
    %cst_53 = arith.constant 4.471500e-02 : f32
    %159 = vector.broadcast %cst_53 : f32 to vector<17x64xf32>
    %160 = arith.mulf %159, %158 : vector<17x64xf32>
    %161 = arith.addf %156, %160 : vector<17x64xf32>
    %cst_54 = arith.constant 0.797884583 : f32
    %162 = vector.broadcast %cst_54 : f32 to vector<17x64xf32>
    %163 = arith.mulf %162, %161 : vector<17x64xf32>
    %164 = math.tanh %163 : vector<17x64xf32>
    %cst_55 = arith.constant 1.000000e+00 : f32
    %165 = vector.broadcast %cst_55 : f32 to vector<17x64xf32>
    %166 = arith.addf %165, %164 : vector<17x64xf32>
    %cst_56 = arith.constant 5.000000e-01 : f32
    %167 = vector.broadcast %cst_56 : f32 to vector<17x64xf32>
    %168 = arith.mulf %167, %166 : vector<17x64xf32>
    %169 = arith.mulf %156, %168 : vector<17x64xf32>
    %170 = arith.truncf %169 : vector<17x64xf32> to vector<17x64xbf16>
    %cst_57 = arith.constant dense<0.000000e+00> : vector<17x32xf32>
    %171 = tpu.matmul %170, %151, %cst_57 {dimension_numbers = #tpu.dot_dimension_numbers<[1], [0], [0], [1], [0, 0, 1, 1], [], []>} : vector<17x64xbf16>, vector<64x32xbf16>, vector<17x32xf32> -> vector<17x32xf32>
    %172 = vector.broadcast %152 : vector<1x32xf32> to vector<17x32xf32>
    %173 = arith.addf %171, %172 : vector<17x32xf32>
    %c0_58 = arith.constant 0 : index
    %c0_59 = arith.constant 0 : index
    %174 = vector.load %arg12[%c0_58, %c0_59] : memref<1x32xf32, #tpu.memory_space<vmem>>, vector<1x32xf32>
    %c0_60 = arith.constant 0 : index
    %c0_61 = arith.constant 0 : index
    %175 = vector.load %arg13[%c0_60, %c0_61] : memref<1x32xf32, #tpu.memory_space<vmem>>, vector<1x32xf32>
    %176 = arith.addf %173, %146 : vector<17x32xf32>
    %cst_62 = arith.constant dense<0.000000e+00> : vector<17xf32>
    %177 = vector.multi_reduction <add>, %176, %cst_62 [1] : vector<17x32xf32> to vector<17xf32>
    %178 = vector.shape_cast %177 : vector<17xf32> to vector<17x1xf32>
    %cst_63 = arith.constant 3.200000e+01 : f32
    %179 = vector.broadcast %cst_63 : f32 to vector<17x1xf32>
    %180 = arith.divf %178, %179 : vector<17x1xf32>
    %181 = vector.broadcast %180 : vector<17x1xf32> to vector<17x32xf32>
    %182 = arith.subf %176, %181 : vector<17x32xf32>
    %183 = arith.mulf %182, %182 : vector<17x32xf32>
    %cst_64 = arith.constant dense<0.000000e+00> : vector<17xf32>
    %184 = vector.multi_reduction <add>, %183, %cst_64 [1] : vector<17x32xf32> to vector<17xf32>
    %185 = vector.shape_cast %184 : vector<17xf32> to vector<17x1xf32>
    %cst_65 = arith.constant 3.200000e+01 : f32
    %186 = vector.broadcast %cst_65 : f32 to vector<17x1xf32>
    %187 = arith.divf %185, %186 : vector<17x1xf32>
    %188 = vector.broadcast %180 : vector<17x1xf32> to vector<17x32xf32>
    %189 = arith.subf %176, %188 : vector<17x32xf32>
    %cst_66 = arith.constant 9.99999996E-13 : f32
    %190 = vector.broadcast %cst_66 : f32 to vector<17x1xf32>
    %191 = arith.addf %187, %190 : vector<17x1xf32>
    %192 = math.rsqrt %191 : vector<17x1xf32>
    %193 = vector.broadcast %192 : vector<17x1xf32> to vector<17x32xf32>
    %194 = arith.mulf %189, %193 : vector<17x32xf32>
    %195 = vector.broadcast %174 : vector<1x32xf32> to vector<17x32xf32>
    %196 = arith.mulf %194, %195 : vector<17x32xf32>
    %197 = vector.broadcast %175 : vector<1x32xf32> to vector<17x32xf32>
    %198 = arith.addf %196, %197 : vector<17x32xf32>
    %199 = vector.shape_cast %198 : vector<17x32xf32> to vector<1x17x32xf32>
    %c0_67 = arith.constant 0 : index
    %c0_68 = arith.constant 0 : index
    %c0_69 = arith.constant 0 : index
    %200 = vector.load %arg14[%c0_67, %c0_68, %c0_69] : memref<1x17x32xf32, #tpu.memory_space<vmem>>, vector<1x17x32xf32>
    tpu.vector_store %arg14[%c0_67, %c0_68, %c0_69], %199 {strides = array<i32>} : memref<1x17x32xf32, #tpu.memory_space<vmem>>, vector<1x17x32xf32>,
    return
  }
  func.func @transform_0(%arg0: i32) -> (i32, i32, i32) {
    %c0_i32 = arith.constant 0 : i32
    %c0_i32_0 = arith.constant 0 : i32
    %c0_i32_1 = arith.constant 0 : i32
    return %arg0, %c0_i32, %c0_i32_0 : i32, i32, i32
  }
  func.func @transform_1(%arg0: i32) -> (i32, i32) {
    %c0_i32 = arith.constant 0 : i32
    %c0_i32_0 = arith.constant 0 : i32
    %c0_i32_1 = arith.constant 0 : i32
    return %c0_i32, %c0_i32_0 : i32, i32
  }
  func.func @transform_2(%arg0: i32) -> (i32, i32) {
    %c0_i32 = arith.constant 0 : i32
    %c0_i32_0 = arith.constant 0 : i32
    %c0_i32_1 = arith.constant 0 : i32
    return %c0_i32, %c0_i32_0 : i32, i32
  }
  func.func @transform_3(%arg0: i32) -> (i32, i32) {
    %c0_i32 = arith.constant 0 : i32
    %c0_i32_0 = arith.constant 0 : i32
    %c0_i32_1 = arith.constant 0 : i32
    return %c0_i32, %c0_i32_0 : i32, i32
  }
  func.func @transform_4(%arg0: i32) -> (i32, i32) {
    %c0_i32 = arith.constant 0 : i32
    %c0_i32_0 = arith.constant 0 : i32
    %c0_i32_1 = arith.constant 0 : i32
    return %c0_i32, %c0_i32_0 : i32, i32
  }
  func.func @transform_5(%arg0: i32) -> (i32, i32) {
    %c0_i32 = arith.constant 0 : i32
    %c0_i32_0 = arith.constant 0 : i32
    %c0_i32_1 = arith.constant 0 : i32
    return %c0_i32, %c0_i32_0 : i32, i32
  }
  func.func @transform_6(%arg0: i32) -> (i32, i32) {
    %c0_i32 = arith.constant 0 : i32
    %c0_i32_0 = arith.constant 0 : i32
    %c0_i32_1 = arith.constant 0 : i32
    return %c0_i32, %c0_i32_0 : i32, i32
  }
  func.func @transform_7(%arg0: i32) -> (i32, i32) {
    %c0_i32 = arith.constant 0 : i32
    %c0_i32_0 = arith.constant 0 : i32
    %c0_i32_1 = arith.constant 0 : i32
    return %c0_i32, %c0_i32_0 : i32, i32
  }
  func.func @transform_8(%arg0: i32) -> (i32, i32) {
    %c0_i32 = arith.constant 0 : i32
    %c0_i32_0 = arith.constant 0 : i32
    %c0_i32_1 = arith.constant 0 : i32
    return %c0_i32, %c0_i32_0 : i32, i32
  }
  func.func @transform_9(%arg0: i32) -> (i32, i32) {
    %c0_i32 = arith.constant 0 : i32
    %c0_i32_0 = arith.constant 0 : i32
    %c0_i32_1 = arith.constant 0 : i32
    return %c0_i32, %c0_i32_0 : i32, i32
  }
  func.func @transform_10(%arg0: i32) -> (i32, i32) {
    %c0_i32 = arith.constant 0 : i32
    %c0_i32_0 = arith.constant 0 : i32
    %c0_i32_1 = arith.constant 0 : i32
    return %c0_i32, %c0_i32_0 : i32, i32
  }
  func.func @transform_11(%arg0: i32) -> (i32, i32) {
    %c0_i32 = arith.constant 0 : i32
    %c0_i32_0 = arith.constant 0 : i32
    %c0_i32_1 = arith.constant 0 : i32
    return %c0_i32, %c0_i32_0 : i32, i32
  }
  func.func @transform_12(%arg0: i32) -> (i32, i32) {
    %c0_i32 = arith.constant 0 : i32
    %c0_i32_0 = arith.constant 0 : i32
    %c0_i32_1 = arith.constant 0 : i32
    return %c0_i32, %c0_i32_0 : i32, i32
  }
  func.func @transform_13(%arg0: i32) -> (i32, i32, i32) {
    %c0_i32 = arith.constant 0 : i32
    %c0_i32_0 = arith.constant 0 : i32
    %c0_i32_1 = arith.constant 0 : i32
    return %arg0, %c0_i32, %c0_i32_0 : i32, i32, i32
  }
}

module attributes {stable_mosaic.version = 11 : i64} {
  func.func @dec_layer_kernel(%arg0: i32, %arg1: memref<1x17x32xf32, #tpu.memory_space<vmem>>, %arg2: memref<1x17x32xf32, #tpu.memory_space<vmem>>, %arg3: memref<32x192xf32, #tpu.memory_space<vmem>>, %arg4: memref<1x192xf32, #tpu.memory_space<vmem>>, %arg5: memref<64x32xf32, #tpu.memory_space<vmem>>, %arg6: memref<1x32xf32, #tpu.memory_space<vmem>>, %arg7: memref<1x32xf32, #tpu.memory_space<vmem>>, %arg8: memref<1x32xf32, #tpu.memory_space<vmem>>, %arg9: memref<32x64xf32, #tpu.memory_space<vmem>>, %arg10: memref<1x64xf32, #tpu.memory_space<vmem>>, %arg11: memref<32x128xf32, #tpu.memory_space<vmem>>, %arg12: memref<1x128xf32, #tpu.memory_space<vmem>>, %arg13: memref<64x32xf32, #tpu.memory_space<vmem>>, %arg14: memref<1x32xf32, #tpu.memory_space<vmem>>, %arg15: memref<1x32xf32, #tpu.memory_space<vmem>>, %arg16: memref<1x32xf32, #tpu.memory_space<vmem>>, %arg17: memref<32x64xf32, #tpu.memory_space<vmem>>, %arg18: memref<1x64xf32, #tpu.memory_space<vmem>>, %arg19: memref<64x32xf32, #tpu.memory_space<vmem>>, %arg20: memref<1x32xf32, #tpu.memory_space<vmem>>, %arg21: memref<1x32xf32, #tpu.memory_space<vmem>>, %arg22: memref<1x32xf32, #tpu.memory_space<vmem>>, %arg23: memref<1x17x32xf32, #tpu.memory_space<vmem>>) attributes {dimension_semantics = [#tpu.dimension_semantics<parallel>], iteration_bounds = array<i64: 2>, scalar_prefetch = 0 : i64, scratch_operands = 0 : i64, tpu.core_type = #tpu.core_type<tc>, window_params = [{transform_indices = @transform_0, window_bounds = array<i64: 1, 17, 32>}, {transform_indices = @transform_1, window_bounds = array<i64: 1, 17, 32>}, {pipeline_mode = #tpu.pipeline_mode<synchronous>, transform_indices = @transform_2, window_bounds = array<i64: 32, 192>}, {pipeline_mode = #tpu.pipeline_mode<synchronous>, transform_indices = @transform_3, window_bounds = array<i64: 1, 192>}, {pipeline_mode = #tpu.pipeline_mode<synchronous>, transform_indices = @transform_4, window_bounds = array<i64: 64, 32>}, {pipeline_mode = #tpu.pipeline_mode<synchronous>, transform_indices = @transform_5, window_bounds = array<i64: 1, 32>}, {pipeline_mode = #tpu.pipeline_mode<synchronous>, transform_indices = @transform_6, window_bounds = array<i64: 1, 32>}, {pipeline_mode = #tpu.pipeline_mode<synchronous>, transform_indices = @transform_7, window_bounds = array<i64: 1, 32>}, {pipeline_mode = #tpu.pipeline_mode<synchronous>, transform_indices = @transform_8, window_bounds = array<i64: 32, 64>}, {pipeline_mode = #tpu.pipeline_mode<synchronous>, transform_indices = @transform_9, window_bounds = array<i64: 1, 64>}, {pipeline_mode = #tpu.pipeline_mode<synchronous>, transform_indices = @transform_10, window_bounds = array<i64: 32, 128>}, {pipeline_mode = #tpu.pipeline_mode<synchronous>, transform_indices = @transform_11, window_bounds = array<i64: 1, 128>}, {pipeline_mode = #tpu.pipeline_mode<synchronous>, transform_indices = @transform_12, window_bounds = array<i64: 64, 32>}, {pipeline_mode = #tpu.pipeline_mode<synchronous>, transform_indices = @transform_13, window_bounds = array<i64: 1, 32>}, {pipeline_mode = #tpu.pipeline_mode<synchronous>, transform_indices = @transform_14, window_bounds = array<i64: 1, 32>}, {pipeline_mode = #tpu.pipeline_mode<synchronous>, transform_indices = @transform_15, window_bounds = array<i64: 1, 32>}, {pipeline_mode = #tpu.pipeline_mode<synchronous>, transform_indices = @transform_16, window_bounds = array<i64: 32, 64>}, {pipeline_mode = #tpu.pipeline_mode<synchronous>, transform_indices = @transform_17, window_bounds = array<i64: 1, 64>}, {pipeline_mode = #tpu.pipeline_mode<synchronous>, transform_indices = @transform_18, window_bounds = array<i64: 64, 32>}, {pipeline_mode = #tpu.pipeline_mode<synchronous>, transform_indices = @transform_19, window_bounds = array<i64: 1, 32>}, {pipeline_mode = #tpu.pipeline_mode<synchronous>, transform_indices = @transform_20, window_bounds = array<i64: 1, 32>}, {pipeline_mode = #tpu.pipeline_mode<synchronous>, transform_indices = @transform_21, window_bounds = array<i64: 1, 32>}, {transform_indices = @transform_22, window_bounds = array<i64: 1, 17, 32>}]} {
    %c0 = arith.constant 0 : index
    %c0_0 = arith.constant 0 : index
    %c0_1 = arith.constant 0 : index
    %0 = vector.load %arg1[%c0, %c0_0, %c0_1] : memref<1x17x32xf32, #tpu.memory_space<vmem>>, vector<1x17x32xf32>
    %1 = vector.shape_cast %0 : vector<1x17x32xf32> to vector<17x32xf32>
    %c0_2 = arith.constant 0 : index
    %c0_3 = arith.constant 0 : index
    %c0_4 = arith.constant 0 : index
    %2 = vector.load %arg2[%c0_2, %c0_3, %c0_4] : memref<1x17x32xf32, #tpu.memory_space<vmem>>, vector<1x17x32xf32>
    %3 = vector.shape_cast %2 : vector<1x17x32xf32> to vector<17x32xf32>
    %4 = arith.truncf %1 : vector<17x32xf32> to vector<17x32xbf16>
    %c0_5 = arith.constant 0 : index
    %c0_6 = arith.constant 0 : index
    %5 = vector.load %arg3[%c0_5, %c0_6] : memref<32x192xf32, #tpu.memory_space<vmem>>, vector<32x192xf32>
    %6 = arith.truncf %5 : vector<32x192xf32> to vector<32x192xbf16>
    %cst = arith.constant dense<0.000000e+00> : vector<17x192xf32>
    %7 = tpu.matmul %4, %6, %cst {dimension_numbers = #tpu.dot_dimension_numbers<[1], [0], [0], [1], [0, 0, 1, 1], [], []>} : vector<17x32xbf16>, vector<32x192xbf16>, vector<17x192xf32> -> vector<17x192xf32>
    %c0_7 = arith.constant 0 : index
    %c0_8 = arith.constant 0 : index
    %8 = vector.load %arg4[%c0_7, %c0_8] : memref<1x192xf32, #tpu.memory_space<vmem>>, vector<1x192xf32>
    %9 = vector.broadcast %8 : vector<1x192xf32> to vector<17x192xf32>
    %10 = arith.addf %7, %9 : vector<17x192xf32>
    %11 = vector.extract_strided_slice %10 {offsets = [0, 0], sizes = [17, 64], strides = [1, 1]} : vector<17x192xf32> to vector<17x64xf32>
    %12 = vector.extract_strided_slice %10 {offsets = [0, 64], sizes = [17, 64], strides = [1, 1]} : vector<17x192xf32> to vector<17x64xf32>
    %13 = vector.extract_strided_slice %10 {offsets = [0, 128], sizes = [17, 64], strides = [1, 1]} : vector<17x192xf32> to vector<17x64xf32>
    %c0_9 = arith.constant 0 : index
    %c0_10 = arith.constant 0 : index
    %14 = vector.load %arg5[%c0_9, %c0_10] : memref<64x32xf32, #tpu.memory_space<vmem>>, vector<64x32xf32>
    %15 = arith.truncf %14 : vector<64x32xf32> to vector<64x32xbf16>
    %c0_11 = arith.constant 0 : index
    %c0_12 = arith.constant 0 : index
    %16 = vector.load %arg6[%c0_11, %c0_12] : memref<1x32xf32, #tpu.memory_space<vmem>>, vector<1x32xf32>
    %17 = tpu.iota {dimensions = array<i32: 0>} : vector<17x17xi32>
    %18 = tpu.iota {dimensions = array<i32: 1>} : vector<17x17xi32>
    %19 = arith.cmpi sgt, %18, %17 : vector<17x17xi32>
    %cst_13 = arith.constant 0.000000e+00 : f32
    %20 = vector.broadcast %cst_13 : f32 to vector<17x32xf32>
    %21 = vector.extract_strided_slice %11 {offsets = [0, 0], sizes = [17, 16], strides = [1, 1]} : vector<17x64xf32> to vector<17x16xf32>
    %22 = vector.extract_strided_slice %12 {offsets = [0, 0], sizes = [17, 16], strides = [1, 1]} : vector<17x64xf32> to vector<17x16xf32>
    %23 = vector.extract_strided_slice %13 {offsets = [0, 0], sizes = [17, 16], strides = [1, 1]} : vector<17x64xf32> to vector<17x16xf32>
    %24 = arith.truncf %21 : vector<17x16xf32> to vector<17x16xbf16>
    %25 = tpu.transpose %22, [1, 0] : vector<17x16xf32> -> vector<16x17xf32>
    %26 = arith.truncf %25 : vector<16x17xf32> to vector<16x17xbf16>
    %cst_14 = arith.constant dense<0.000000e+00> : vector<17x17xf32>
    %27 = tpu.matmul %24, %26, %cst_14 {dimension_numbers = #tpu.dot_dimension_numbers<[1], [0], [0], [1], [0, 0, 1, 1], [], []>} : vector<17x16xbf16>, vector<16x17xbf16>, vector<17x17xf32> -> vector<17x17xf32>
    %cst_15 = arith.constant 2.500000e-01 : f32
    %28 = vector.broadcast %cst_15 : f32 to vector<17x17xf32>
    %29 = arith.mulf %27, %28 : vector<17x17xf32>
    %cst_16 = arith.constant -1.000000e+09 : f32
    %30 = vector.broadcast %cst_16 : f32 to vector<17x17xf32>
    %31 = arith.select %19, %30, %29 : vector<17x17xi1>, vector<17x17xf32>
    %cst_17 = arith.constant dense<0xFF800000> : vector<17xf32>
    %32 = vector.multi_reduction <maximumf>, %31, %cst_17 [1] : vector<17x17xf32> to vector<17xf32>
    %33 = vector.shape_cast %32 : vector<17xf32> to vector<17x1xf32>
    %34 = vector.broadcast %33 : vector<17x1xf32> to vector<17x17xf32>
    %35 = arith.subf %31, %34 : vector<17x17xf32>
    %36 = math.exp %35 : vector<17x17xf32>
    %cst_18 = arith.constant dense<0.000000e+00> : vector<17xf32>
    %37 = vector.multi_reduction <add>, %36, %cst_18 [1] : vector<17x17xf32> to vector<17xf32>
    %38 = vector.shape_cast %37 : vector<17xf32> to vector<17x1xf32>
    %39 = tpu.reciprocal %38 {approx = true} : vector<17x1xf32> -> vector<17x1xf32>
    %40 = vector.broadcast %39 : vector<17x1xf32> to vector<17x17xf32>
    %41 = arith.mulf %36, %40 : vector<17x17xf32>
    %42 = arith.truncf %41 : vector<17x17xf32> to vector<17x17xbf16>
    %43 = arith.truncf %23 : vector<17x16xf32> to vector<17x16xbf16>
    %cst_19 = arith.constant dense<0.000000e+00> : vector<17x16xf32>
    %44 = tpu.matmul %42, %43, %cst_19 {dimension_numbers = #tpu.dot_dimension_numbers<[1], [0], [0], [1], [0, 0, 1, 1], [], []>} : vector<17x17xbf16>, vector<17x16xbf16>, vector<17x16xf32> -> vector<17x16xf32>
    %45 = arith.truncf %44 : vector<17x16xf32> to vector<17x16xbf16>
    %46 = vector.extract_strided_slice %15 {offsets = [0, 0], sizes = [16, 32], strides = [1, 1]} : vector<64x32xbf16> to vector<16x32xbf16>
    %cst_20 = arith.constant dense<0.000000e+00> : vector<17x32xf32>
    %47 = tpu.matmul %45, %46, %cst_20 {dimension_numbers = #tpu.dot_dimension_numbers<[1], [0], [0], [1], [0, 0, 1, 1], [], []>} : vector<17x16xbf16>, vector<16x32xbf16>, vector<17x32xf32> -> vector<17x32xf32>
    %48 = arith.addf %20, %47 : vector<17x32xf32>
    %49 = vector.extract_strided_slice %11 {offsets = [0, 16], sizes = [17, 16], strides = [1, 1]} : vector<17x64xf32> to vector<17x16xf32>
    %50 = vector.extract_strided_slice %12 {offsets = [0, 16], sizes = [17, 16], strides = [1, 1]} : vector<17x64xf32> to vector<17x16xf32>
    %51 = vector.extract_strided_slice %13 {offsets = [0, 16], sizes = [17, 16], strides = [1, 1]} : vector<17x64xf32> to vector<17x16xf32>
    %52 = arith.truncf %49 : vector<17x16xf32> to vector<17x16xbf16>
    %53 = tpu.transpose %50, [1, 0] : vector<17x16xf32> -> vector<16x17xf32>
    %54 = arith.truncf %53 : vector<16x17xf32> to vector<16x17xbf16>
    %cst_21 = arith.constant dense<0.000000e+00> : vector<17x17xf32>
    %55 = tpu.matmul %52, %54, %cst_21 {dimension_numbers = #tpu.dot_dimension_numbers<[1], [0], [0], [1], [0, 0, 1, 1], [], []>} : vector<17x16xbf16>, vector<16x17xbf16>, vector<17x17xf32> -> vector<17x17xf32>
    %cst_22 = arith.constant 2.500000e-01 : f32
    %56 = vector.broadcast %cst_22 : f32 to vector<17x17xf32>
    %57 = arith.mulf %55, %56 : vector<17x17xf32>
    %cst_23 = arith.constant -1.000000e+09 : f32
    %58 = vector.broadcast %cst_23 : f32 to vector<17x17xf32>
    %59 = arith.select %19, %58, %57 : vector<17x17xi1>, vector<17x17xf32>
    %cst_24 = arith.constant dense<0xFF800000> : vector<17xf32>
    %60 = vector.multi_reduction <maximumf>, %59, %cst_24 [1] : vector<17x17xf32> to vector<17xf32>
    %61 = vector.shape_cast %60 : vector<17xf32> to vector<17x1xf32>
    %62 = vector.broadcast %61 : vector<17x1xf32> to vector<17x17xf32>
    %63 = arith.subf %59, %62 : vector<17x17xf32>
    %64 = math.exp %63 : vector<17x17xf32>
    %cst_25 = arith.constant dense<0.000000e+00> : vector<17xf32>
    %65 = vector.multi_reduction <add>, %64, %cst_25 [1] : vector<17x17xf32> to vector<17xf32>
    %66 = vector.shape_cast %65 : vector<17xf32> to vector<17x1xf32>
    %67 = tpu.reciprocal %66 {approx = true} : vector<17x1xf32> -> vector<17x1xf32>
    %68 = vector.broadcast %67 : vector<17x1xf32> to vector<17x17xf32>
    %69 = arith.mulf %64, %68 : vector<17x17xf32>
    %70 = arith.truncf %69 : vector<17x17xf32> to vector<17x17xbf16>
    %71 = arith.truncf %51 : vector<17x16xf32> to vector<17x16xbf16>
    %cst_26 = arith.constant dense<0.000000e+00> : vector<17x16xf32>
    %72 = tpu.matmul %70, %71, %cst_26 {dimension_numbers = #tpu.dot_dimension_numbers<[1], [0], [0], [1], [0, 0, 1, 1], [], []>} : vector<17x17xbf16>, vector<17x16xbf16>, vector<17x16xf32> -> vector<17x16xf32>
    %73 = arith.truncf %72 : vector<17x16xf32> to vector<17x16xbf16>
    %74 = vector.extract_strided_slice %15 {offsets = [16, 0], sizes = [16, 32], strides = [1, 1]} : vector<64x32xbf16> to vector<16x32xbf16>
    %cst_27 = arith.constant dense<0.000000e+00> : vector<17x32xf32>
    %75 = tpu.matmul %73, %74, %cst_27 {dimension_numbers = #tpu.dot_dimension_numbers<[1], [0], [0], [1], [0, 0, 1, 1], [], []>} : vector<17x16xbf16>, vector<16x32xbf16>, vector<17x32xf32> -> vector<17x32xf32>
    %76 = arith.addf %48, %75 : vector<17x32xf32>
    %77 = vector.extract_strided_slice %11 {offsets = [0, 32], sizes = [17, 16], strides = [1, 1]} : vector<17x64xf32> to vector<17x16xf32>
    %78 = vector.extract_strided_slice %12 {offsets = [0, 32], sizes = [17, 16], strides = [1, 1]} : vector<17x64xf32> to vector<17x16xf32>
    %79 = vector.extract_strided_slice %13 {offsets = [0, 32], sizes = [17, 16], strides = [1, 1]} : vector<17x64xf32> to vector<17x16xf32>
    %80 = arith.truncf %77 : vector<17x16xf32> to vector<17x16xbf16>
    %81 = tpu.transpose %78, [1, 0] : vector<17x16xf32> -> vector<16x17xf32>
    %82 = arith.truncf %81 : vector<16x17xf32> to vector<16x17xbf16>
    %cst_28 = arith.constant dense<0.000000e+00> : vector<17x17xf32>
    %83 = tpu.matmul %80, %82, %cst_28 {dimension_numbers = #tpu.dot_dimension_numbers<[1], [0], [0], [1], [0, 0, 1, 1], [], []>} : vector<17x16xbf16>, vector<16x17xbf16>, vector<17x17xf32> -> vector<17x17xf32>
    %cst_29 = arith.constant 2.500000e-01 : f32
    %84 = vector.broadcast %cst_29 : f32 to vector<17x17xf32>
    %85 = arith.mulf %83, %84 : vector<17x17xf32>
    %cst_30 = arith.constant -1.000000e+09 : f32
    %86 = vector.broadcast %cst_30 : f32 to vector<17x17xf32>
    %87 = arith.select %19, %86, %85 : vector<17x17xi1>, vector<17x17xf32>
    %cst_31 = arith.constant dense<0xFF800000> : vector<17xf32>
    %88 = vector.multi_reduction <maximumf>, %87, %cst_31 [1] : vector<17x17xf32> to vector<17xf32>
    %89 = vector.shape_cast %88 : vector<17xf32> to vector<17x1xf32>
    %90 = vector.broadcast %89 : vector<17x1xf32> to vector<17x17xf32>
    %91 = arith.subf %87, %90 : vector<17x17xf32>
    %92 = math.exp %91 : vector<17x17xf32>
    %cst_32 = arith.constant dense<0.000000e+00> : vector<17xf32>
    %93 = vector.multi_reduction <add>, %92, %cst_32 [1] : vector<17x17xf32> to vector<17xf32>
    %94 = vector.shape_cast %93 : vector<17xf32> to vector<17x1xf32>
    %95 = tpu.reciprocal %94 {approx = true} : vector<17x1xf32> -> vector<17x1xf32>
    %96 = vector.broadcast %95 : vector<17x1xf32> to vector<17x17xf32>
    %97 = arith.mulf %92, %96 : vector<17x17xf32>
    %98 = arith.truncf %97 : vector<17x17xf32> to vector<17x17xbf16>
    %99 = arith.truncf %79 : vector<17x16xf32> to vector<17x16xbf16>
    %cst_33 = arith.constant dense<0.000000e+00> : vector<17x16xf32>
    %100 = tpu.matmul %98, %99, %cst_33 {dimension_numbers = #tpu.dot_dimension_numbers<[1], [0], [0], [1], [0, 0, 1, 1], [], []>} : vector<17x17xbf16>, vector<17x16xbf16>, vector<17x16xf32> -> vector<17x16xf32>
    %101 = arith.truncf %100 : vector<17x16xf32> to vector<17x16xbf16>
    %102 = vector.extract_strided_slice %15 {offsets = [32, 0], sizes = [16, 32], strides = [1, 1]} : vector<64x32xbf16> to vector<16x32xbf16>
    %cst_34 = arith.constant dense<0.000000e+00> : vector<17x32xf32>
    %103 = tpu.matmul %101, %102, %cst_34 {dimension_numbers = #tpu.dot_dimension_numbers<[1], [0], [0], [1], [0, 0, 1, 1], [], []>} : vector<17x16xbf16>, vector<16x32xbf16>, vector<17x32xf32> -> vector<17x32xf32>
    %104 = arith.addf %76, %103 : vector<17x32xf32>
    %105 = vector.extract_strided_slice %11 {offsets = [0, 48], sizes = [17, 16], strides = [1, 1]} : vector<17x64xf32> to vector<17x16xf32>
    %106 = vector.extract_strided_slice %12 {offsets = [0, 48], sizes = [17, 16], strides = [1, 1]} : vector<17x64xf32> to vector<17x16xf32>
    %107 = vector.extract_strided_slice %13 {offsets = [0, 48], sizes = [17, 16], strides = [1, 1]} : vector<17x64xf32> to vector<17x16xf32>
    %108 = arith.truncf %105 : vector<17x16xf32> to vector<17x16xbf16>
    %109 = tpu.transpose %106, [1, 0] : vector<17x16xf32> -> vector<16x17xf32>
    %110 = arith.truncf %109 : vector<16x17xf32> to vector<16x17xbf16>
    %cst_35 = arith.constant dense<0.000000e+00> : vector<17x17xf32>
    %111 = tpu.matmul %108, %110, %cst_35 {dimension_numbers = #tpu.dot_dimension_numbers<[1], [0], [0], [1], [0, 0, 1, 1], [], []>} : vector<17x16xbf16>, vector<16x17xbf16>, vector<17x17xf32> -> vector<17x17xf32>
    %cst_36 = arith.constant 2.500000e-01 : f32
    %112 = vector.broadcast %cst_36 : f32 to vector<17x17xf32>
    %113 = arith.mulf %111, %112 : vector<17x17xf32>
    %cst_37 = arith.constant -1.000000e+09 : f32
    %114 = vector.broadcast %cst_37 : f32 to vector<17x17xf32>
    %115 = arith.select %19, %114, %113 : vector<17x17xi1>, vector<17x17xf32>
    %cst_38 = arith.constant dense<0xFF800000> : vector<17xf32>
    %116 = vector.multi_reduction <maximumf>, %115, %cst_38 [1] : vector<17x17xf32> to vector<17xf32>
    %117 = vector.shape_cast %116 : vector<17xf32> to vector<17x1xf32>
    %118 = vector.broadcast %117 : vector<17x1xf32> to vector<17x17xf32>
    %119 = arith.subf %115, %118 : vector<17x17xf32>
    %120 = math.exp %119 : vector<17x17xf32>
    %cst_39 = arith.constant dense<0.000000e+00> : vector<17xf32>
    %121 = vector.multi_reduction <add>, %120, %cst_39 [1] : vector<17x17xf32> to vector<17xf32>
    %122 = vector.shape_cast %121 : vector<17xf32> to vector<17x1xf32>
    %123 = tpu.reciprocal %122 {approx = true} : vector<17x1xf32> -> vector<17x1xf32>
    %124 = vector.broadcast %123 : vector<17x1xf32> to vector<17x17xf32>
    %125 = arith.mulf %120, %124 : vector<17x17xf32>
    %126 = arith.truncf %125 : vector<17x17xf32> to vector<17x17xbf16>
    %127 = arith.truncf %107 : vector<17x16xf32> to vector<17x16xbf16>
    %cst_40 = arith.constant dense<0.000000e+00> : vector<17x16xf32>
    %128 = tpu.matmul %126, %127, %cst_40 {dimension_numbers = #tpu.dot_dimension_numbers<[1], [0], [0], [1], [0, 0, 1, 1], [], []>} : vector<17x17xbf16>, vector<17x16xbf16>, vector<17x16xf32> -> vector<17x16xf32>
    %129 = arith.truncf %128 : vector<17x16xf32> to vector<17x16xbf16>
    %130 = vector.extract_strided_slice %15 {offsets = [48, 0], sizes = [16, 32], strides = [1, 1]} : vector<64x32xbf16> to vector<16x32xbf16>
    %cst_41 = arith.constant dense<0.000000e+00> : vector<17x32xf32>
    %131 = tpu.matmul %129, %130, %cst_41 {dimension_numbers = #tpu.dot_dimension_numbers<[1], [0], [0], [1], [0, 0, 1, 1], [], []>} : vector<17x16xbf16>, vector<16x32xbf16>, vector<17x32xf32> -> vector<17x32xf32>
    %132 = arith.addf %104, %131 : vector<17x32xf32>
    %133 = vector.broadcast %16 : vector<1x32xf32> to vector<17x32xf32>
    %134 = arith.addf %132, %133 : vector<17x32xf32>
    %c0_42 = arith.constant 0 : index
    %c0_43 = arith.constant 0 : index
    %135 = vector.load %arg7[%c0_42, %c0_43] : memref<1x32xf32, #tpu.memory_space<vmem>>, vector<1x32xf32>
    %c0_44 = arith.constant 0 : index
    %c0_45 = arith.constant 0 : index
    %136 = vector.load %arg8[%c0_44, %c0_45] : memref<1x32xf32, #tpu.memory_space<vmem>>, vector<1x32xf32>
    %137 = arith.addf %1, %134 : vector<17x32xf32>
    %cst_46 = arith.constant dense<0.000000e+00> : vector<17xf32>
    %138 = vector.multi_reduction <add>, %137, %cst_46 [1] : vector<17x32xf32> to vector<17xf32>
    %139 = vector.shape_cast %138 : vector<17xf32> to vector<17x1xf32>
    %cst_47 = arith.constant 3.200000e+01 : f32
    %140 = vector.broadcast %cst_47 : f32 to vector<17x1xf32>
    %141 = arith.divf %139, %140 : vector<17x1xf32>
    %142 = vector.broadcast %141 : vector<17x1xf32> to vector<17x32xf32>
    %143 = arith.subf %137, %142 : vector<17x32xf32>
    %144 = arith.mulf %143, %143 : vector<17x32xf32>
    %cst_48 = arith.constant dense<0.000000e+00> : vector<17xf32>
    %145 = vector.multi_reduction <add>, %144, %cst_48 [1] : vector<17x32xf32> to vector<17xf32>
    %146 = vector.shape_cast %145 : vector<17xf32> to vector<17x1xf32>
    %cst_49 = arith.constant 3.200000e+01 : f32
    %147 = vector.broadcast %cst_49 : f32 to vector<17x1xf32>
    %148 = arith.divf %146, %147 : vector<17x1xf32>
    %149 = vector.broadcast %141 : vector<17x1xf32> to vector<17x32xf32>
    %150 = arith.subf %137, %149 : vector<17x32xf32>
    %cst_50 = arith.constant 9.99999996E-13 : f32
    %151 = vector.broadcast %cst_50 : f32 to vector<17x1xf32>
    %152 = arith.addf %148, %151 : vector<17x1xf32>
    %153 = math.rsqrt %152 : vector<17x1xf32>
    %154 = vector.broadcast %153 : vector<17x1xf32> to vector<17x32xf32>
    %155 = arith.mulf %150, %154 : vector<17x32xf32>
    %156 = vector.broadcast %135 : vector<1x32xf32> to vector<17x32xf32>
    %157 = arith.mulf %155, %156 : vector<17x32xf32>
    %158 = vector.broadcast %136 : vector<1x32xf32> to vector<17x32xf32>
    %159 = arith.addf %157, %158 : vector<17x32xf32>
    %160 = arith.truncf %159 : vector<17x32xf32> to vector<17x32xbf16>
    %c0_51 = arith.constant 0 : index
    %c0_52 = arith.constant 0 : index
    %161 = vector.load %arg9[%c0_51, %c0_52] : memref<32x64xf32, #tpu.memory_space<vmem>>, vector<32x64xf32>
    %162 = arith.truncf %161 : vector<32x64xf32> to vector<32x64xbf16>
    %cst_53 = arith.constant dense<0.000000e+00> : vector<17x64xf32>
    %163 = tpu.matmul %160, %162, %cst_53 {dimension_numbers = #tpu.dot_dimension_numbers<[1], [0], [0], [1], [0, 0, 1, 1], [], []>} : vector<17x32xbf16>, vector<32x64xbf16>, vector<17x64xf32> -> vector<17x64xf32>
    %c0_54 = arith.constant 0 : index
    %c0_55 = arith.constant 0 : index
    %164 = vector.load %arg10[%c0_54, %c0_55] : memref<1x64xf32, #tpu.memory_space<vmem>>, vector<1x64xf32>
    %165 = vector.broadcast %164 : vector<1x64xf32> to vector<17x64xf32>
    %166 = arith.addf %163, %165 : vector<17x64xf32>
    %167 = arith.truncf %3 : vector<17x32xf32> to vector<17x32xbf16>
    %c0_56 = arith.constant 0 : index
    %c0_57 = arith.constant 0 : index
    %168 = vector.load %arg11[%c0_56, %c0_57] : memref<32x128xf32, #tpu.memory_space<vmem>>, vector<32x128xf32>
    %169 = arith.truncf %168 : vector<32x128xf32> to vector<32x128xbf16>
    %cst_58 = arith.constant dense<0.000000e+00> : vector<17x128xf32>
    %170 = tpu.matmul %167, %169, %cst_58 {dimension_numbers = #tpu.dot_dimension_numbers<[1], [0], [0], [1], [0, 0, 1, 1], [], []>} : vector<17x32xbf16>, vector<32x128xbf16>, vector<17x128xf32> -> vector<17x128xf32>
    %c0_59 = arith.constant 0 : index
    %c0_60 = arith.constant 0 : index
    %171 = vector.load %arg12[%c0_59, %c0_60] : memref<1x128xf32, #tpu.memory_space<vmem>>, vector<1x128xf32>
    %172 = vector.broadcast %171 : vector<1x128xf32> to vector<17x128xf32>
    %173 = arith.addf %170, %172 : vector<17x128xf32>
    %174 = vector.extract_strided_slice %173 {offsets = [0, 0], sizes = [17, 64], strides = [1, 1]} : vector<17x128xf32> to vector<17x64xf32>
    %175 = vector.extract_strided_slice %173 {offsets = [0, 64], sizes = [17, 64], strides = [1, 1]} : vector<17x128xf32> to vector<17x64xf32>
    %c0_61 = arith.constant 0 : index
    %c0_62 = arith.constant 0 : index
    %176 = vector.load %arg13[%c0_61, %c0_62] : memref<64x32xf32, #tpu.memory_space<vmem>>, vector<64x32xf32>
    %177 = arith.truncf %176 : vector<64x32xf32> to vector<64x32xbf16>
    %c0_63 = arith.constant 0 : index
    %c0_64 = arith.constant 0 : index
    %178 = vector.load %arg14[%c0_63, %c0_64] : memref<1x32xf32, #tpu.memory_space<vmem>>, vector<1x32xf32>
    %cst_65 = arith.constant 0.000000e+00 : f32
    %179 = vector.broadcast %cst_65 : f32 to vector<17x32xf32>
    %180 = vector.extract_strided_slice %166 {offsets = [0, 0], sizes = [17, 16], strides = [1, 1]} : vector<17x64xf32> to vector<17x16xf32>
    %181 = vector.extract_strided_slice %174 {offsets = [0, 0], sizes = [17, 16], strides = [1, 1]} : vector<17x64xf32> to vector<17x16xf32>
    %182 = vector.extract_strided_slice %175 {offsets = [0, 0], sizes = [17, 16], strides = [1, 1]} : vector<17x64xf32> to vector<17x16xf32>
    %183 = arith.truncf %180 : vector<17x16xf32> to vector<17x16xbf16>
    %184 = tpu.transpose %181, [1, 0] : vector<17x16xf32> -> vector<16x17xf32>
    %185 = arith.truncf %184 : vector<16x17xf32> to vector<16x17xbf16>
    %cst_66 = arith.constant dense<0.000000e+00> : vector<17x17xf32>
    %186 = tpu.matmul %183, %185, %cst_66 {dimension_numbers = #tpu.dot_dimension_numbers<[1], [0], [0], [1], [0, 0, 1, 1], [], []>} : vector<17x16xbf16>, vector<16x17xbf16>, vector<17x17xf32> -> vector<17x17xf32>
    %cst_67 = arith.constant 2.500000e-01 : f32
    %187 = vector.broadcast %cst_67 : f32 to vector<17x17xf32>
    %188 = arith.mulf %186, %187 : vector<17x17xf32>
    %cst_68 = arith.constant dense<0xFF800000> : vector<17xf32>
    %189 = vector.multi_reduction <maximumf>, %188, %cst_68 [1] : vector<17x17xf32> to vector<17xf32>
    %190 = vector.shape_cast %189 : vector<17xf32> to vector<17x1xf32>
    %191 = vector.broadcast %190 : vector<17x1xf32> to vector<17x17xf32>
    %192 = arith.subf %188, %191 : vector<17x17xf32>
    %193 = math.exp %192 : vector<17x17xf32>
    %cst_69 = arith.constant dense<0.000000e+00> : vector<17xf32>
    %194 = vector.multi_reduction <add>, %193, %cst_69 [1] : vector<17x17xf32> to vector<17xf32>
    %195 = vector.shape_cast %194 : vector<17xf32> to vector<17x1xf32>
    %196 = tpu.reciprocal %195 {approx = true} : vector<17x1xf32> -> vector<17x1xf32>
    %197 = vector.broadcast %196 : vector<17x1xf32> to vector<17x17xf32>
    %198 = arith.mulf %193, %197 : vector<17x17xf32>
    %199 = arith.truncf %198 : vector<17x17xf32> to vector<17x17xbf16>
    %200 = arith.truncf %182 : vector<17x16xf32> to vector<17x16xbf16>
    %cst_70 = arith.constant dense<0.000000e+00> : vector<17x16xf32>
    %201 = tpu.matmul %199, %200, %cst_70 {dimension_numbers = #tpu.dot_dimension_numbers<[1], [0], [0], [1], [0, 0, 1, 1], [], []>} : vector<17x17xbf16>, vector<17x16xbf16>, vector<17x16xf32> -> vector<17x16xf32>
    %202 = arith.truncf %201 : vector<17x16xf32> to vector<17x16xbf16>
    %203 = vector.extract_strided_slice %177 {offsets = [0, 0], sizes = [16, 32], strides = [1, 1]} : vector<64x32xbf16> to vector<16x32xbf16>
    %cst_71 = arith.constant dense<0.000000e+00> : vector<17x32xf32>
    %204 = tpu.matmul %202, %203, %cst_71 {dimension_numbers = #tpu.dot_dimension_numbers<[1], [0], [0], [1], [0, 0, 1, 1], [], []>} : vector<17x16xbf16>, vector<16x32xbf16>, vector<17x32xf32> -> vector<17x32xf32>
    %205 = arith.addf %179, %204 : vector<17x32xf32>
    %206 = vector.extract_strided_slice %166 {offsets = [0, 16], sizes = [17, 16], strides = [1, 1]} : vector<17x64xf32> to vector<17x16xf32>
    %207 = vector.extract_strided_slice %174 {offsets = [0, 16], sizes = [17, 16], strides = [1, 1]} : vector<17x64xf32> to vector<17x16xf32>
    %208 = vector.extract_strided_slice %175 {offsets = [0, 16], sizes = [17, 16], strides = [1, 1]} : vector<17x64xf32> to vector<17x16xf32>
    %209 = arith.truncf %206 : vector<17x16xf32> to vector<17x16xbf16>
    %210 = tpu.transpose %207, [1, 0] : vector<17x16xf32> -> vector<16x17xf32>
    %211 = arith.truncf %210 : vector<16x17xf32> to vector<16x17xbf16>
    %cst_72 = arith.constant dense<0.000000e+00> : vector<17x17xf32>
    %212 = tpu.matmul %209, %211, %cst_72 {dimension_numbers = #tpu.dot_dimension_numbers<[1], [0], [0], [1], [0, 0, 1, 1], [], []>} : vector<17x16xbf16>, vector<16x17xbf16>, vector<17x17xf32> -> vector<17x17xf32>
    %cst_73 = arith.constant 2.500000e-01 : f32
    %213 = vector.broadcast %cst_73 : f32 to vector<17x17xf32>
    %214 = arith.mulf %212, %213 : vector<17x17xf32>
    %cst_74 = arith.constant dense<0xFF800000> : vector<17xf32>
    %215 = vector.multi_reduction <maximumf>, %214, %cst_74 [1] : vector<17x17xf32> to vector<17xf32>
    %216 = vector.shape_cast %215 : vector<17xf32> to vector<17x1xf32>
    %217 = vector.broadcast %216 : vector<17x1xf32> to vector<17x17xf32>
    %218 = arith.subf %214, %217 : vector<17x17xf32>
    %219 = math.exp %218 : vector<17x17xf32>
    %cst_75 = arith.constant dense<0.000000e+00> : vector<17xf32>
    %220 = vector.multi_reduction <add>, %219, %cst_75 [1] : vector<17x17xf32> to vector<17xf32>
    %221 = vector.shape_cast %220 : vector<17xf32> to vector<17x1xf32>
    %222 = tpu.reciprocal %221 {approx = true} : vector<17x1xf32> -> vector<17x1xf32>
    %223 = vector.broadcast %222 : vector<17x1xf32> to vector<17x17xf32>
    %224 = arith.mulf %219, %223 : vector<17x17xf32>
    %225 = arith.truncf %224 : vector<17x17xf32> to vector<17x17xbf16>
    %226 = arith.truncf %208 : vector<17x16xf32> to vector<17x16xbf16>
    %cst_76 = arith.constant dense<0.000000e+00> : vector<17x16xf32>
    %227 = tpu.matmul %225, %226, %cst_76 {dimension_numbers = #tpu.dot_dimension_numbers<[1], [0], [0], [1], [0, 0, 1, 1], [], []>} : vector<17x17xbf16>, vector<17x16xbf16>, vector<17x16xf32> -> vector<17x16xf32>
    %228 = arith.truncf %227 : vector<17x16xf32> to vector<17x16xbf16>
    %229 = vector.extract_strided_slice %177 {offsets = [16, 0], sizes = [16, 32], strides = [1, 1]} : vector<64x32xbf16> to vector<16x32xbf16>
    %cst_77 = arith.constant dense<0.000000e+00> : vector<17x32xf32>
    %230 = tpu.matmul %228, %229, %cst_77 {dimension_numbers = #tpu.dot_dimension_numbers<[1], [0], [0], [1], [0, 0, 1, 1], [], []>} : vector<17x16xbf16>, vector<16x32xbf16>, vector<17x32xf32> -> vector<17x32xf32>
    %231 = arith.addf %205, %230 : vector<17x32xf32>
    %232 = vector.extract_strided_slice %166 {offsets = [0, 32], sizes = [17, 16], strides = [1, 1]} : vector<17x64xf32> to vector<17x16xf32>
    %233 = vector.extract_strided_slice %174 {offsets = [0, 32], sizes = [17, 16], strides = [1, 1]} : vector<17x64xf32> to vector<17x16xf32>
    %234 = vector.extract_strided_slice %175 {offsets = [0, 32], sizes = [17, 16], strides = [1, 1]} : vector<17x64xf32> to vector<17x16xf32>
    %235 = arith.truncf %232 : vector<17x16xf32> to vector<17x16xbf16>
    %236 = tpu.transpose %233, [1, 0] : vector<17x16xf32> -> vector<16x17xf32>
    %237 = arith.truncf %236 : vector<16x17xf32> to vector<16x17xbf16>
    %cst_78 = arith.constant dense<0.000000e+00> : vector<17x17xf32>
    %238 = tpu.matmul %235, %237, %cst_78 {dimension_numbers = #tpu.dot_dimension_numbers<[1], [0], [0], [1], [0, 0, 1, 1], [], []>} : vector<17x16xbf16>, vector<16x17xbf16>, vector<17x17xf32> -> vector<17x17xf32>
    %cst_79 = arith.constant 2.500000e-01 : f32
    %239 = vector.broadcast %cst_79 : f32 to vector<17x17xf32>
    %240 = arith.mulf %238, %239 : vector<17x17xf32>
    %cst_80 = arith.constant dense<0xFF800000> : vector<17xf32>
    %241 = vector.multi_reduction <maximumf>, %240, %cst_80 [1] : vector<17x17xf32> to vector<17xf32>
    %242 = vector.shape_cast %241 : vector<17xf32> to vector<17x1xf32>
    %243 = vector.broadcast %242 : vector<17x1xf32> to vector<17x17xf32>
    %244 = arith.subf %240, %243 : vector<17x17xf32>
    %245 = math.exp %244 : vector<17x17xf32>
    %cst_81 = arith.constant dense<0.000000e+00> : vector<17xf32>
    %246 = vector.multi_reduction <add>, %245, %cst_81 [1] : vector<17x17xf32> to vector<17xf32>
    %247 = vector.shape_cast %246 : vector<17xf32> to vector<17x1xf32>
    %248 = tpu.reciprocal %247 {approx = true} : vector<17x1xf32> -> vector<17x1xf32>
    %249 = vector.broadcast %248 : vector<17x1xf32> to vector<17x17xf32>
    %250 = arith.mulf %245, %249 : vector<17x17xf32>
    %251 = arith.truncf %250 : vector<17x17xf32> to vector<17x17xbf16>
    %252 = arith.truncf %234 : vector<17x16xf32> to vector<17x16xbf16>
    %cst_82 = arith.constant dense<0.000000e+00> : vector<17x16xf32>
    %253 = tpu.matmul %251, %252, %cst_82 {dimension_numbers = #tpu.dot_dimension_numbers<[1], [0], [0], [1], [0, 0, 1, 1], [], []>} : vector<17x17xbf16>, vector<17x16xbf16>, vector<17x16xf32> -> vector<17x16xf32>
    %254 = arith.truncf %253 : vector<17x16xf32> to vector<17x16xbf16>
    %255 = vector.extract_strided_slice %177 {offsets = [32, 0], sizes = [16, 32], strides = [1, 1]} : vector<64x32xbf16> to vector<16x32xbf16>
    %cst_83 = arith.constant dense<0.000000e+00> : vector<17x32xf32>
    %256 = tpu.matmul %254, %255, %cst_83 {dimension_numbers = #tpu.dot_dimension_numbers<[1], [0], [0], [1], [0, 0, 1, 1], [], []>} : vector<17x16xbf16>, vector<16x32xbf16>, vector<17x32xf32> -> vector<17x32xf32>
    %257 = arith.addf %231, %256 : vector<17x32xf32>
    %258 = vector.extract_strided_slice %166 {offsets = [0, 48], sizes = [17, 16], strides = [1, 1]} : vector<17x64xf32> to vector<17x16xf32>
    %259 = vector.extract_strided_slice %174 {offsets = [0, 48], sizes = [17, 16], strides = [1, 1]} : vector<17x64xf32> to vector<17x16xf32>
    %260 = vector.extract_strided_slice %175 {offsets = [0, 48], sizes = [17, 16], strides = [1, 1]} : vector<17x64xf32> to vector<17x16xf32>
    %261 = arith.truncf %258 : vector<17x16xf32> to vector<17x16xbf16>
    %262 = tpu.transpose %259, [1, 0] : vector<17x16xf32> -> vector<16x17xf32>
    %263 = arith.truncf %262 : vector<16x17xf32> to vector<16x17xbf16>
    %cst_84 = arith.constant dense<0.000000e+00> : vector<17x17xf32>
    %264 = tpu.matmul %261, %263, %cst_84 {dimension_numbers = #tpu.dot_dimension_numbers<[1], [0], [0], [1], [0, 0, 1, 1], [], []>} : vector<17x16xbf16>, vector<16x17xbf16>, vector<17x17xf32> -> vector<17x17xf32>
    %cst_85 = arith.constant 2.500000e-01 : f32
    %265 = vector.broadcast %cst_85 : f32 to vector<17x17xf32>
    %266 = arith.mulf %264, %265 : vector<17x17xf32>
    %cst_86 = arith.constant dense<0xFF800000> : vector<17xf32>
    %267 = vector.multi_reduction <maximumf>, %266, %cst_86 [1] : vector<17x17xf32> to vector<17xf32>
    %268 = vector.shape_cast %267 : vector<17xf32> to vector<17x1xf32>
    %269 = vector.broadcast %268 : vector<17x1xf32> to vector<17x17xf32>
    %270 = arith.subf %266, %269 : vector<17x17xf32>
    %271 = math.exp %270 : vector<17x17xf32>
    %cst_87 = arith.constant dense<0.000000e+00> : vector<17xf32>
    %272 = vector.multi_reduction <add>, %271, %cst_87 [1] : vector<17x17xf32> to vector<17xf32>
    %273 = vector.shape_cast %272 : vector<17xf32> to vector<17x1xf32>
    %274 = tpu.reciprocal %273 {approx = true} : vector<17x1xf32> -> vector<17x1xf32>
    %275 = vector.broadcast %274 : vector<17x1xf32> to vector<17x17xf32>
    %276 = arith.mulf %271, %275 : vector<17x17xf32>
    %277 = arith.truncf %276 : vector<17x17xf32> to vector<17x17xbf16>
    %278 = arith.truncf %260 : vector<17x16xf32> to vector<17x16xbf16>
    %cst_88 = arith.constant dense<0.000000e+00> : vector<17x16xf32>
    %279 = tpu.matmul %277, %278, %cst_88 {dimension_numbers = #tpu.dot_dimension_numbers<[1], [0], [0], [1], [0, 0, 1, 1], [], []>} : vector<17x17xbf16>, vector<17x16xbf16>, vector<17x16xf32> -> vector<17x16xf32>
    %280 = arith.truncf %279 : vector<17x16xf32> to vector<17x16xbf16>
    %281 = vector.extract_strided_slice %177 {offsets = [48, 0], sizes = [16, 32], strides = [1, 1]} : vector<64x32xbf16> to vector<16x32xbf16>
    %cst_89 = arith.constant dense<0.000000e+00> : vector<17x32xf32>
    %282 = tpu.matmul %280, %281, %cst_89 {dimension_numbers = #tpu.dot_dimension_numbers<[1], [0], [0], [1], [0, 0, 1, 1], [], []>} : vector<17x16xbf16>, vector<16x32xbf16>, vector<17x32xf32> -> vector<17x32xf32>
    %283 = arith.addf %257, %282 : vector<17x32xf32>
    %284 = vector.broadcast %178 : vector<1x32xf32> to vector<17x32xf32>
    %285 = arith.addf %283, %284 : vector<17x32xf32>
    %c0_90 = arith.constant 0 : index
    %c0_91 = arith.constant 0 : index
    %286 = vector.load %arg15[%c0_90, %c0_91] : memref<1x32xf32, #tpu.memory_space<vmem>>, vector<1x32xf32>
    %c0_92 = arith.constant 0 : index
    %c0_93 = arith.constant 0 : index
    %287 = vector.load %arg16[%c0_92, %c0_93] : memref<1x32xf32, #tpu.memory_space<vmem>>, vector<1x32xf32>
    %288 = arith.addf %159, %285 : vector<17x32xf32>
    %cst_94 = arith.constant dense<0.000000e+00> : vector<17xf32>
    %289 = vector.multi_reduction <add>, %288, %cst_94 [1] : vector<17x32xf32> to vector<17xf32>
    %290 = vector.shape_cast %289 : vector<17xf32> to vector<17x1xf32>
    %cst_95 = arith.constant 3.200000e+01 : f32
    %291 = vector.broadcast %cst_95 : f32 to vector<17x1xf32>
    %292 = arith.divf %290, %291 : vector<17x1xf32>
    %293 = vector.broadcast %292 : vector<17x1xf32> to vector<17x32xf32>
    %294 = arith.subf %288, %293 : vector<17x32xf32>
    %295 = arith.mulf %294, %294 : vector<17x32xf32>
    %cst_96 = arith.constant dense<0.000000e+00> : vector<17xf32>
    %296 = vector.multi_reduction <add>, %295, %cst_96 [1] : vector<17x32xf32> to vector<17xf32>
    %297 = vector.shape_cast %296 : vector<17xf32> to vector<17x1xf32>
    %cst_97 = arith.constant 3.200000e+01 : f32
    %298 = vector.broadcast %cst_97 : f32 to vector<17x1xf32>
    %299 = arith.divf %297, %298 : vector<17x1xf32>
    %300 = vector.broadcast %292 : vector<17x1xf32> to vector<17x32xf32>
    %301 = arith.subf %288, %300 : vector<17x32xf32>
    %cst_98 = arith.constant 9.99999996E-13 : f32
    %302 = vector.broadcast %cst_98 : f32 to vector<17x1xf32>
    %303 = arith.addf %299, %302 : vector<17x1xf32>
    %304 = math.rsqrt %303 : vector<17x1xf32>
    %305 = vector.broadcast %304 : vector<17x1xf32> to vector<17x32xf32>
    %306 = arith.mulf %301, %305 : vector<17x32xf32>
    %307 = vector.broadcast %286 : vector<1x32xf32> to vector<17x32xf32>
    %308 = arith.mulf %306, %307 : vector<17x32xf32>
    %309 = vector.broadcast %287 : vector<1x32xf32> to vector<17x32xf32>
    %310 = arith.addf %308, %309 : vector<17x32xf32>
    %c0_99 = arith.constant 0 : index
    %c0_100 = arith.constant 0 : index
    %311 = vector.load %arg17[%c0_99, %c0_100] : memref<32x64xf32, #tpu.memory_space<vmem>>, vector<32x64xf32>
    %312 = arith.truncf %311 : vector<32x64xf32> to vector<32x64xbf16>
    %c0_101 = arith.constant 0 : index
    %c0_102 = arith.constant 0 : index
    %313 = vector.load %arg18[%c0_101, %c0_102] : memref<1x64xf32, #tpu.memory_space<vmem>>, vector<1x64xf32>
    %c0_103 = arith.constant 0 : index
    %c0_104 = arith.constant 0 : index
    %314 = vector.load %arg19[%c0_103, %c0_104] : memref<64x32xf32, #tpu.memory_space<vmem>>, vector<64x32xf32>
    %315 = arith.truncf %314 : vector<64x32xf32> to vector<64x32xbf16>
    %c0_105 = arith.constant 0 : index
    %c0_106 = arith.constant 0 : index
    %316 = vector.load %arg20[%c0_105, %c0_106] : memref<1x32xf32, #tpu.memory_space<vmem>>, vector<1x32xf32>
    %317 = arith.truncf %310 : vector<17x32xf32> to vector<17x32xbf16>
    %cst_107 = arith.constant dense<0.000000e+00> : vector<17x64xf32>
    %318 = tpu.matmul %317, %312, %cst_107 {dimension_numbers = #tpu.dot_dimension_numbers<[1], [0], [0], [1], [0, 0, 1, 1], [], []>} : vector<17x32xbf16>, vector<32x64xbf16>, vector<17x64xf32> -> vector<17x64xf32>
    %319 = vector.broadcast %313 : vector<1x64xf32> to vector<17x64xf32>
    %320 = arith.addf %318, %319 : vector<17x64xf32>
    %321 = arith.mulf %320, %320 : vector<17x64xf32>
    %322 = arith.mulf %320, %321 : vector<17x64xf32>
    %cst_108 = arith.constant 4.471500e-02 : f32
    %323 = vector.broadcast %cst_108 : f32 to vector<17x64xf32>
    %324 = arith.mulf %323, %322 : vector<17x64xf32>
    %325 = arith.addf %320, %324 : vector<17x64xf32>
    %cst_109 = arith.constant 0.797884583 : f32
    %326 = vector.broadcast %cst_109 : f32 to vector<17x64xf32>
    %327 = arith.mulf %326, %325 : vector<17x64xf32>
    %328 = math.tanh %327 : vector<17x64xf32>
    %cst_110 = arith.constant 1.000000e+00 : f32
    %329 = vector.broadcast %cst_110 : f32 to vector<17x64xf32>
    %330 = arith.addf %329, %328 : vector<17x64xf32>
    %cst_111 = arith.constant 5.000000e-01 : f32
    %331 = vector.broadcast %cst_111 : f32 to vector<17x64xf32>
    %332 = arith.mulf %331, %330 : vector<17x64xf32>
    %333 = arith.mulf %320, %332 : vector<17x64xf32>
    %334 = arith.truncf %333 : vector<17x64xf32> to vector<17x64xbf16>
    %cst_112 = arith.constant dense<0.000000e+00> : vector<17x32xf32>
    %335 = tpu.matmul %334, %315, %cst_112 {dimension_numbers = #tpu.dot_dimension_numbers<[1], [0], [0], [1], [0, 0, 1, 1], [], []>} : vector<17x64xbf16>, vector<64x32xbf16>, vector<17x32xf32> -> vector<17x32xf32>
    %336 = vector.broadcast %316 : vector<1x32xf32> to vector<17x32xf32>
    %337 = arith.addf %335, %336 : vector<17x32xf32>
    %c0_113 = arith.constant 0 : index
    %c0_114 = arith.constant 0 : index
    %338 = vector.load %arg21[%c0_113, %c0_114] : memref<1x32xf32, #tpu.memory_space<vmem>>, vector<1x32xf32>
    %c0_115 = arith.constant 0 : index
    %c0_116 = arith.constant 0 : index
    %339 = vector.load %arg22[%c0_115, %c0_116] : memref<1x32xf32, #tpu.memory_space<vmem>>, vector<1x32xf32>
    %340 = arith.addf %310, %337 : vector<17x32xf32>
    %cst_117 = arith.constant dense<0.000000e+00> : vector<17xf32>
    %341 = vector.multi_reduction <add>, %340, %cst_117 [1] : vector<17x32xf32> to vector<17xf32>
    %342 = vector.shape_cast %341 : vector<17xf32> to vector<17x1xf32>
    %cst_118 = arith.constant 3.200000e+01 : f32
    %343 = vector.broadcast %cst_118 : f32 to vector<17x1xf32>
    %344 = arith.divf %342, %343 : vector<17x1xf32>
    %345 = vector.broadcast %344 : vector<17x1xf32> to vector<17x32xf32>
    %346 = arith.subf %340, %345 : vector<17x32xf32>
    %347 = arith.mulf %346, %346 : vector<17x32xf32>
    %cst_119 = arith.constant dense<0.000000e+00> : vector<17xf32>
    %348 = vector.multi_reduction <add>, %347, %cst_119 [1] : vector<17x32xf32> to vector<17xf32>
    %349 = vector.shape_cast %348 : vector<17xf32> to vector<17x1xf32>
    %cst_120 = arith.constant 3.200000e+01 : f32
    %350 = vector.broadcast %cst_120 : f32 to vector<17x1xf32>
    %351 = arith.divf %349, %350 : vector<17x1xf32>
    %352 = vector.broadcast %344 : vector<17x1xf32> to vector<17x32xf32>
    %353 = arith.subf %340, %352 : vector<17x32xf32>
    %cst_121 = arith.constant 9.99999996E-13 : f32
    %354 = vector.broadcast %cst_121 : f32 to vector<17x1xf32>
    %355 = arith.addf %351, %354 : vector<17x1xf32>
    %356 = math.rsqrt %355 : vector<17x1xf32>
    %357 = vector.broadcast %356 : vector<17x1xf32> to vector<17x32xf32>
    %358 = arith.mulf %353, %357 : vector<17x32xf32>
    %359 = vector.broadcast %338 : vector<1x32xf32> to vector<17x32xf32>
    %360 = arith.mulf %358, %359 : vector<17x32xf32>
    %361 = vector.broadcast %339 : vector<1x32xf32> to vector<17x32xf32>
    %362 = arith.addf %360, %361 : vector<17x32xf32>
    %363 = vector.shape_cast %362 : vector<17x32xf32> to vector<1x17x32xf32>
    %c0_122 = arith.constant 0 : index
    %c0_123 = arith.constant 0 : index
    %c0_124 = arith.constant 0 : index
    %364 = vector.load %arg23[%c0_122, %c0_123, %c0_124] : memref<1x17x32xf32, #tpu.memory_space<vmem>>, vector<1x17x32xf32>
    tpu.vector_store %arg23[%c0_122, %c0_123, %c0_124], %363 {strides = array<i32>} : memref<1x17x32xf32, #tpu.memory_space<vmem>>, vector<1x17x32xf32>,
    return
  }
  func.func @transform_0(%arg0: i32) -> (i32, i32, i32) {
    %c0_i32 = arith.constant 0 : i32
    %c0_i32_0 = arith.constant 0 : i32
    %c0_i32_1 = arith.constant 0 : i32
    return %arg0, %c0_i32, %c0_i32_0 : i32, i32, i32
  }
  func.func @transform_1(%arg0: i32) -> (i32, i32, i32) {
    %c0_i32 = arith.constant 0 : i32
    %c0_i32_0 = arith.constant 0 : i32
    %c0_i32_1 = arith.constant 0 : i32
    return %arg0, %c0_i32, %c0_i32_0 : i32, i32, i32
  }
  func.func @transform_2(%arg0: i32) -> (i32, i32) {
    %c0_i32 = arith.constant 0 : i32
    %c0_i32_0 = arith.constant 0 : i32
    %c0_i32_1 = arith.constant 0 : i32
    return %c0_i32, %c0_i32_0 : i32, i32
  }
  func.func @transform_3(%arg0: i32) -> (i32, i32) {
    %c0_i32 = arith.constant 0 : i32
    %c0_i32_0 = arith.constant 0 : i32
    %c0_i32_1 = arith.constant 0 : i32
    return %c0_i32, %c0_i32_0 : i32, i32
  }
  func.func @transform_4(%arg0: i32) -> (i32, i32) {
    %c0_i32 = arith.constant 0 : i32
    %c0_i32_0 = arith.constant 0 : i32
    %c0_i32_1 = arith.constant 0 : i32
    return %c0_i32, %c0_i32_0 : i32, i32
  }
  func.func @transform_5(%arg0: i32) -> (i32, i32) {
    %c0_i32 = arith.constant 0 : i32
    %c0_i32_0 = arith.constant 0 : i32
    %c0_i32_1 = arith.constant 0 : i32
    return %c0_i32, %c0_i32_0 : i32, i32
  }
  func.func @transform_6(%arg0: i32) -> (i32, i32) {
    %c0_i32 = arith.constant 0 : i32
    %c0_i32_0 = arith.constant 0 : i32
    %c0_i32_1 = arith.constant 0 : i32
    return %c0_i32, %c0_i32_0 : i32, i32
  }
  func.func @transform_7(%arg0: i32) -> (i32, i32) {
    %c0_i32 = arith.constant 0 : i32
    %c0_i32_0 = arith.constant 0 : i32
    %c0_i32_1 = arith.constant 0 : i32
    return %c0_i32, %c0_i32_0 : i32, i32
  }
  func.func @transform_8(%arg0: i32) -> (i32, i32) {
    %c0_i32 = arith.constant 0 : i32
    %c0_i32_0 = arith.constant 0 : i32
    %c0_i32_1 = arith.constant 0 : i32
    return %c0_i32, %c0_i32_0 : i32, i32
  }
  func.func @transform_9(%arg0: i32) -> (i32, i32) {
    %c0_i32 = arith.constant 0 : i32
    %c0_i32_0 = arith.constant 0 : i32
    %c0_i32_1 = arith.constant 0 : i32
    return %c0_i32, %c0_i32_0 : i32, i32
  }
  func.func @transform_10(%arg0: i32) -> (i32, i32) {
    %c0_i32 = arith.constant 0 : i32
    %c0_i32_0 = arith.constant 0 : i32
    %c0_i32_1 = arith.constant 0 : i32
    return %c0_i32, %c0_i32_0 : i32, i32
  }
  func.func @transform_11(%arg0: i32) -> (i32, i32) {
    %c0_i32 = arith.constant 0 : i32
    %c0_i32_0 = arith.constant 0 : i32
    %c0_i32_1 = arith.constant 0 : i32
    return %c0_i32, %c0_i32_0 : i32, i32
  }
  func.func @transform_12(%arg0: i32) -> (i32, i32) {
    %c0_i32 = arith.constant 0 : i32
    %c0_i32_0 = arith.constant 0 : i32
    %c0_i32_1 = arith.constant 0 : i32
    return %c0_i32, %c0_i32_0 : i32, i32
  }
  func.func @transform_13(%arg0: i32) -> (i32, i32) {
    %c0_i32 = arith.constant 0 : i32
    %c0_i32_0 = arith.constant 0 : i32
    %c0_i32_1 = arith.constant 0 : i32
    return %c0_i32, %c0_i32_0 : i32, i32
  }
  func.func @transform_14(%arg0: i32) -> (i32, i32) {
    %c0_i32 = arith.constant 0 : i32
    %c0_i32_0 = arith.constant 0 : i32
    %c0_i32_1 = arith.constant 0 : i32
    return %c0_i32, %c0_i32_0 : i32, i32
  }
  func.func @transform_15(%arg0: i32) -> (i32, i32) {
    %c0_i32 = arith.constant 0 : i32
    %c0_i32_0 = arith.constant 0 : i32
    %c0_i32_1 = arith.constant 0 : i32
    return %c0_i32, %c0_i32_0 : i32, i32
  }
  func.func @transform_16(%arg0: i32) -> (i32, i32) {
    %c0_i32 = arith.constant 0 : i32
    %c0_i32_0 = arith.constant 0 : i32
    %c0_i32_1 = arith.constant 0 : i32
    return %c0_i32, %c0_i32_0 : i32, i32
  }
  func.func @transform_17(%arg0: i32) -> (i32, i32) {
    %c0_i32 = arith.constant 0 : i32
    %c0_i32_0 = arith.constant 0 : i32
    %c0_i32_1 = arith.constant 0 : i32
    return %c0_i32, %c0_i32_0 : i32, i32
  }
  func.func @transform_18(%arg0: i32) -> (i32, i32) {
    %c0_i32 = arith.constant 0 : i32
    %c0_i32_0 = arith.constant 0 : i32
    %c0_i32_1 = arith.constant 0 : i32
    return %c0_i32, %c0_i32_0 : i32, i32
  }
  func.func @transform_19(%arg0: i32) -> (i32, i32) {
    %c0_i32 = arith.constant 0 : i32
    %c0_i32_0 = arith.constant 0 : i32
    %c0_i32_1 = arith.constant 0 : i32
    return %c0_i32, %c0_i32_0 : i32, i32
  }
  func.func @transform_20(%arg0: i32) -> (i32, i32) {
    %c0_i32 = arith.constant 0 : i32
    %c0_i32_0 = arith.constant 0 : i32
    %c0_i32_1 = arith.constant 0 : i32
    return %c0_i32, %c0_i32_0 : i32, i32
  }
  func.func @transform_21(%arg0: i32) -> (i32, i32) {
    %c0_i32 = arith.constant 0 : i32
    %c0_i32_0 = arith.constant 0 : i32
    %c0_i32_1 = arith.constant 0 : i32
    return %c0_i32, %c0_i32_0 : i32, i32
  }
  func.func @transform_22(%arg0: i32) -> (i32, i32, i32) {
    %c0_i32 = arith.constant 0 : i32
    %c0_i32_0 = arith.constant 0 : i32
    %c0_i32_1 = arith.constant 0 : i32
    return %arg0, %c0_i32, %c0_i32_0 : i32, i32, i32
  }
}

module attributes {stable_mosaic.version = 11 : i64} {
  func.func @head_kernel(%arg0: i32, %arg1: memref<2x32xf32, #tpu.memory_space<vmem>>, %arg2: memref<32x64xf32, #tpu.memory_space<vmem>>, %arg3: memref<64x1xf32, #tpu.memory_space<vmem>>, %arg4: memref<2x1xf32, #tpu.memory_space<vmem>>) attributes {dimension_semantics = [#tpu.dimension_semantics<arbitrary>], iteration_bounds = array<i64: 1>, scalar_prefetch = 0 : i64, scratch_operands = 0 : i64, tpu.core_type = #tpu.core_type<tc>, window_params = [{pipeline_mode = #tpu.pipeline_mode<synchronous>, transform_indices = @transform_0, window_bounds = array<i64: 2, 32>}, {pipeline_mode = #tpu.pipeline_mode<synchronous>, transform_indices = @transform_1, window_bounds = array<i64: 32, 64>}, {pipeline_mode = #tpu.pipeline_mode<synchronous>, transform_indices = @transform_2, window_bounds = array<i64: 64, 1>}, {pipeline_mode = #tpu.pipeline_mode<synchronous>, transform_indices = @transform_3, window_bounds = array<i64: 2, 1>}]} {
    %c0 = arith.constant 0 : index
    %c0_0 = arith.constant 0 : index
    %0 = vector.load %arg1[%c0, %c0_0] : memref<2x32xf32, #tpu.memory_space<vmem>>, vector<2x32xf32>
    %c0_1 = arith.constant 0 : index
    %c0_2 = arith.constant 0 : index
    %1 = vector.load %arg2[%c0_1, %c0_2] : memref<32x64xf32, #tpu.memory_space<vmem>>, vector<32x64xf32>
    %cst = arith.constant dense<0.000000e+00> : vector<2x64xf32>
    %2 = tpu.matmul %0, %1, %cst {dimension_numbers = #tpu.dot_dimension_numbers<[1], [0], [0], [1], [0, 0, 1, 1], [], []>} : vector<2x32xf32>, vector<32x64xf32>, vector<2x64xf32> -> vector<2x64xf32>
    %cst_3 = arith.constant 0.000000e+00 : f32
    %3 = vector.broadcast %cst_3 : f32 to vector<2x64xf32>
    %4 = arith.maximumf %2, %3 : vector<2x64xf32>
    %c0_4 = arith.constant 0 : index
    %c0_5 = arith.constant 0 : index
    %5 = vector.load %arg3[%c0_4, %c0_5] : memref<64x1xf32, #tpu.memory_space<vmem>>, vector<64x1xf32>
    %cst_6 = arith.constant dense<0.000000e+00> : vector<2x1xf32>
    %6 = tpu.matmul %4, %5, %cst_6 {dimension_numbers = #tpu.dot_dimension_numbers<[1], [0], [0], [1], [0, 0, 1, 1], [], []>} : vector<2x64xf32>, vector<64x1xf32>, vector<2x1xf32> -> vector<2x1xf32>
    %c0_7 = arith.constant 0 : index
    %c0_8 = arith.constant 0 : index
    %7 = vector.load %arg4[%c0_7, %c0_8] : memref<2x1xf32, #tpu.memory_space<vmem>>, vector<2x1xf32>
    tpu.vector_store %arg4[%c0_7, %c0_8], %6 {strides = array<i32>} : memref<2x1xf32, #tpu.memory_space<vmem>>, vector<2x1xf32>,
    return
  }
  func.func @transform_0(%arg0: i32) -> (i32, i32) {
    %c0_i32 = arith.constant 0 : i32
    %c0_i32_0 = arith.constant 0 : i32
    %c0_i32_1 = arith.constant 0 : i32
    return %c0_i32, %c0_i32_0 : i32, i32
  }
  func.func @transform_1(%arg0: i32) -> (i32, i32) {
    %c0_i32 = arith.constant 0 : i32
    %c0_i32_0 = arith.constant 0 : i32
    %c0_i32_1 = arith.constant 0 : i32
    return %c0_i32, %c0_i32_0 : i32, i32
  }
  func.func @transform_2(%arg0: i32) -> (i32, i32) {
    %c0_i32 = arith.constant 0 : i32
    %c0_i32_0 = arith.constant 0 : i32
    %c0_i32_1 = arith.constant 0 : i32
    return %c0_i32, %c0_i32_0 : i32, i32
  }
  func.func @transform_3(%arg0: i32) -> (i32, i32) {
    %c0_i32 = arith.constant 0 : i32
    %c0_i32_0 = arith.constant 0 : i32
    %c0_i32_1 = arith.constant 0 : i32
    return %c0_i32, %c0_i32_0 : i32, i32
  }
}

</mosaic_0001>

<llo_original>
// kernel: _lambda_.6
$region0: #{_lambda_.6}
  #allocation0 [shape = 'u32[]', space=smem, size = 0x4, offset = 0x4, fixed_abs, tag = 'smem constant byte address 0x4 - core index']
  #allocation1 [shape = 'u32[72,128]{1,0:T(1,128)}', space=vmem, size = 0x9000, scoped, tag = 'internal scratch']
  %s0 = inlined_call_operand.vmem [shape: f32[2,16,48], index: 0, kind: input, shape index: {}]
  %s1 = inlined_call_operand.vmem [shape: f32[2,16,48], index: 1, kind: input, shape index: {}]
  %s2 = inlined_call_operand.vmem [shape: f32[48,32], index: 2, kind: input, shape index: {}]
  %s3 = inlined_call_operand.vmem [shape: f32[1,32], index: 3, kind: input, shape index: {}]
  %s4 = inlined_call_operand.vmem [shape: f32[48,32], index: 4, kind: input, shape index: {}]
  %s5 = inlined_call_operand.vmem [shape: f32[1,32], index: 5, kind: input, shape index: {}]
  %s6 = inlined_call_operand.vmem [shape: f32[2,16,32], index: 6, kind: output, shape index: {0}]
  %s7 = inlined_call_operand.vmem [shape: f32[2,16,32], index: 7, kind: output, shape index: {1}]
  %8 = xla_tuple %s6, %s7
  %s9 = sld [smem:[#allocation0]]
  $region65: #{_lambda_.6} parent=0
    _
  %s11 = ssub.s32 1, %s9
  %s12 = scalar_select 0, %s11, %s9
  loop: start=0, step=1, limit=4
  $region2: #{_lambda_.6} parent=0 // loop_pre_header
    _
  $region3: #{_lambda_.6} parent=0 // loop_header
    %s14 = sphi 0, %s18
    %p15 = scmp.ge.s32.totalorder %s14, 4
    %s24 = sphi 0, %s26
    %s27 = sphi 0, %s24
    %s28 = sphi 0, %s27
    %s44 = sphi 0, %s28
    %s50 = sphi 0, %s52
    %s53 = sphi 0, %s50
    %s54 = sphi 0, %s53
    %s70 = sphi 0, %s54
    %s74 = sphi 0, %s74
    %s76 = sphi 0, %s74
    %s77 = sphi 0, %s76
    %s91 = sphi 0, %s77
    %s95 = sphi 0, %s95
    %s97 = sphi 0, %s95
    %s98 = sphi 0, %s97
    %s112 = sphi 0, %s98
    %s116 = sphi 0, %s116
    %s118 = sphi 0, %s116
    %s119 = sphi 0, %s118
    %s133 = sphi 0, %s119
    %s137 = sphi 0, %s137
    %s139 = sphi 0, %s137
    %s140 = sphi 0, %s139
    %s154 = sphi 0, %s140
    %s160 = sphi 0, %s162
    %s163 = sphi 0, %s160
    %s164 = sphi 0, %s163
    %s180 = sphi 0, %s164
    %s186 = sphi 0, %s188
    %s189 = sphi 0, %s186
    %s190 = sphi 0, %s189
    %s206 = sphi 0, %s190
  $region4: #{_lambda_.6} parent=0 // loop_header_branch
    %17 = sbr.rel (%p15) target = $region8
  $region5: #{_lambda_.6} parent=0 // loop_body
    %s19 = ssub.s32 %s14, 1
    %s20 = ssub.s32 %s14, 2
    %s21 = sadd.s32 %s14, 1
    %s22 = ssub.s32 %s14, %s21
    %p23 = scmp.eq.s32.totalorder %s22, 0
    %s25 = sadd.s32 %s24, 1
    %s26 = scalar_select %p23, %s24, %s25
    %p29 = pneg %p23
    %p30 = scmp.eq.s32.totalorder %s14, 1
    %p31 = por %p29, %p30
    %p32 = scmp.ne.s32.totalorder %s24, %s27
    %p33 = scmp.eq.s32.totalorder %s14, 0
    %p34 = por %p32, %p33
    %p35 = scmp.ne.s32.totalorder %s24, %s27
    %p36 = scmp.eq.s32.totalorder %s19, 1
    %p37 = por %p35, %p36
    %p38 = scmp.ne.s32.totalorder %s27, %s28
    %p39 = scmp.eq.s32.totalorder %s19, 0
    %p40 = por %p38, %p39
    %p41 = scmp.ne.s32.totalorder %s27, %s28
    %p42 = scmp.eq.s32.totalorder %s20, 1
    %p43 = por %p41, %p42
    %p45 = scmp.ne.s32.totalorder %s28, %s44
    %p46 = scmp.eq.s32.totalorder %s20, 0
    %p47 = por %p45, %p46
    %s48 = ssub.s32 %s14, %s21
    %p49 = scmp.eq.s32.totalorder %s48, 0
    %s51 = sadd.s32 %s50, 1
    %s52 = scalar_select %p49, %s50, %s51
    %p55 = pneg %p49
    %p56 = scmp.eq.s32.totalorder %s14, 1
    %p57 = por %p55, %p56
    %p58 = scmp.ne.s32.totalorder %s50, %s53
    %p59 = scmp.eq.s32.totalorder %s14, 0
    %p60 = por %p58, %p59
    %p61 = scmp.ne.s32.totalorder %s50, %s53
    %p62 = scmp.eq.s32.totalorder %s19, 1
    %p63 = por %p61, %p62
    %p64 = scmp.ne.s32.totalorder %s53, %s54
    %p65 = scmp.eq.s32.totalorder %s19, 0
    %p66 = por %p64, %p65
    %p67 = scmp.ne.s32.totalorder %s53, %s54
    %p68 = scmp.eq.s32.totalorder %s20, 1
    %p69 = por %p67, %p68
    %p71 = scmp.ne.s32.totalorder %s54, %s70
    %p72 = scmp.eq.s32.totalorder %s20, 0
    %p73 = por %p71, %p72
    %s75 = sadd.s32 %s74, 1
    %p78 = scmp.eq.s32.totalorder %s14, 1
    %p79 = scmp.ne.s32.totalorder %s74, %s76
    %p80 = scmp.eq.s32.totalorder %s14, 0
    %p81 = por %p79, %p80
    %p82 = scmp.ne.s32.totalorder %s74, %s76
    %p83 = scmp.eq.s32.totalorder %s19, 1
    %p84 = por %p82, %p83
    %p85 = scmp.ne.s32.totalorder %s76, %s77
    %p86 = scmp.eq.s32.totalorder %s19, 0
    %p87 = por %p85, %p86
    %p88 = scmp.ne.s32.totalorder %s76, %s77
    %p89 = scmp.eq.s32.totalorder %s20, 1
    %p90 = por %p88, %p89
    %p92 = scmp.ne.s32.totalorder %s77, %s91
    %p93 = scmp.eq.s32.totalorder %s20, 0
    %p94 = por %p92, %p93
    %s96 = sadd.s32 %s95, 1
    %p99 = scmp.eq.s32.totalorder %s14, 1
    %p100 = scmp.ne.s32.totalorder %s95, %s97
    %p101 = scmp.eq.s32.totalorder %s14, 0
    %p102 = por %p100, %p101
    %p103 = scmp.ne.s32.totalorder %s95, %s97
    %p104 = scmp.eq.s32.totalorder %s19, 1
    %p105 = por %p103, %p104
    %p106 = scmp.ne.s32.totalorder %s97, %s98
    %p107 = scmp.eq.s32.totalorder %s19, 0
    %p108 = por %p106, %p107
    %p109 = scmp.ne.s32.totalorder %s97, %s98
    %p110 = scmp.eq.s32.totalorder %s20, 1
    %p111 = por %p109, %p110
    %p113 = scmp.ne.s32.totalorder %s98, %s112
    %p114 = scmp.eq.s32.totalorder %s20, 0
    %p115 = por %p113, %p114
    %s117 = sadd.s32 %s116, 1
    %p120 = scmp.eq.s32.totalorder %s14, 1
    %p121 = scmp.ne.s32.totalorder %s116, %s118
    %p122 = scmp.eq.s32.totalorder %s14, 0
    %p123 = por %p121, %p122
    %p124 = scmp.ne.s32.totalorder %s116, %s118
    %p125 = scmp.eq.s32.totalorder %s19, 1
    %p126 = por %p124, %p125
    %p127 = scmp.ne.s32.totalorder %s118, %s119
    %p128 = scmp.eq.s32.totalorder %s19, 0
    %p129 = por %p127, %p128
    %p130 = scmp.ne.s32.totalorder %s118, %s119
    %p131 = scmp.eq.s32.totalorder %s20, 1
    %p132 = por %p130, %p131
    %p134 = scmp.ne.s32.totalorder %s119, %s133
    %p135 = scmp.eq.s32.totalorder %s20, 0
    %p136 = por %p134, %p135
    %s138 = sadd.s32 %s137, 1
    %p141 = scmp.eq.s32.totalorder %s14, 1
    %p142 = scmp.ne.s32.totalorder %s137, %s139
    %p143 = scmp.eq.s32.totalorder %s14, 0
    %p144 = por %p142, %p143
    %p145 = scmp.ne.s32.totalorder %s137, %s139
    %p146 = scmp.eq.s32.totalorder %s19, 1
    %p147 = por %p145, %p146
    %p148 = scmp.ne.s32.totalorder %s139, %s140
    %p149 = scmp.eq.s32.totalorder %s19, 0
    %p150 = por %p148, %p149
    %p151 = scmp.ne.s32.totalorder %s139, %s140
    %p152 = scmp.eq.s32.totalorder %s20, 1
    %p153 = por %p151, %p152
    %p155 = scmp.ne.s32.totalorder %s140, %s154
    %p156 = scmp.eq.s32.totalorder %s20, 0
    %p157 = por %p155, %p156
    %s158 = ssub.s32 %s14, %s21
    %p159 = scmp.eq.s32.totalorder %s158, 0
    %s161 = sadd.s32 %s160, 1
    %s162 = scalar_select %p159, %s160, %s161
    %p165 = pneg %p159
    %p166 = scmp.eq.s32.totalorder %s14, 1
    %p167 = por %p165, %p166
    %p168 = scmp.ne.s32.totalorder %s160, %s163
    %p169 = scmp.eq.s32.totalorder %s14, 0
    %p170 = por %p168, %p169
    %p171 = scmp.ne.s32.totalorder %s160, %s163
    %p172 = scmp.eq.s32.totalorder %s19, 1
    %p173 = por %p171, %p172
    %p174 = scmp.ne.s32.totalorder %s163, %s164
    %p175 = scmp.eq.s32.totalorder %s19, 0
    %p176 = por %p174, %p175
    %p177 = scmp.ne.s32.totalorder %s163, %s164
    %p178 = scmp.eq.s32.totalorder %s20, 1
    %p179 = por %p177, %p178
    %p181 = scmp.ne.s32.totalorder %s164, %s180
    %p182 = scmp.eq.s32.totalorder %s20, 0
    %p183 = por %p181, %p182
    %s184 = ssub.s32 %s14, %s21
    %p185 = scmp.eq.s32.totalorder %s184, 0
    %s187 = sadd.s32 %s186, 1
    %s188 = scalar_select %p185, %s186, %s187
    %p191 = pneg %p185
    %p192 = scmp.eq.s32.totalorder %s14, 1
    %p193 = por %p191, %p192
    %p194 = scmp.ne.s32.totalorder %s186, %s189
    %p195 = scmp.eq.s32.totalorder %s14, 0
    %p196 = por %p194, %p195
    %p197 = scmp.ne.s32.totalorder %s186, %s189
    %p198 = scmp.eq.s32.totalorder %s19, 1
    %p199 = por %p197, %p198
    %p200 = scmp.ne.s32.totalorder %s189, %s190
    %p201 = scmp.eq.s32.totalorder %s19, 0
    %p202 = por %p200, %p201
    %p203 = scmp.ne.s32.totalorder %s189, %s190
    %p204 = scmp.eq.s32.totalorder %s20, 1
    %p205 = por %p203, %p204
    %p207 = scmp.ne.s32.totalorder %s190, %s206
    %p208 = scmp.eq.s32.totalorder %s20, 0
    %p209 = por %p207, %p208
    %p210 = scmp.le.s32.totalorder 1, %s14
    %p211 = scmp.lt.s32.totalorder %s14, 3
    %p212 = pnand %p210, %p211
    %p213 = pneg %p212
    // Predicated region
    $region9: #{_lambda_.6} parent=5 // pred_check
      _
    $region10: #{_lambda_.6} parent=5 // pred_check_branch
      %215 = sbr.rel (%p212) target = $region12
    $region11: #{_lambda_.6} parent=5 // pred_region
      %s216 = ssub.s32 %s14, 1
      // Predicated region
      $region13: #{_lambda_.6} parent=11 // pred_check
        %p217 = pneg %p87
      $region14: #{_lambda_.6} parent=11 // pred_check_branch
        %219 = sbr.rel (%p217) target = $region16
      $region15: #{_lambda_.6} parent=11 // pred_region
        _
      $region16: #{_lambda_.6} parent=11 // pred_fallthru
        _
      // Predicated region
      $region17: #{_lambda_.6} parent=11 // pred_check
        %p220 = pneg %p108
      $region18: #{_lambda_.6} parent=11 // pred_check_branch
        %222 = sbr.rel (%p220) target = $region20
      $region19: #{_lambda_.6} parent=11 // pred_region
        _
      $region20: #{_lambda_.6} parent=11 // pred_fallthru
        _
      // Predicated region
      $region21: #{_lambda_.6} parent=11 // pred_check
        %p223 = pneg %p129
      $region22: #{_lambda_.6} parent=11 // pred_check_branch
        %225 = sbr.rel (%p223) target = $region24
      $region23: #{_lambda_.6} parent=11 // pred_region
        _
      $region24: #{_lambda_.6} parent=11 // pred_fallthru
        _
      // Predicated region
      $region25: #{_lambda_.6} parent=11 // pred_check
        %p226 = pneg %p150
      $region26: #{_lambda_.6} parent=11 // pred_check_branch
        %228 = sbr.rel (%p226) target = $region28
      $region27: #{_lambda_.6} parent=11 // pred_region
        _
      $region28: #{_lambda_.6} parent=11 // pred_fallthru
        _
    $region12: #{_lambda_.6} parent=5 // pred_fallthru
      _
    %p229 = scmp.lt.s32.totalorder %s14, 2
    // Predicated region
    $region29: #{_lambda_.6} parent=5 // pred_check
      %p230 = pneg %p229
    $region30: #{_lambda_.6} parent=5 // pred_check_branch
      %232 = sbr.rel (%p230) target = $region32
    $region31: #{_lambda_.6} parent=5 // pred_region
      // Predicated region
      $region33: #{_lambda_.6} parent=31 // pred_check
        %p233 = pneg %p34
      $region34: #{_lambda_.6} parent=31 // pred_check_branch
        %235 = sbr.rel (%p233) target = $region36
      $region35: #{_lambda_.6} parent=31 // pred_region
        %p236 = scmp.lt.s32.totalorder %s14, 1
        %s237 = scalar_select %p236, %s14, 1
        %s238 = smul.addr %s237, 2
        %s239 = smul.addr %s238, 8
        %s240 = scalar_lea.vmem %s0, %s239
      $region36: #{_lambda_.6} parent=31 // pred_fallthru
        _
      // Predicated region
      $region37: #{_lambda_.6} parent=31 // pred_check
        %p241 = pneg %p60
      $region38: #{_lambda_.6} parent=31 // pred_check_branch
        %243 = sbr.rel (%p241) target = $region40
      $region39: #{_lambda_.6} parent=31 // pred_region
        %p244 = scmp.lt.s32.totalorder %s14, 1
        %s245 = scalar_select %p244, %s14, 1
        %s246 = smul.addr %s245, 2
        %s247 = smul.addr %s246, 8
        %s248 = scalar_lea.vmem %s1, %s247
      $region40: #{_lambda_.6} parent=31 // pred_fallthru
        _
    $region32: #{_lambda_.6} parent=5 // pred_fallthru
      _
    %p249 = scmp.le.s32.totalorder 1, %s14
    %p250 = scmp.lt.s32.totalorder %s14, 3
    %p251 = pnand %p249, %p250
    %p252 = pneg %p251
    // Predicated region
    $region41: #{_lambda_.6} parent=5 // pred_check
      _
    $region42: #{_lambda_.6} parent=5 // pred_check_branch
      %254 = sbr.rel (%p251) target = $region44
    $region43: #{_lambda_.6} parent=5 // pred_region
      %s255 = ssub.s32 %s14, 1
      %p256 = scmp.lt.s32.totalorder %s19, 1
      %s257 = scalar_select %p256, %s19, 1
      %s258 = smul.addr %s257, 2
      %s259 = smul.addr %s258, 8
      %s260 = scalar_lea.vmem %s0, %s259
      %p261 = pneg %p40
      %p262 = pneg %p37
      %p263 = scmp.lt.s32.totalorder %s19, 1
      %s264 = scalar_select %p263, %s19, 1
      %s265 = smul.addr %s264, 2
      %s266 = smul.addr %s265, 8
      %s267 = scalar_lea.vmem %s1, %s266
      %p268 = pneg %p66
      %p269 = pneg %p63
      %p270 = pneg %p87
      %p271 = pneg %p84
      %p272 = pneg %p108
      %p273 = pneg %p105
      %p274 = pneg %p129
      %p275 = pneg %p126
      %p276 = pneg %p150
      %p277 = pneg %p147
      %p278 = pneg %p176
      %p279 = pneg %p173
      %p280 = scmp.lt.s32.totalorder %s19, 1
      %s281 = scalar_select %p280, %s19, 1
      %s282 = smul.addr %s281, 2
      %s283 = smul.addr %s282, 8
      %s284 = scalar_lea.vmem %s6, %s283
      %p285 = pneg %p202
      %p286 = pneg %p199
      %p287 = scmp.lt.s32.totalorder %s19, 1
      %s288 = scalar_select %p287, %s19, 1
      %s289 = smul.addr %s288, 2
      %s290 = smul.addr %s289, 8
      %s291 = scalar_lea.vmem %s7, %s290
      %p292 = scmp.lt.s32.totalorder %s19, 1
      %s293 = scalar_select %p292, %s19, 1
      %s294 = smul.addr %s293, 2
      %s295 = smul.addr %s294, 8
      %s296 = scalar_lea.vmem %s0, %s295
      %p297 = scmp.lt.s32.totalorder %s19, 1
      %s298 = scalar_select %p297, %s19, 1
      %s299 = smul.addr %s298, 2
      %s300 = smul.addr %s299, 8
      %s301 = scalar_lea.vmem %s1, %s300
      %p302 = scmp.lt.s32.totalorder %s19, 1
      %s303 = scalar_select %p302, %s19, 1
      %s304 = smul.addr %s303, 2
      %s305 = smul.addr %s304, 8
      %s306 = scalar_lea.vmem %s6, %s305
      %p307 = scmp.lt.s32.totalorder %s19, 1
      %s308 = scalar_select %p307, %s19, 1
      %s309 = smul.addr %s308, 2
      %s310 = smul.addr %s309, 8
      %s311 = scalar_lea.vmem %s7, %s310
      %v313 = vld [vmem:[%s296] sm:$0xff]
      %v314 = vld [vmem:[%s296 + $0x8] sm:$0xff]
      %v315 = vld [vmem:[%s301] sm:$0xff]
      %v316 = vld [vmem:[%s301 + $0x8] sm:$0xff]
      %v317 = vsub.f32 %v313, %v315
      %v318 = vsub.f32 %v314, %v316
      %v319 = vpack.c.bf16 %v318, %v317
      %v320 = vld [vmem:[%s2] sm:$0xff]
      %v321 = vld [vmem:[%s2 + $0x8] sm:$0xff]
      %v322 = vld [vmem:[%s2 + $0x10] sm:$0xff]
      %v323 = vld [vmem:[%s2 + $0x18] sm:$0xff]
      %v324 = vld [vmem:[%s2 + $0x20] sm:$0xff]
      %v325 = vld [vmem:[%s2 + $0x28] sm:$0xff]
      %v326 = vpack.c.bf16 %v321, %v320
      %v327 = vpack.c.bf16 %v323, %v322
      %v328 = vpack.c.bf16 %v325, %v324
      %v329 = vld [vmem:[%s3] sm:$0x1]
      %v331 = vperm.slane %v329, 0
      %vm333 = vcmask 392192
      %v335 = vsel %vm333, %v319, 0
      %337 = vmatpush.bf16.msra.mxu0 0
      %338 = vmatpush.bf16.msra.mxu0 0
      %339 = vmatpush.bf16.msra.mxu0 0
      %340 = vmatpush.bf16.msra.mxu0 0
      %341 = vmatpush.bf16.msra.mxu0 0
      %342 = vmatpush.bf16.msra.mxu0 %v328
      %343 = vmatpush.bf16.msra.mxu0 %v327
      %344 = vmatpush.bf16.msra.mxu0 %v326
      %345 = vmatmul.bf16.gmra.mxu0 %v335
      %v346 = vpop.f32.mrf.mxu0
      %v347 = vadd.f32 %v331, %v346
      %v348 = vpop.f32.mrf.mxu0
      %v349 = vadd.f32 %v331, %v348
      %350 = vdwg.mxu0
      %v351 = vpack.c.bf16 %v314, %v313
      %v352 = vld [vmem:[%s4] sm:$0xff]
      %v353 = vld [vmem:[%s4 + $0x8] sm:$0xff]
      %v354 = vld [vmem:[%s4 + $0x10] sm:$0xff]
      %v355 = vld [vmem:[%s4 + $0x18] sm:$0xff]
      %v356 = vld [vmem:[%s4 + $0x20] sm:$0xff]
      %v357 = vld [vmem:[%s4 + $0x28] sm:$0xff]
      %v358 = vpack.c.bf16 %v353, %v352
      %v359 = vpack.c.bf16 %v355, %v354
      %v360 = vpack.c.bf16 %v357, %v356
      %v361 = vld [vmem:[%s5] sm:$0x1]
      %v363 = vperm.slane %v361, 0
      %v366 = vsel %vm333, %v351, 0
      %368 = vmatpush.bf16.msra.mxu0 0
      %369 = vmatpush.bf16.msra.mxu0 0
      %370 = vmatpush.bf16.msra.mxu0 0
      %371 = vmatpush.bf16.msra.mxu0 0
      %372 = vmatpush.bf16.msra.mxu0 0
      %373 = vmatpush.bf16.msra.mxu0 %v360
      %374 = vmatpush.bf16.msra.mxu0 %v359
      %375 = vmatpush.bf16.msra.mxu0 %v358
      %376 = vmatmul.bf16.gmra.mxu0 %v366
      %v377 = vpop.f32.mrf.mxu0
      %v378 = vadd.f32 %v363, %v377
      %v379 = vpop.f32.mrf.mxu0
      %v380 = vadd.f32 %v363, %v379
      %381 = vdwg.mxu0
      %vm382 = vcmask 261120
      %383 = vst.msk [vmem:[%s306] sm:$0xff] %vm382, %v347
      %384 = vst.msk [vmem:[%s306 + $0x8] sm:$0xff] %vm382, %v349
      %385 = vst.msk [vmem:[%s311] sm:$0xff] %vm382, %v378
      %386 = vst.msk [vmem:[%s311 + $0x8] sm:$0xff] %vm382, %v380
      %p387 = scmp.lt.s32.totalorder %s19, 1
      %s388 = scalar_select %p387, %s19, 1
      %s389 = smul.addr %s388, 2
      %s390 = smul.addr %s389, 8
      %s391 = scalar_lea.vmem %s6, %s390
      %p392 = scmp.lt.s32.totalorder %s19, 1
      %s393 = scalar_select %p392, %s19, 1
      %s394 = smul.addr %s393, 2
      %s395 = smul.addr %s394, 8
      %s396 = scalar_lea.vmem %s7, %s395
      // Predicated region
      $region45: #{_lambda_.6} parent=43 // pred_check
        %p397 = pneg %p173
      $region46: #{_lambda_.6} parent=43 // pred_check_branch
        %399 = sbr.rel (%p397) target = $region48
      $region47: #{_lambda_.6} parent=43 // pred_region
        _
      $region48: #{_lambda_.6} parent=43 // pred_fallthru
        _
      // Predicated region
      $region49: #{_lambda_.6} parent=43 // pred_check
        %p400 = pneg %p199
      $region50: #{_lambda_.6} parent=43 // pred_check_branch
        %402 = sbr.rel (%p400) target = $region52
      $region51: #{_lambda_.6} parent=43 // pred_region
        _
      $region52: #{_lambda_.6} parent=43 // pred_fallthru
        _
    $region44: #{_lambda_.6} parent=5 // pred_fallthru
      _
    %p403 = scmp.le.s32.totalorder 2, %s14
    // Predicated region
    $region53: #{_lambda_.6} parent=5 // pred_check
      %p404 = pneg %p403
    $region54: #{_lambda_.6} parent=5 // pred_check_branch
      %406 = sbr.rel (%p404) target = $region56
    $region55: #{_lambda_.6} parent=5 // pred_region
      %s407 = ssub.s32 %s14, 2
      // Predicated region
      $region57: #{_lambda_.6} parent=55 // pred_check
        %p408 = pneg %p179
      $region58: #{_lambda_.6} parent=55 // pred_check_branch
        %410 = sbr.rel (%p408) target = $region60
      $region59: #{_lambda_.6} parent=55 // pred_region
        %p411 = scmp.lt.s32.totalorder %s20, 1
        %s412 = scalar_select %p411, %s20, 1
        %s413 = smul.addr %s412, 2
        %s414 = smul.addr %s413, 8
        %s415 = scalar_lea.vmem %s6, %s414
      $region60: #{_lambda_.6} parent=55 // pred_fallthru
        _
      // Predicated region
      $region61: #{_lambda_.6} parent=55 // pred_check
        %p416 = pneg %p205
      $region62: #{_lambda_.6} parent=55 // pred_check_branch
        %418 = sbr.rel (%p416) target = $region64
      $region63: #{_lambda_.6} parent=55 // pred_region
        %p419 = scmp.lt.s32.totalorder %s20, 1
        %s420 = scalar_select %p419, %s20, 1
        %s421 = smul.addr %s420, 2
        %s422 = smul.addr %s421, 8
        %s423 = scalar_lea.vmem %s7, %s422
      $region64: #{_lambda_.6} parent=55 // pred_fallthru
        _
    $region56: #{_lambda_.6} parent=5 // pred_fallthru
      _
  $region6: #{_lambda_.6} parent=0 // loop_footer
    %s18 = sadd.s32 1, %s14
  $region7: #{_lambda_.6} parent=0 // loop_footer_branch
    %13 = sbr.rel target = $region3
  $region8: #{_lambda_.6} parent=0 // loop_exit
    _

// kernel: _lambda_.11
$region0: #{_lambda_.11}
  #allocation0 [shape = 'u32[]', space=smem, size = 0x4, offset = 0x4, fixed_abs, tag = 'smem constant byte address 0x4 - core index']
  #allocation1 [shape = 'u32[72,128]{1,0:T(1,128)}', space=vmem, size = 0x9000, scoped, tag = 'internal scratch']
  %s0 = inlined_call_operand.vmem [shape: f32[2,32], index: 0, kind: input, shape index: {}]
  %s1 = inlined_call_operand.vmem [shape: f32[32,64], index: 1, kind: input, shape index: {}]
  %s2 = inlined_call_operand.vmem [shape: f32[64,1], index: 2, kind: input, shape index: {}]
  %s3 = inlined_call_operand.vmem [shape: f32[2,1], index: 3, kind: output, shape index: {}]
  %s4 = sld [smem:[#allocation0]]
  $region22: #{_lambda_.11} parent=0
    _
  %s6 = ssub.s32 1, %s4
  %s7 = scalar_select 0, %s6, %s4
  // Predicated region
  $region2: #{_lambda_.11} parent=0 // pred_check
    _
  $region3: #{_lambda_.11} parent=0 // pred_check_branch
    %9 = sbr.rel (0) target = $region5
  $region4: #{_lambda_.11} parent=0 // pred_region
    _
  $region5: #{_lambda_.11} parent=0 // pred_fallthru
    _
  // Predicated region
  $region6: #{_lambda_.11} parent=0 // pred_check
    _
  $region7: #{_lambda_.11} parent=0 // pred_check_branch
    %11 = sbr.rel (0) target = $region9
  $region8: #{_lambda_.11} parent=0 // pred_region
    _
  $region9: #{_lambda_.11} parent=0 // pred_fallthru
    _
  // Predicated region
  $region10: #{_lambda_.11} parent=0 // pred_check
    _
  $region11: #{_lambda_.11} parent=0 // pred_check_branch
    %13 = sbr.rel (0) target = $region13
  $region12: #{_lambda_.11} parent=0 // pred_region
    _
  $region13: #{_lambda_.11} parent=0 // pred_fallthru
    _
  %v14 = vld [vmem:[%s0] sm:$0x3]
  %v15 = vld [vmem:[%s1] sm:$0xff]
  %v16 = vld [vmem:[%s1 + $0x8] sm:$0xff]
  %v17 = vld [vmem:[%s1 + $0x10] sm:$0xff]
  %v18 = vld [vmem:[%s1 + $0x18] sm:$0xff]
  %vm19 = vcmask 261120
  %v21 = vsel %vm19, %v14, 0
  %23 = vmatpush.msra.mxu0 0.0
  %24 = vmatpush.msra.mxu0 0.0
  %25 = vmatpush.msra.mxu0 0.0
  %26 = vmatpush.msra.mxu0 0.0
  %27 = vmatpush.msra.mxu0 0.0
  %28 = vmatpush.msra.mxu0 0.0
  %29 = vmatpush.msra.mxu0 0.0
  %30 = vmatpush.msra.mxu0 0.0
  %31 = vmatpush.msra.mxu0 0.0
  %32 = vmatpush.msra.mxu0 0.0
  %33 = vmatpush.msra.mxu0 0.0
  %34 = vmatpush.msra.mxu0 0.0
  %35 = vmatpush.msra.mxu0 %v18
  %36 = vmatpush.msra.mxu0 %v17
  %37 = vmatpush.msra.mxu0 %v16
  %38 = vmatpush.msra.mxu0 %v15
  %39 = vmatmul.f32.gmra.mxu0 %v21
  %v40 = vpop.f32.mrf.mxu0
  %v41 = vadd.f32 0.0, %v40
  %42 = vdwg.mxu0
  %v43 = vmax.f32 %v41, 0.0
  %v44 = vld [vmem:[%s2] sm:$0xff]
  %v45 = vld [vmem:[%s2 + $0x8] sm:$0xff]
  %v46 = vld [vmem:[%s2 + $0x10] sm:$0xff]
  %v47 = vld [vmem:[%s2 + $0x18] sm:$0xff]
  %v48 = vld [vmem:[%s2 + $0x20] sm:$0xff]
  %v49 = vld [vmem:[%s2 + $0x28] sm:$0xff]
  %v50 = vld [vmem:[%s2 + $0x30] sm:$0xff]
  %v51 = vld [vmem:[%s2 + $0x38] sm:$0xff]
  %vm52 = vcmask 523264
  %v54 = vsel %vm52, %v43, 0
  %56 = vmatpush.msra.mxu0 0.0
  %57 = vmatpush.msra.mxu0 0.0
  %58 = vmatpush.msra.mxu0 0.0
  %59 = vmatpush.msra.mxu0 0.0
  %60 = vmatpush.msra.mxu0 0.0
  %61 = vmatpush.msra.mxu0 0.0
  %62 = vmatpush.msra.mxu0 0.0
  %63 = vmatpush.msra.mxu0 0.0
  %64 = vmatpush.msra.mxu0 %v51
  %65 = vmatpush.msra.mxu0 %v50
  %66 = vmatpush.msra.mxu0 %v49
  %67 = vmatpush.msra.mxu0 %v48
  %68 = vmatpush.msra.mxu0 %v47
  %69 = vmatpush.msra.mxu0 %v46
  %70 = vmatpush.msra.mxu0 %v45
  %71 = vmatpush.msra.mxu0 %v44
  %72 = vmatmul.f32.gmra.mxu0 %v54
  %v73 = vpop.f32.mrf.mxu0
  %v74 = vadd.f32 0.0, %v73
  %75 = vdwg.mxu0
  %vm76 = vcmask 1024
  %77 = vst.msk [vmem:[%s3] sm:$0x3] %vm76, %v74
  // Predicated region
  $region14: #{_lambda_.11} parent=0 // pred_check
    _
  $region15: #{_lambda_.11} parent=0 // pred_check_branch
    %79 = sbr.rel (0) target = $region17
  $region16: #{_lambda_.11} parent=0 // pred_region
    _
  $region17: #{_lambda_.11} parent=0 // pred_fallthru
    _
  // Predicated region
  $region18: #{_lambda_.11} parent=0 // pred_check
    _
  $region19: #{_lambda_.11} parent=0 // pred_check_branch
    %81 = sbr.rel (0) target = $region21
  $region20: #{_lambda_.11} parent=0 // pred_region
    _
  $region21: #{_lambda_.11} parent=0 // pred_fallthru
    _

// kernel: _lambda_.7
$region0: #{_lambda_.7}
  #allocation0 [shape = 'u32[]', space=smem, size = 0x4, offset = 0x4, fixed_abs, tag = 'smem constant byte address 0x4 - core index']
  #allocation1 [shape = 'u32[72,128]{1,0:T(1,128)}', space=vmem, size = 0x9000, scoped, tag = 'internal scratch']
  %s0 = inlined_call_operand.vmem [shape: f32[2,17,32], index: 0, kind: input, shape index: {}]
  %s1 = inlined_call_operand.vmem [shape: f32[32,192], index: 1, kind: input, shape index: {}]
  %s2 = inlined_call_operand.vmem [shape: f32[1,192], index: 2, kind: input, shape index: {}]
  %s3 = inlined_call_operand.vmem [shape: f32[64,32], index: 3, kind: input, shape index: {}]
  %s4 = inlined_call_operand.vmem [shape: f32[1,32], index: 4, kind: input, shape index: {}]
  %s5 = inlined_call_operand.vmem [shape: f32[1,32], index: 5, kind: input, shape index: {}]
  %s6 = inlined_call_operand.vmem [shape: f32[1,32], index: 6, kind: input, shape index: {}]
  %s7 = inlined_call_operand.vmem [shape: f32[32,64], index: 7, kind: input, shape index: {}]
  %s8 = inlined_call_operand.vmem [shape: f32[1,64], index: 8, kind: input, shape index: {}]
  %s9 = inlined_call_operand.vmem [shape: f32[64,32], index: 9, kind: input, shape index: {}]
  %s10 = inlined_call_operand.vmem [shape: f32[1,32], index: 10, kind: input, shape index: {}]
  %s11 = inlined_call_operand.vmem [shape: f32[1,32], index: 11, kind: input, shape index: {}]
  %s12 = inlined_call_operand.vmem [shape: f32[1,32], index: 12, kind: input, shape index: {}]
  %s13 = inlined_call_operand.vmem [shape: f32[2,17,32], index: 13, kind: output, shape index: {}]
  %s14 = sld [smem:[#allocation0]]
  $region85: #{_lambda_.7} parent=0
    _
  %s16 = ssub.s32 1, %s14
  %s17 = scalar_select 0, %s16, %s14
  loop: start=0, step=1, limit=4
  $region2: #{_lambda_.7} parent=0 // loop_pre_header
    _
  $region3: #{_lambda_.7} parent=0 // loop_header
    %s19 = sphi 0, %s23
    %p20 = scmp.ge.s32.totalorder %s19, 4
    %s29 = sphi 0, %s31
    %s32 = sphi 0, %s29
    %s33 = sphi 0, %s32
    %s49 = sphi 0, %s33
    %s53 = sphi 0, %s53
    %s55 = sphi 0, %s53
    %s56 = sphi 0, %s55
    %s70 = sphi 0, %s56
    %s74 = sphi 0, %s74
    %s76 = sphi 0, %s74
    %s77 = sphi 0, %s76
    %s91 = sphi 0, %s77
    %s95 = sphi 0, %s95
    %s97 = sphi 0, %s95
    %s98 = sphi 0, %s97
    %s112 = sphi 0, %s98
    %s116 = sphi 0, %s116
    %s118 = sphi 0, %s116
    %s119 = sphi 0, %s118
    %s133 = sphi 0, %s119
    %s137 = sphi 0, %s137
    %s139 = sphi 0, %s137
    %s140 = sphi 0, %s139
    %s154 = sphi 0, %s140
    %s158 = sphi 0, %s158
    %s160 = sphi 0, %s158
    %s161 = sphi 0, %s160
    %s175 = sphi 0, %s161
    %s179 = sphi 0, %s179
    %s181 = sphi 0, %s179
    %s182 = sphi 0, %s181
    %s196 = sphi 0, %s182
    %s200 = sphi 0, %s200
    %s202 = sphi 0, %s200
    %s203 = sphi 0, %s202
    %s217 = sphi 0, %s203
    %s221 = sphi 0, %s221
    %s223 = sphi 0, %s221
    %s224 = sphi 0, %s223
    %s238 = sphi 0, %s224
    %s242 = sphi 0, %s242
    %s244 = sphi 0, %s242
    %s245 = sphi 0, %s244
    %s259 = sphi 0, %s245
    %s263 = sphi 0, %s263
    %s265 = sphi 0, %s263
    %s266 = sphi 0, %s265
    %s280 = sphi 0, %s266
    %s284 = sphi 0, %s284
    %s286 = sphi 0, %s284
    %s287 = sphi 0, %s286
    %s301 = sphi 0, %s287
    %s307 = sphi 0, %s309
    %s310 = sphi 0, %s307
    %s311 = sphi 0, %s310
    %s327 = sphi 0, %s311
  $region4: #{_lambda_.7} parent=0 // loop_header_branch
    %22 = sbr.rel (%p20) target = $region8
  $region5: #{_lambda_.7} parent=0 // loop_body
    %s24 = ssub.s32 %s19, 1
    %s25 = ssub.s32 %s19, 2
    %s26 = sadd.s32 %s19, 1
    %s27 = ssub.s32 %s19, %s26
    %p28 = scmp.eq.s32.totalorder %s27, 0
    %s30 = sadd.s32 %s29, 1
    %s31 = scalar_select %p28, %s29, %s30
    %p34 = pneg %p28
    %p35 = scmp.eq.s32.totalorder %s19, 1
    %p36 = por %p34, %p35
    %p37 = scmp.ne.s32.totalorder %s29, %s32
    %p38 = scmp.eq.s32.totalorder %s19, 0
    %p39 = por %p37, %p38
    %p40 = scmp.ne.s32.totalorder %s29, %s32
    %p41 = scmp.eq.s32.totalorder %s24, 1
    %p42 = por %p40, %p41
    %p43 = scmp.ne.s32.totalorder %s32, %s33
    %p44 = scmp.eq.s32.totalorder %s24, 0
    %p45 = por %p43, %p44
    %p46 = scmp.ne.s32.totalorder %s32, %s33
    %p47 = scmp.eq.s32.totalorder %s25, 1
    %p48 = por %p46, %p47
    %p50 = scmp.ne.s32.totalorder %s33, %s49
    %p51 = scmp.eq.s32.totalorder %s25, 0
    %p52 = por %p50, %p51
    %s54 = sadd.s32 %s53, 1
    %p57 = scmp.eq.s32.totalorder %s19, 1
    %p58 = scmp.ne.s32.totalorder %s53, %s55
    %p59 = scmp.eq.s32.totalorder %s19, 0
    %p60 = por %p58, %p59
    %p61 = scmp.ne.s32.totalorder %s53, %s55
    %p62 = scmp.eq.s32.totalorder %s24, 1
    %p63 = por %p61, %p62
    %p64 = scmp.ne.s32.totalorder %s55, %s56
    %p65 = scmp.eq.s32.totalorder %s24, 0
    %p66 = por %p64, %p65
    %p67 = scmp.ne.s32.totalorder %s55, %s56
    %p68 = scmp.eq.s32.totalorder %s25, 1
    %p69 = por %p67, %p68
    %p71 = scmp.ne.s32.totalorder %s56, %s70
    %p72 = scmp.eq.s32.totalorder %s25, 0
    %p73 = por %p71, %p72
    %s75 = sadd.s32 %s74, 1
    %p78 = scmp.eq.s32.totalorder %s19, 1
    %p79 = scmp.ne.s32.totalorder %s74, %s76
    %p80 = scmp.eq.s32.totalorder %s19, 0
    %p81 = por %p79, %p80
    %p82 = scmp.ne.s32.totalorder %s74, %s76
    %p83 = scmp.eq.s32.totalorder %s24, 1
    %p84 = por %p82, %p83
    %p85 = scmp.ne.s32.totalorder %s76, %s77
    %p86 = scmp.eq.s32.totalorder %s24, 0
    %p87 = por %p85, %p86
    %p88 = scmp.ne.s32.totalorder %s76, %s77
    %p89 = scmp.eq.s32.totalorder %s25, 1
    %p90 = por %p88, %p89
    %p92 = scmp.ne.s32.totalorder %s77, %s91
    %p93 = scmp.eq.s32.totalorder %s25, 0
    %p94 = por %p92, %p93
    %s96 = sadd.s32 %s95, 1
    %p99 = scmp.eq.s32.totalorder %s19, 1
    %p100 = scmp.ne.s32.totalorder %s95, %s97
    %p101 = scmp.eq.s32.totalorder %s19, 0
    %p102 = por %p100, %p101
    %p103 = scmp.ne.s32.totalorder %s95, %s97
    %p104 = scmp.eq.s32.totalorder %s24, 1
    %p105 = por %p103, %p104
    %p106 = scmp.ne.s32.totalorder %s97, %s98
    %p107 = scmp.eq.s32.totalorder %s24, 0
    %p108 = por %p106, %p107
    %p109 = scmp.ne.s32.totalorder %s97, %s98
    %p110 = scmp.eq.s32.totalorder %s25, 1
    %p111 = por %p109, %p110
    %p113 = scmp.ne.s32.totalorder %s98, %s112
    %p114 = scmp.eq.s32.totalorder %s25, 0
    %p115 = por %p113, %p114
    %s117 = sadd.s32 %s116, 1
    %p120 = scmp.eq.s32.totalorder %s19, 1
    %p121 = scmp.ne.s32.totalorder %s116, %s118
    %p122 = scmp.eq.s32.totalorder %s19, 0
    %p123 = por %p121, %p122
    %p124 = scmp.ne.s32.totalorder %s116, %s118
    %p125 = scmp.eq.s32.totalorder %s24, 1
    %p126 = por %p124, %p125
    %p127 = scmp.ne.s32.totalorder %s118, %s119
    %p128 = scmp.eq.s32.totalorder %s24, 0
    %p129 = por %p127, %p128
    %p130 = scmp.ne.s32.totalorder %s118, %s119
    %p131 = scmp.eq.s32.totalorder %s25, 1
    %p132 = por %p130, %p131
    %p134 = scmp.ne.s32.totalorder %s119, %s133
    %p135 = scmp.eq.s32.totalorder %s25, 0
    %p136 = por %p134, %p135
    %s138 = sadd.s32 %s137, 1
    %p141 = scmp.eq.s32.totalorder %s19, 1
    %p142 = scmp.ne.s32.totalorder %s137, %s139
    %p143 = scmp.eq.s32.totalorder %s19, 0
    %p144 = por %p142, %p143
    %p145 = scmp.ne.s32.totalorder %s137, %s139
    %p146 = scmp.eq.s32.totalorder %s24, 1
    %p147 = por %p145, %p146
    %p148 = scmp.ne.s32.totalorder %s139, %s140
    %p149 = scmp.eq.s32.totalorder %s24, 0
    %p150 = por %p148, %p149
    %p151 = scmp.ne.s32.totalorder %s139, %s140
    %p152 = scmp.eq.s32.totalorder %s25, 1
    %p153 = por %p151, %p152
    %p155 = scmp.ne.s32.totalorder %s140, %s154
    %p156 = scmp.eq.s32.totalorder %s25, 0
    %p157 = por %p155, %p156
    %s159 = sadd.s32 %s158, 1
    %p162 = scmp.eq.s32.totalorder %s19, 1
    %p163 = scmp.ne.s32.totalorder %s158, %s160
    %p164 = scmp.eq.s32.totalorder %s19, 0
    %p165 = por %p163, %p164
    %p166 = scmp.ne.s32.totalorder %s158, %s160
    %p167 = scmp.eq.s32.totalorder %s24, 1
    %p168 = por %p166, %p167
    %p169 = scmp.ne.s32.totalorder %s160, %s161
    %p170 = scmp.eq.s32.totalorder %s24, 0
    %p171 = por %p169, %p170
    %p172 = scmp.ne.s32.totalorder %s160, %s161
    %p173 = scmp.eq.s32.totalorder %s25, 1
    %p174 = por %p172, %p173
    %p176 = scmp.ne.s32.totalorder %s161, %s175
    %p177 = scmp.eq.s32.totalorder %s25, 0
    %p178 = por %p176, %p177
    %s180 = sadd.s32 %s179, 1
    %p183 = scmp.eq.s32.totalorder %s19, 1
    %p184 = scmp.ne.s32.totalorder %s179, %s181
    %p185 = scmp.eq.s32.totalorder %s19, 0
    %p186 = por %p184, %p185
    %p187 = scmp.ne.s32.totalorder %s179, %s181
    %p188 = scmp.eq.s32.totalorder %s24, 1
    %p189 = por %p187, %p188
    %p190 = scmp.ne.s32.totalorder %s181, %s182
    %p191 = scmp.eq.s32.totalorder %s24, 0
    %p192 = por %p190, %p191
    %p193 = scmp.ne.s32.totalorder %s181, %s182
    %p194 = scmp.eq.s32.totalorder %s25, 1
    %p195 = por %p193, %p194
    %p197 = scmp.ne.s32.totalorder %s182, %s196
    %p198 = scmp.eq.s32.totalorder %s25, 0
    %p199 = por %p197, %p198
    %s201 = sadd.s32 %s200, 1
    %p204 = scmp.eq.s32.totalorder %s19, 1
    %p205 = scmp.ne.s32.totalorder %s200, %s202
    %p206 = scmp.eq.s32.totalorder %s19, 0
    %p207 = por %p205, %p206
    %p208 = scmp.ne.s32.totalorder %s200, %s202
    %p209 = scmp.eq.s32.totalorder %s24, 1
    %p210 = por %p208, %p209
    %p211 = scmp.ne.s32.totalorder %s202, %s203
    %p212 = scmp.eq.s32.totalorder %s24, 0
    %p213 = por %p211, %p212
    %p214 = scmp.ne.s32.totalorder %s202, %s203
    %p215 = scmp.eq.s32.totalorder %s25, 1
    %p216 = por %p214, %p215
    %p218 = scmp.ne.s32.totalorder %s203, %s217
    %p219 = scmp.eq.s32.totalorder %s25, 0
    %p220 = por %p218, %p219
    %s222 = sadd.s32 %s221, 1
    %p225 = scmp.eq.s32.totalorder %s19, 1
    %p226 = scmp.ne.s32.totalorder %s221, %s223
    %p227 = scmp.eq.s32.totalorder %s19, 0
    %p228 = por %p226, %p227
    %p229 = scmp.ne.s32.totalorder %s221, %s223
    %p230 = scmp.eq.s32.totalorder %s24, 1
    %p231 = por %p229, %p230
    %p232 = scmp.ne.s32.totalorder %s223, %s224
    %p233 = scmp.eq.s32.totalorder %s24, 0
    %p234 = por %p232, %p233
    %p235 = scmp.ne.s32.totalorder %s223, %s224
    %p236 = scmp.eq.s32.totalorder %s25, 1
    %p237 = por %p235, %p236
    %p239 = scmp.ne.s32.totalorder %s224, %s238
    %p240 = scmp.eq.s32.totalorder %s25, 0
    %p241 = por %p239, %p240
    %s243 = sadd.s32 %s242, 1
    %p246 = scmp.eq.s32.totalorder %s19, 1
    %p247 = scmp.ne.s32.totalorder %s242, %s244
    %p248 = scmp.eq.s32.totalorder %s19, 0
    %p249 = por %p247, %p248
    %p250 = scmp.ne.s32.totalorder %s242, %s244
    %p251 = scmp.eq.s32.totalorder %s24, 1
    %p252 = por %p250, %p251
    %p253 = scmp.ne.s32.totalorder %s244, %s245
    %p254 = scmp.eq.s32.totalorder %s24, 0
    %p255 = por %p253, %p254
    %p256 = scmp.ne.s32.totalorder %s244, %s245
    %p257 = scmp.eq.s32.totalorder %s25, 1
    %p258 = por %p256, %p257
    %p260 = scmp.ne.s32.totalorder %s245, %s259
    %p261 = scmp.eq.s32.totalorder %s25, 0
    %p262 = por %p260, %p261
    %s264 = sadd.s32 %s263, 1
    %p267 = scmp.eq.s32.totalorder %s19, 1
    %p268 = scmp.ne.s32.totalorder %s263, %s265
    %p269 = scmp.eq.s32.totalorder %s19, 0
    %p270 = por %p268, %p269
    %p271 = scmp.ne.s32.totalorder %s263, %s265
    %p272 = scmp.eq.s32.totalorder %s24, 1
    %p273 = por %p271, %p272
    %p274 = scmp.ne.s32.totalorder %s265, %s266
    %p275 = scmp.eq.s32.totalorder %s24, 0
    %p276 = por %p274, %p275
    %p277 = scmp.ne.s32.totalorder %s265, %s266
    %p278 = scmp.eq.s32.totalorder %s25, 1
    %p279 = por %p277, %p278
    %p281 = scmp.ne.s32.totalorder %s266, %s280
    %p282 = scmp.eq.s32.totalorder %s25, 0
    %p283 = por %p281, %p282
    %s285 = sadd.s32 %s284, 1
    %p288 = scmp.eq.s32.totalorder %s19, 1
    %p289 = scmp.ne.s32.totalorder %s284, %s286
    %p290 = scmp.eq.s32.totalorder %s19, 0
    %p291 = por %p289, %p290
    %p292 = scmp.ne.s32.totalorder %s284, %s286
    %p293 = scmp.eq.s32.totalorder %s24, 1
    %p294 = por %p292, %p293
    %p295 = scmp.ne.s32.totalorder %s286, %s287
    %p296 = scmp.eq.s32.totalorder %s24, 0
    %p297 = por %p295, %p296
    %p298 = scmp.ne.s32.totalorder %s286, %s287
    %p299 = scmp.eq.s32.totalorder %s25, 1
    %p300 = por %p298, %p299
    %p302 = scmp.ne.s32.totalorder %s287, %s301
    %p303 = scmp.eq.s32.totalorder %s25, 0
    %p304 = por %p302, %p303
    %s305 = ssub.s32 %s19, %s26
    %p306 = scmp.eq.s32.totalorder %s305, 0
    %s308 = sadd.s32 %s307, 1
    %s309 = scalar_select %p306, %s307, %s308
    %p312 = pneg %p306
    %p313 = scmp.eq.s32.totalorder %s19, 1
    %p314 = por %p312, %p313
    %p315 = scmp.ne.s32.totalorder %s307, %s310
    %p316 = scmp.eq.s32.totalorder %s19, 0
    %p317 = por %p315, %p316
    %p318 = scmp.ne.s32.totalorder %s307, %s310
    %p319 = scmp.eq.s32.totalorder %s24, 1
    %p320 = por %p318, %p319
    %p321 = scmp.ne.s32.totalorder %s310, %s311
    %p322 = scmp.eq.s32.totalorder %s24, 0
    %p323 = por %p321, %p322
    %p324 = scmp.ne.s32.totalorder %s310, %s311
    %p325 = scmp.eq.s32.totalorder %s25, 1
    %p326 = por %p324, %p325
    %p328 = scmp.ne.s32.totalorder %s311, %s327
    %p329 = scmp.eq.s32.totalorder %s25, 0
    %p330 = por %p328, %p329
    %p331 = scmp.le.s32.totalorder 1, %s19
    %p332 = scmp.lt.s32.totalorder %s19, 3
    %p333 = pnand %p331, %p332
    %p334 = pneg %p333
    // Predicated region
    $region9: #{_lambda_.7} parent=5 // pred_check
      _
    $region10: #{_lambda_.7} parent=5 // pred_check_branch
      %336 = sbr.rel (%p333) target = $region12
    $region11: #{_lambda_.7} parent=5 // pred_region
      %s337 = ssub.s32 %s19, 1
      // Predicated region
      $region13: #{_lambda_.7} parent=11 // pred_check
        %p338 = pneg %p66
      $region14: #{_lambda_.7} parent=11 // pred_check_branch
        %340 = sbr.rel (%p338) target = $region16
      $region15: #{_lambda_.7} parent=11 // pred_region
        _
      $region16: #{_lambda_.7} parent=11 // pred_fallthru
        _
      // Predicated region
      $region17: #{_lambda_.7} parent=11 // pred_check
        %p341 = pneg %p87
      $region18: #{_lambda_.7} parent=11 // pred_check_branch
        %343 = sbr.rel (%p341) target = $region20
      $region19: #{_lambda_.7} parent=11 // pred_region
        _
      $region20: #{_lambda_.7} parent=11 // pred_fallthru
        _
      // Predicated region
      $region21: #{_lambda_.7} parent=11 // pred_check
        %p344 = pneg %p108
      $region22: #{_lambda_.7} parent=11 // pred_check_branch
        %346 = sbr.rel (%p344) target = $region24
      $region23: #{_lambda_.7} parent=11 // pred_region
        _
      $region24: #{_lambda_.7} parent=11 // pred_fallthru
        _
      // Predicated region
      $region25: #{_lambda_.7} parent=11 // pred_check
        %p347 = pneg %p129
      $region26: #{_lambda_.7} parent=11 // pred_check_branch
        %349 = sbr.rel (%p347) target = $region28
      $region27: #{_lambda_.7} parent=11 // pred_region
        _
      $region28: #{_lambda_.7} parent=11 // pred_fallthru
        _
      // Predicated region
      $region29: #{_lambda_.7} parent=11 // pred_check
        %p350 = pneg %p150
      $region30: #{_lambda_.7} parent=11 // pred_check_branch
        %352 = sbr.rel (%p350) target = $region32
      $region31: #{_lambda_.7} parent=11 // pred_region
        _
      $region32: #{_lambda_.7} parent=11 // pred_fallthru
        _
      // Predicated region
      $region33: #{_lambda_.7} parent=11 // pred_check
        %p353 = pneg %p171
      $region34: #{_lambda_.7} parent=11 // pred_check_branch
        %355 = sbr.rel (%p353) target = $region36
      $region35: #{_lambda_.7} parent=11 // pred_region
        _
      $region36: #{_lambda_.7} parent=11 // pred_fallthru
        _
      // Predicated region
      $region37: #{_lambda_.7} parent=11 // pred_check
        %p356 = pneg %p192
      $region38: #{_lambda_.7} parent=11 // pred_check_branch
        %358 = sbr.rel (%p356) target = $region40
      $region39: #{_lambda_.7} parent=11 // pred_region
        _
      $region40: #{_lambda_.7} parent=11 // pred_fallthru
        _
      // Predicated region
      $region41: #{_lambda_.7} parent=11 // pred_check
        %p359 = pneg %p213
      $region42: #{_lambda_.7} parent=11 // pred_check_branch
        %361 = sbr.rel (%p359) target = $region44
      $region43: #{_lambda_.7} parent=11 // pred_region
        _
      $region44: #{_lambda_.7} parent=11 // pred_fallthru
        _
      // Predicated region
      $region45: #{_lambda_.7} parent=11 // pred_check
        %p362 = pneg %p234
      $region46: #{_lambda_.7} parent=11 // pred_check_branch
        %364 = sbr.rel (%p362) target = $region48
      $region47: #{_lambda_.7} parent=11 // pred_region
        _
      $region48: #{_lambda_.7} parent=11 // pred_fallthru
        _
      // Predicated region
      $region49: #{_lambda_.7} parent=11 // pred_check
        %p365 = pneg %p255
      $region50: #{_lambda_.7} parent=11 // pred_check_branch
        %367 = sbr.rel (%p365) target = $region52
      $region51: #{_lambda_.7} parent=11 // pred_region
        _
      $region52: #{_lambda_.7} parent=11 // pred_fallthru
        _
      // Predicated region
      $region53: #{_lambda_.7} parent=11 // pred_check
        %p368 = pneg %p276
      $region54: #{_lambda_.7} parent=11 // pred_check_branch
        %370 = sbr.rel (%p368) target = $region56
      $region55: #{_lambda_.7} parent=11 // pred_region
        _
      $region56: #{_lambda_.7} parent=11 // pred_fallthru
        _
      // Predicated region
      $region57: #{_lambda_.7} parent=11 // pred_check
        %p371 = pneg %p297
      $region58: #{_lambda_.7} parent=11 // pred_check_branch
        %373 = sbr.rel (%p371) target = $region60
      $region59: #{_lambda_.7} parent=11 // pred_region
        _
      $region60: #{_lambda_.7} parent=11 // pred_fallthru
        _
    $region12: #{_lambda_.7} parent=5 // pred_fallthru
      _
    %p374 = scmp.lt.s32.totalorder %s19, 2
    // Predicated region
    $region61: #{_lambda_.7} parent=5 // pred_check
      %p375 = pneg %p374
    $region62: #{_lambda_.7} parent=5 // pred_check_branch
      %377 = sbr.rel (%p375) target = $region64
    $region63: #{_lambda_.7} parent=5 // pred_region
      // Predicated region
      $region65: #{_lambda_.7} parent=63 // pred_check
        %p378 = pneg %p39
      $region66: #{_lambda_.7} parent=63 // pred_check_branch
        %380 = sbr.rel (%p378) target = $region68
      $region67: #{_lambda_.7} parent=63 // pred_region
        %p381 = scmp.lt.s32.totalorder %s19, 1
        %s382 = scalar_select %p381, %s19, 1
        %s383 = smul.addr %s382, 3
        %s384 = smul.addr %s383, 8
        %s385 = scalar_lea.vmem %s0, %s384
      $region68: #{_lambda_.7} parent=63 // pred_fallthru
        _
    $region64: #{_lambda_.7} parent=5 // pred_fallthru
      _
    %p386 = scmp.le.s32.totalorder 1, %s19
    %p387 = scmp.lt.s32.totalorder %s19, 3
    %p388 = pnand %p386, %p387
    %p389 = pneg %p388
    // Predicated region
    $region69: #{_lambda_.7} parent=5 // pred_check
      _
    $region70: #{_lambda_.7} parent=5 // pred_check_branch
      %391 = sbr.rel (%p388) target = $region72
    $region71: #{_lambda_.7} parent=5 // pred_region
      %s392 = ssub.s32 %s19, 1
      %p393 = scmp.lt.s32.totalorder %s24, 1
      %s394 = scalar_select %p393, %s24, 1
      %s395 = smul.addr %s394, 3
      %s396 = smul.addr %s395, 8
      %s397 = scalar_lea.vmem %s0, %s396
      %p398 = pneg %p45
      %p399 = pneg %p42
      %p400 = pneg %p66
      %p401 = pneg %p63
      %p402 = pneg %p87
      %p403 = pneg %p84
      %p404 = pneg %p108
      %p405 = pneg %p105
      %p406 = pneg %p129
      %p407 = pneg %p126
      %p408 = pneg %p150
      %p409 = pneg %p147
      %p410 = pneg %p171
      %p411 = pneg %p168
      %p412 = pneg %p192
      %p413 = pneg %p189
      %p414 = pneg %p213
      %p415 = pneg %p210
      %p416 = pneg %p234
      %p417 = pneg %p231
      %p418 = pneg %p255
      %p419 = pneg %p252
      %p420 = pneg %p276
      %p421 = pneg %p273
      %p422 = pneg %p297
      %p423 = pneg %p294
      %p424 = pneg %p323
      %p425 = pneg %p320
      %p426 = scmp.lt.s32.totalorder %s24, 1
      %s427 = scalar_select %p426, %s24, 1
      %s428 = smul.addr %s427, 3
      %s429 = smul.addr %s428, 8
      %s430 = scalar_lea.vmem %s13, %s429
      %p431 = scmp.lt.s32.totalorder %s24, 1
      %s432 = scalar_select %p431, %s24, 1
      %s433 = smul.addr %s432, 3
      %s434 = smul.addr %s433, 8
      %s435 = scalar_lea.vmem %s0, %s434
      %p436 = scmp.lt.s32.totalorder %s24, 1
      %s437 = scalar_select %p436, %s24, 1
      %s438 = smul.addr %s437, 3
      %s439 = smul.addr %s438, 8
      %s440 = scalar_lea.vmem %s13, %s439
      %v442 = vld [vmem:[%s435] sm:$0xff]
      %v443 = vld [vmem:[%s435 + $0x8] sm:$0xff]
      %v444 = vld [vmem:[%s435 + $0x10] sm:$0x1]
      %v445 = vpack.c.bf16 %v443, %v442
      %v446 = vpack.c.bf16 %v444, %v444
      %v447 = vld [vmem:[%s1] sm:$0xff]
      %v448 = vld [vmem:[%s1 + $0x8] sm:$0xff]
      %v449 = vld [vmem:[%s1 + $0x10] sm:$0xff]
      %v450 = vld [vmem:[%s1 + $0x18] sm:$0xff]
      %v451 = vld [vmem:[%s1 + $0x20] sm:$0xff]
      %v452 = vld [vmem:[%s1 + $0x28] sm:$0xff]
      %v453 = vld [vmem:[%s1 + $0x30] sm:$0xff]
      %v454 = vld [vmem:[%s1 + $0x38] sm:$0xff]
      %v455 = vpack.c.bf16 %v449, %v447
      %v456 = vpack.c.bf16 %v450, %v448
      %v457 = vpack.c.bf16 %v453, %v451
      %v458 = vpack.c.bf16 %v454, %v452
      %v459 = vld [vmem:[%s2] sm:$0x3]
      %v461 = vperm.slane %v459, 0
      %v462 = vperm.slane %v459, 1
      %vm465 = vcmask 261120
      %v467 = vsel %vm465, %v445, 0
      %v470 = vsel %vm465, %v446, 0
      %472 = vmatpush.bf16.msra.mxu0 0
      %473 = vmatpush.bf16.msra.mxu0 0
      %474 = vmatpush.bf16.msra.mxu0 0
      %475 = vmatpush.bf16.msra.mxu0 0
      %476 = vmatpush.bf16.msra.mxu0 0
      %477 = vmatpush.bf16.msra.mxu0 0
      %478 = vmatpush.bf16.msra.mxu0 %v457
      %479 = vmatpush.bf16.msra.mxu0 %v455
      %480 = vmatmul.bf16.gmra.mxu0 %v467
      %v481 = vpop.f32.mrf.mxu0
      %v482 = vadd.f32 %v461, %v481
      %v483 = vpop.f32.mrf.mxu0
      %v484 = vadd.f32 %v461, %v483
      %485 = vmatmul.bf16.gmra.mxu0 %v470
      %v486 = vpop.f32.mrf.mxu0
      %v487 = vadd.f32 %v461, %v486
      %v488 = vpop.f32.mrf.mxu0
      %489 = vdwg.mxu0
      %490 = vmatpush.bf16.msra.mxu0 0
      %491 = vmatpush.bf16.msra.mxu0 0
      %492 = vmatpush.bf16.msra.mxu0 0
      %493 = vmatpush.bf16.msra.mxu0 0
      %494 = vmatpush.bf16.msra.mxu0 0
      %495 = vmatpush.bf16.msra.mxu0 0
      %496 = vmatpush.bf16.msra.mxu0 %v458
      %497 = vmatpush.bf16.msra.mxu0 %v456
      %498 = vmatmul.bf16.gmra.mxu0 %v467
      %v499 = vpop.f32.mrf.mxu0
      %v500 = vadd.f32 %v462, %v499
      %v501 = vpop.f32.mrf.mxu0
      %v502 = vadd.f32 %v462, %v501
      %503 = vmatmul.bf16.gmra.mxu0 %v470
      %v504 = vpop.f32.mrf.mxu0
      %v505 = vadd.f32 %v462, %v504
      %v506 = vpop.f32.mrf.mxu0
      %507 = vdwg.mxu0
      %v508 = vld [vmem:[%s3] sm:$0xff]
      %v509 = vld [vmem:[%s3 + $0x8] sm:$0xff]
      %v510 = vld [vmem:[%s3 + $0x10] sm:$0xff]
      %v511 = vld [vmem:[%s3 + $0x18] sm:$0xff]
      %v512 = vld [vmem:[%s3 + $0x20] sm:$0xff]
      %v513 = vld [vmem:[%s3 + $0x28] sm:$0xff]
      %v514 = vld [vmem:[%s3 + $0x30] sm:$0xff]
      %v515 = vld [vmem:[%s3 + $0x38] sm:$0xff]
      %v516 = vpack.c.bf16 %v508, %v508
      %v517 = vpack.c.bf16 %v509, %v509
      %v518 = vpack.c.bf16 %v510, %v510
      %v519 = vpack.c.bf16 %v511, %v511
      %v520 = vpack.c.bf16 %v512, %v512
      %v521 = vpack.c.bf16 %v513, %v513
      %v522 = vpack.c.bf16 %v514, %v514
      %v523 = vpack.c.bf16 %v515, %v515
      %v524 = vld [vmem:[%s4] sm:$0x1]
      %v525 = vpack.c.bf16 %v484, %v482
      %v526 = vpack.c.bf16 %v487, %v487
      %530 = vrot.lane.b32.xlu0 %v482, 64
      %v531 = vpop.permute.xlu0 %530
      %532 = vrot.lane.b32.xlu0 %v484, 64
      %v533 = vpop.permute.xlu0 %532
      %534 = vrot.lane.b32.xlu0 %v487, 64
      %v535 = vpop.permute.xlu0 %534
      %539 = vxpose.xlu0.b32.start [1/16] %v531, 128
      %540 = vxpose.xlu0.b32.cont [2/16] %v533, 128
      %541 = vxpose.xlu0.b32.cont [3/16] %v535, 128
      %542 = vxpose.xlu0.b32.cont [4/16] 0.0, 128
      %543 = vxpose.xlu0.b32.cont [5/16] 0.0, 128
      %544 = vxpose.xlu0.b32.cont [6/16] 0.0, 128
      %545 = vxpose.xlu0.b32.cont [7/16] 0.0, 128
      %546 = vxpose.xlu0.b32.cont [8/16] 0.0, 128
      %547 = vxpose.xlu0.b32.cont [9/16] 0.0, 128
      %548 = vxpose.xlu0.b32.cont [10/16] 0.0, 128
      %549 = vxpose.xlu0.b32.cont [11/16] 0.0, 128
      %550 = vxpose.xlu0.b32.cont [12/16] 0.0, 128
      %551 = vxpose.xlu0.b32.cont [13/16] 0.0, 128
      %552 = vxpose.xlu0.b32.cont [14/16] 0.0, 128
      %553 = vxpose.xlu0.b32.cont [15/16] 0.0, 128
      %554 = vxpose.xlu0.b32.end [16/16] 0.0, 128
      %v555 = vpop.trf.xlu0
      %v556 = vpop.trf.xlu0
      %v557 = vpop.trf.xlu0
      %v558 = vpop.trf.xlu0
      %v559 = vpop.trf.xlu0
      %v560 = vpop.trf.xlu0
      %v561 = vpop.trf.xlu0
      %v562 = vpop.trf.xlu0
      %v563 = vpop.trf.xlu0
      %v564 = vpop.trf.xlu0
      %v565 = vpop.trf.xlu0
      %v566 = vpop.trf.xlu0
      %v567 = vpop.trf.xlu0
      %v568 = vpop.trf.xlu0
      %v569 = vpop.trf.xlu0
      %v570 = vpop.trf.xlu0
      %v571 = vpack.c.bf16 %v556, %v555
      %vm572 = vcmask 130048
      %v574 = vsel %vm572, %v525, 0
      %v577 = vsel %vm572, %v526, 0
      %579 = vmatpush.bf16.msra.mxu0 0
      %580 = vmatpush.bf16.msra.mxu0 0
      %581 = vmatpush.bf16.msra.mxu0 0
      %582 = vmatpush.bf16.msra.mxu0 0
      %583 = vmatpush.bf16.msra.mxu0 0
      %584 = vmatpush.bf16.msra.mxu0 0
      %585 = vmatpush.bf16.msra.mxu0 0
      %586 = vmatpush.bf16.msra.mxu0 %v571
      %587 = vmatmul.bf16.gmra.mxu0 %v574
      %v588 = vpop.f32.mrf.mxu0
      %v589 = vadd.f32 0.0, %v588
      %v590 = vpop.f32.mrf.mxu0
      %v591 = vadd.f32 0.0, %v590
      %592 = vmatmul.bf16.gmra.mxu0 %v577
      %v593 = vpop.f32.mrf.mxu0
      %v594 = vadd.f32 0.0, %v593
      %v595 = vpop.f32.mrf.mxu0
      %596 = vdwg.mxu0
      %v597 = vmul.f32 %v589, 0.25
      %v598 = vmul.f32 %v591, 0.25
      %v599 = vmul.f32 %v594, 0.25
      %vm600 = vcmask 138240
      %v601 = vsel %vm600, %v597, -inf
      %602 = vmax.xlane.f32.xlu0 %v601
      %v603 = vpop.xlane.xlu0 %602
      %v604 = vsel %vm600, %v598, -inf
      %605 = vmax.xlane.f32.xlu0 %v604
      %v606 = vpop.xlane.xlu0 %605
      %vm607 = vcmask 131072
      %v608 = vsel %vm607, %v599, -inf
      %609 = vmax.xlane.f32.xlu0 %v608
      %v610 = vpop.xlane.xlu0 %609
      %v611 = vsub.f32 %v597, %v603
      %v612 = vsub.f32 %v598, %v606
      %v613 = vsub.f32 %v599, %v610
      %v614 = vmul.f32 %v611, 1.442695
      %v615 = vpow.pop %v614
      %v616 = vmul.f32 %v612, 1.442695
      %v617 = vpow.pop %v616
      %v618 = vmul.f32 %v613, 1.442695
      %v619 = vpow.pop %v618
      %v620 = vsel %vm600, %v615, 0.0
      %621 = vadd.xlane.f32.xlu0 %v620
      %v622 = vpop.xlane.xlu0 %621
      %v623 = vsel %vm600, %v617, 0.0
      %624 = vadd.xlane.f32.xlu0 %v623
      %v625 = vpop.xlane.xlu0 %624
      %v626 = vsel %vm607, %v619, 0.0
      %627 = vadd.xlane.f32.xlu0 %v626
      %v628 = vpop.xlane.xlu0 %627
      %v629 = vrcp.pop %v622
      %v630 = vrcp.pop %v625
      %v631 = vrcp.pop %v628
      %v632 = vmul.f32 %v615, %v629
      %v633 = vmul.f32 %v617, %v630
      %v634 = vmul.f32 %v619, %v631
      %v635 = vpack.c.bf16 %v633, %v632
      %v636 = vpack.c.bf16 %v634, %v634
      %v637 = vpack.c.bf16 %v502, %v500
      %v638 = vpack.c.bf16 %v505, %v505
      %v640 = vsel %vm600, %v635, 0
      %v643 = vsel %vm600, %v636, 0
      %vm645 = vcmask 1040384
      %v646 = vsel 0, 4294967295, 65535
      %v647 = vsel %vm645, %v646, 0
      %v649 = vand.u32 %v638, %v647
      %651 = vmatpush.bf16.msra.mxu0 0
      %652 = vmatpush.bf16.msra.mxu0 0
      %653 = vmatpush.bf16.msra.mxu0 0
      %654 = vmatpush.bf16.msra.mxu0 0
      %655 = vmatpush.bf16.msra.mxu0 0
      %656 = vmatpush.bf16.msra.mxu0 0
      %657 = vmatpush.bf16.msra.mxu0 %v649
      %658 = vmatpush.bf16.msra.mxu0 %v637
      %659 = vmatmul.bf16.gmra.mxu0 %v640
      %v660 = vpop.f32.mrf.mxu0
      %v661 = vadd.f32 0.0, %v660
      %v662 = vpop.f32.mrf.mxu0
      %v663 = vadd.f32 0.0, %v662
      %664 = vmatmul.bf16.gmra.mxu0 %v643
      %v665 = vpop.f32.mrf.mxu0
      %v666 = vadd.f32 0.0, %v665
      %v667 = vpop.f32.mrf.mxu0
      %668 = vdwg.mxu0
      %v669 = vpack.c.bf16 %v663, %v661
      %v670 = vpack.c.bf16 %v666, %v666
      %671 = vrot.lane.b32.xlu0 %v482, 48
      %v672 = vpop.permute.xlu0 %671
      %673 = vrot.lane.b32.xlu0 %v484, 48
      %v674 = vpop.permute.xlu0 %673
      %675 = vrot.lane.b32.xlu0 %v487, 48
      %v676 = vpop.permute.xlu0 %675
      %680 = vxpose.xlu0.b32.start [1/16] %v672, 128
      %681 = vxpose.xlu0.b32.cont [2/16] %v674, 128
      %682 = vxpose.xlu0.b32.cont [3/16] %v676, 128
      %683 = vxpose.xlu0.b32.cont [4/16] 0.0, 128
      %684 = vxpose.xlu0.b32.cont [5/16] 0.0, 128
      %685 = vxpose.xlu0.b32.cont [6/16] 0.0, 128
      %686 = vxpose.xlu0.b32.cont [7/16] 0.0, 128
      %687 = vxpose.xlu0.b32.cont [8/16] 0.0, 128
      %688 = vxpose.xlu0.b32.cont [9/16] 0.0, 128
      %689 = vxpose.xlu0.b32.cont [10/16] 0.0, 128
      %690 = vxpose.xlu0.b32.cont [11/16] 0.0, 128
      %691 = vxpose.xlu0.b32.cont [12/16] 0.0, 128
      %692 = vxpose.xlu0.b32.cont [13/16] 0.0, 128
      %693 = vxpose.xlu0.b32.cont [14/16] 0.0, 128
      %694 = vxpose.xlu0.b32.cont [15/16] 0.0, 128
      %695 = vxpose.xlu0.b32.end [16/16] 0.0, 128
      %v696 = vpop.trf.xlu0
      %v697 = vpop.trf.xlu0
      %v698 = vpop.trf.xlu0
      %v699 = vpop.trf.xlu0
      %v700 = vpop.trf.xlu0
      %v701 = vpop.trf.xlu0
      %v702 = vpop.trf.xlu0
      %v703 = vpop.trf.xlu0
      %v704 = vpop.trf.xlu0
      %v705 = vpop.trf.xlu0
      %v706 = vpop.trf.xlu0
      %v707 = vpop.trf.xlu0
      %v708 = vpop.trf.xlu0
      %v709 = vpop.trf.xlu0
      %v710 = vpop.trf.xlu0
      %v711 = vpop.trf.xlu0
      %v712 = vpack.c.bf16 %v697, %v696
      %715 = vrot.lane.b32.xlu0 %v525, 112
      %v716 = vpop.permute.xlu0 %715
      %717 = vrot.lane.b32.xlu0 %v526, 112
      %v718 = vpop.permute.xlu0 %717
      %v720 = vsel %vm572, %v716, 0
      %v723 = vsel %vm572, %v718, 0
      %725 = vmatpush.bf16.msra.mxu0 0
      %726 = vmatpush.bf16.msra.mxu0 0
      %727 = vmatpush.bf16.msra.mxu0 0
      %728 = vmatpush.bf16.msra.mxu0 0
      %729 = vmatpush.bf16.msra.mxu0 0
      %730 = vmatpush.bf16.msra.mxu0 0
      %731 = vmatpush.bf16.msra.mxu0 0
      %732 = vmatpush.bf16.msra.mxu0 %v712
      %733 = vmatmul.bf16.gmra.mxu0 %v720
      %v734 = vpop.f32.mrf.mxu0
      %v735 = vadd.f32 0.0, %v734
      %v736 = vpop.f32.mrf.mxu0
      %v737 = vadd.f32 0.0, %v736
      %738 = vmatmul.bf16.gmra.mxu0 %v723
      %v739 = vpop.f32.mrf.mxu0
      %v740 = vadd.f32 0.0, %v739
      %v741 = vpop.f32.mrf.mxu0
      %742 = vdwg.mxu0
      %v743 = vmul.f32 %v735, 0.25
      %v744 = vmul.f32 %v737, 0.25
      %v745 = vmul.f32 %v740, 0.25
      %v746 = vsel %vm600, %v743, -inf
      %747 = vmax.xlane.f32.xlu0 %v746
      %v748 = vpop.xlane.xlu0 %747
      %v749 = vsel %vm600, %v744, -inf
      %750 = vmax.xlane.f32.xlu0 %v749
      %v751 = vpop.xlane.xlu0 %750
      %v752 = vsel %vm607, %v745, -inf
      %753 = vmax.xlane.f32.xlu0 %v752
      %v754 = vpop.xlane.xlu0 %753
      %v755 = vsub.f32 %v743, %v748
      %v756 = vsub.f32 %v744, %v751
      %v757 = vsub.f32 %v745, %v754
      %v758 = vmul.f32 %v755, 1.442695
      %v759 = vpow.pop %v758
      %v760 = vmul.f32 %v756, 1.442695
      %v761 = vpow.pop %v760
      %v762 = vmul.f32 %v757, 1.442695
      %v763 = vpow.pop %v762
      %v764 = vsel %vm600, %v759, 0.0
      %765 = vadd.xlane.f32.xlu0 %v764
      %v766 = vpop.xlane.xlu0 %765
      %v767 = vsel %vm600, %v761, 0.0
      %768 = vadd.xlane.f32.xlu0 %v767
      %v769 = vpop.xlane.xlu0 %768
      %v770 = vsel %vm607, %v763, 0.0
      %771 = vadd.xlane.f32.xlu0 %v770
      %v772 = vpop.xlane.xlu0 %771
      %v773 = vrcp.pop %v766
      %v774 = vrcp.pop %v769
      %v775 = vrcp.pop %v772
      %v776 = vmul.f32 %v759, %v773
      %v777 = vmul.f32 %v761, %v774
      %v778 = vmul.f32 %v763, %v775
      %v779 = vpack.c.bf16 %v777, %v776
      %v780 = vpack.c.bf16 %v778, %v778
      %783 = vrot.lane.b32.xlu0 %v637, 112
      %v784 = vpop.permute.xlu0 %783
      %785 = vrot.lane.b32.xlu0 %v638, 112
      %v786 = vpop.permute.xlu0 %785
      %v789 = vsel %vm600, %v779, 0
      %v792 = vsel %vm600, %v780, 0
      %v795 = vand.u32 %v786, %v647
      %797 = vmatpush.bf16.msra.mxu0 0
      %798 = vmatpush.bf16.msra.mxu0 0
      %799 = vmatpush.bf16.msra.mxu0 0
      %800 = vmatpush.bf16.msra.mxu0 0
      %801 = vmatpush.bf16.msra.mxu0 0
      %802 = vmatpush.bf16.msra.mxu0 0
      %803 = vmatpush.bf16.msra.mxu0 %v795
      %804 = vmatpush.bf16.msra.mxu0 %v784
      %805 = vmatmul.bf16.gmra.mxu0 %v789
      %v806 = vpop.f32.mrf.mxu0
      %v807 = vadd.f32 0.0, %v806
      %v808 = vpop.f32.mrf.mxu0
      %v809 = vadd.f32 0.0, %v808
      %810 = vmatmul.bf16.gmra.mxu0 %v792
      %v811 = vpop.f32.mrf.mxu0
      %v812 = vadd.f32 0.0, %v811
      %v813 = vpop.f32.mrf.mxu0
      %814 = vdwg.mxu0
      %v815 = vpack.c.bf16 %v809, %v807
      %v816 = vpack.c.bf16 %v812, %v812
      %v819 = vunpack.c.l.b16 %v518
      %v820 = vunpack.c.l.b16 %v519
      %v821 = vpack.c.b16 %v820, %v819
      %v824 = vsel %vm572, %v815, 0
      %v827 = vsel %vm572, %v816, 0
      %829 = vmatpush.bf16.msra.mxu0 0
      %830 = vmatpush.bf16.msra.mxu0 0
      %831 = vmatpush.bf16.msra.mxu0 0
      %832 = vmatpush.bf16.msra.mxu0 0
      %833 = vmatpush.bf16.msra.mxu0 0
      %834 = vmatpush.bf16.msra.mxu0 0
      %835 = vmatpush.bf16.msra.mxu0 0
      %836 = vmatpush.bf16.msra.mxu0 %v821
      %837 = vmatmul.bf16.gmra.mxu0 %v824
      %v838 = vpop.f32.mrf.mxu0
      %v839 = vadd.f32 0.0, %v838
      %v840 = vpop.f32.mrf.mxu0
      %v841 = vadd.f32 0.0, %v840
      %842 = vmatmul.bf16.gmra.mxu0 %v827
      %v843 = vpop.f32.mrf.mxu0
      %v844 = vadd.f32 0.0, %v843
      %v845 = vpop.f32.mrf.mxu0
      %846 = vdwg.mxu0
      %v849 = vunpack.c.l.b16 %v516
      %v850 = vunpack.c.l.b16 %v517
      %v851 = vpack.c.b16 %v850, %v849
      %v854 = vsel %vm572, %v669, 0
      %v857 = vsel %vm572, %v670, 0
      %859 = vmatpush.bf16.msra.mxu0 0
      %860 = vmatpush.bf16.msra.mxu0 0
      %861 = vmatpush.bf16.msra.mxu0 0
      %862 = vmatpush.bf16.msra.mxu0 0
      %863 = vmatpush.bf16.msra.mxu0 0
      %864 = vmatpush.bf16.msra.mxu0 0
      %865 = vmatpush.bf16.msra.mxu0 0
      %866 = vmatpush.bf16.msra.mxu0 %v851
      %867 = vmatmul.bf16.gmra.mxu0 %v854
      %v868 = vpop.f32.mrf.mxu0
      %v869 = vadd.f32 %v839, %v868
      %v870 = vpop.f32.mrf.mxu0
      %v871 = vadd.f32 %v841, %v870
      %872 = vmatmul.bf16.gmra.mxu0 %v857
      %v873 = vpop.f32.mrf.mxu0
      %v874 = vadd.f32 %v844, %v873
      %v875 = vpop.f32.mrf.mxu0
      %876 = vdwg.mxu0
      %877 = vrot.lane.b32.xlu0 %v482, 32
      %v878 = vpop.permute.xlu0 %877
      %879 = vrot.lane.b32.xlu0 %v484, 32
      %v880 = vpop.permute.xlu0 %879
      %881 = vrot.lane.b32.xlu0 %v487, 32
      %v882 = vpop.permute.xlu0 %881
      %886 = vxpose.xlu0.b32.start [1/16] %v878, 128
      %887 = vxpose.xlu0.b32.cont [2/16] %v880, 128
      %888 = vxpose.xlu0.b32.cont [3/16] %v882, 128
      %889 = vxpose.xlu0.b32.cont [4/16] 0.0, 128
      %890 = vxpose.xlu0.b32.cont [5/16] 0.0, 128
      %891 = vxpose.xlu0.b32.cont [6/16] 0.0, 128
      %892 = vxpose.xlu0.b32.cont [7/16] 0.0, 128
      %893 = vxpose.xlu0.b32.cont [8/16] 0.0, 128
      %894 = vxpose.xlu0.b32.cont [9/16] 0.0, 128
      %895 = vxpose.xlu0.b32.cont [10/16] 0.0, 128
      %896 = vxpose.xlu0.b32.cont [11/16] 0.0, 128
      %897 = vxpose.xlu0.b32.cont [12/16] 0.0, 128
      %898 = vxpose.xlu0.b32.cont [13/16] 0.0, 128
      %899 = vxpose.xlu0.b32.cont [14/16] 0.0, 128
      %900 = vxpose.xlu0.b32.cont [15/16] 0.0, 128
      %901 = vxpose.xlu0.b32.end [16/16] 0.0, 128
      %v902 = vpop.trf.xlu0
      %v903 = vpop.trf.xlu0
      %v904 = vpop.trf.xlu0
      %v905 = vpop.trf.xlu0
      %v906 = vpop.trf.xlu0
      %v907 = vpop.trf.xlu0
      %v908 = vpop.trf.xlu0
      %v909 = vpop.trf.xlu0
      %v910 = vpop.trf.xlu0
      %v911 = vpop.trf.xlu0
      %v912 = vpop.trf.xlu0
      %v913 = vpop.trf.xlu0
      %v914 = vpop.trf.xlu0
      %v915 = vpop.trf.xlu0
      %v916 = vpop.trf.xlu0
      %v917 = vpop.trf.xlu0
      %v918 = vpack.c.bf16 %v903, %v902
      %919 = vrot.lane.b32.xlu0 %v525, 96
      %v920 = vpop.permute.xlu0 %919
      %921 = vrot.lane.b32.xlu0 %v526, 96
      %v922 = vpop.permute.xlu0 %921
      %v924 = vsel %vm572, %v920, 0
      %v927 = vsel %vm572, %v922, 0
      %929 = vmatpush.bf16.msra.mxu0 0
      %930 = vmatpush.bf16.msra.mxu0 0
      %931 = vmatpush.bf16.msra.mxu0 0
      %932 = vmatpush.bf16.msra.mxu0 0
      %933 = vmatpush.bf16.msra.mxu0 0
      %934 = vmatpush.bf16.msra.mxu0 0
      %935 = vmatpush.bf16.msra.mxu0 0
      %936 = vmatpush.bf16.msra.mxu0 %v918
      %937 = vmatmul.bf16.gmra.mxu0 %v924
      %v938 = vpop.f32.mrf.mxu0
      %v939 = vadd.f32 0.0, %v938
      %v940 = vpop.f32.mrf.mxu0
      %v941 = vadd.f32 0.0, %v940
      %942 = vmatmul.bf16.gmra.mxu0 %v927
      %v943 = vpop.f32.mrf.mxu0
      %v944 = vadd.f32 0.0, %v943
      %v945 = vpop.f32.mrf.mxu0
      %946 = vdwg.mxu0
      %v947 = vmul.f32 %v939, 0.25
      %v948 = vmul.f32 %v941, 0.25
      %v949 = vmul.f32 %v944, 0.25
      %v950 = vsel %vm600, %v947, -inf
      %951 = vmax.xlane.f32.xlu0 %v950
      %v952 = vpop.xlane.xlu0 %951
      %v953 = vsel %vm600, %v948, -inf
      %954 = vmax.xlane.f32.xlu0 %v953
      %v955 = vpop.xlane.xlu0 %954
      %v956 = vsel %vm607, %v949, -inf
      %957 = vmax.xlane.f32.xlu0 %v956
      %v958 = vpop.xlane.xlu0 %957
      %v959 = vsub.f32 %v947, %v952
      %v960 = vsub.f32 %v948, %v955
      %v961 = vsub.f32 %v949, %v958
      %v962 = vmul.f32 %v959, 1.442695
      %v963 = vpow.pop %v962
      %v964 = vmul.f32 %v960, 1.442695
      %v965 = vpow.pop %v964
      %v966 = vmul.f32 %v961, 1.442695
      %v967 = vpow.pop %v966
      %v968 = vsel %vm600, %v963, 0.0
      %969 = vadd.xlane.f32.xlu0 %v968
      %v970 = vpop.xlane.xlu0 %969
      %v971 = vsel %vm600, %v965, 0.0
      %972 = vadd.xlane.f32.xlu0 %v971
      %v973 = vpop.xlane.xlu0 %972
      %v974 = vsel %vm607, %v967, 0.0
      %975 = vadd.xlane.f32.xlu0 %v974
      %v976 = vpop.xlane.xlu0 %975
      %v977 = vrcp.pop %v970
      %v978 = vrcp.pop %v973
      %v979 = vrcp.pop %v976
      %v980 = vmul.f32 %v963, %v977
      %v981 = vmul.f32 %v965, %v978
      %v982 = vmul.f32 %v967, %v979
      %v983 = vpack.c.bf16 %v981, %v980
      %v984 = vpack.c.bf16 %v982, %v982
      %985 = vrot.lane.b32.xlu0 %v637, 96
      %v986 = vpop.permute.xlu0 %985
      %987 = vrot.lane.b32.xlu0 %v638, 96
      %v988 = vpop.permute.xlu0 %987
      %v991 = vsel %vm600, %v983, 0
      %v994 = vsel %vm600, %v984, 0
      %v997 = vand.u32 %v988, %v647
      %999 = vmatpush.bf16.msra.mxu0 0
      %1000 = vmatpush.bf16.msra.mxu0 0
      %1001 = vmatpush.bf16.msra.mxu0 0
      %1002 = vmatpush.bf16.msra.mxu0 0
      %1003 = vmatpush.bf16.msra.mxu0 0
      %1004 = vmatpush.bf16.msra.mxu0 0
      %1005 = vmatpush.bf16.msra.mxu0 %v997
      %1006 = vmatpush.bf16.msra.mxu0 %v986
      %1007 = vmatmul.bf16.gmra.mxu0 %v991
      %v1008 = vpop.f32.mrf.mxu0
      %v1009 = vadd.f32 0.0, %v1008
      %v1010 = vpop.f32.mrf.mxu0
      %v1011 = vadd.f32 0.0, %v1010
      %1012 = vmatmul.bf16.gmra.mxu0 %v994
      %v1013 = vpop.f32.mrf.mxu0
      %v1014 = vadd.f32 0.0, %v1013
      %v1015 = vpop.f32.mrf.mxu0
      %1016 = vdwg.mxu0
      %v1017 = vpack.c.bf16 %v1011, %v1009
      %v1018 = vpack.c.bf16 %v1014, %v1014
      %v1021 = vunpack.c.l.b16 %v520
      %v1022 = vunpack.c.l.b16 %v521
      %v1023 = vpack.c.b16 %v1022, %v1021
      %v1026 = vsel %vm572, %v1017, 0
      %v1029 = vsel %vm572, %v1018, 0
      %1031 = vmatpush.bf16.msra.mxu0 0
      %1032 = vmatpush.bf16.msra.mxu0 0
      %1033 = vmatpush.bf16.msra.mxu0 0
      %1034 = vmatpush.bf16.msra.mxu0 0
      %1035 = vmatpush.bf16.msra.mxu0 0
      %1036 = vmatpush.bf16.msra.mxu0 0
      %1037 = vmatpush.bf16.msra.mxu0 0
      %1038 = vmatpush.bf16.msra.mxu0 %v1023
      %1039 = vmatmul.bf16.gmra.mxu0 %v1026
      %v1040 = vpop.f32.mrf.mxu0
      %v1041 = vadd.f32 0.0, %v1040
      %v1042 = vpop.f32.mrf.mxu0
      %v1043 = vadd.f32 0.0, %v1042
      %1044 = vmatmul.bf16.gmra.mxu0 %v1029
      %v1045 = vpop.f32.mrf.mxu0
      %v1046 = vadd.f32 0.0, %v1045
      %v1047 = vpop.f32.mrf.mxu0
      %1048 = vdwg.mxu0
      %v1049 = vadd.f32 %v869, %v1041
      %v1050 = vadd.f32 %v871, %v1043
      %v1051 = vadd.f32 %v874, %v1046
      %1052 = vrot.lane.b32.xlu0 %v482, 16
      %v1053 = vpop.permute.xlu0 %1052
      %1054 = vrot.lane.b32.xlu0 %v484, 16
      %v1055 = vpop.permute.xlu0 %1054
      %1056 = vrot.lane.b32.xlu0 %v487, 16
      %v1057 = vpop.permute.xlu0 %1056
      %1061 = vxpose.xlu0.b32.start [1/16] %v1053, 128
      %1062 = vxpose.xlu0.b32.cont [2/16] %v1055, 128
      %1063 = vxpose.xlu0.b32.cont [3/16] %v1057, 128
      %1064 = vxpose.xlu0.b32.cont [4/16] 0.0, 128
      %1065 = vxpose.xlu0.b32.cont [5/16] 0.0, 128
      %1066 = vxpose.xlu0.b32.cont [6/16] 0.0, 128
      %1067 = vxpose.xlu0.b32.cont [7/16] 0.0, 128
      %1068 = vxpose.xlu0.b32.cont [8/16] 0.0, 128
      %1069 = vxpose.xlu0.b32.cont [9/16] 0.0, 128
      %1070 = vxpose.xlu0.b32.cont [10/16] 0.0, 128
      %1071 = vxpose.xlu0.b32.cont [11/16] 0.0, 128
      %1072 = vxpose.xlu0.b32.cont [12/16] 0.0, 128
      %1073 = vxpose.xlu0.b32.cont [13/16] 0.0, 128
      %1074 = vxpose.xlu0.b32.cont [14/16] 0.0, 128
      %1075 = vxpose.xlu0.b32.cont [15/16] 0.0, 128
      %1076 = vxpose.xlu0.b32.end [16/16] 0.0, 128
      %v1077 = vpop.trf.xlu0
      %v1078 = vpop.trf.xlu0
      %v1079 = vpop.trf.xlu0
      %v1080 = vpop.trf.xlu0
      %v1081 = vpop.trf.xlu0
      %v1082 = vpop.trf.xlu0
      %v1083 = vpop.trf.xlu0
      %v1084 = vpop.trf.xlu0
      %v1085 = vpop.trf.xlu0
      %v1086 = vpop.trf.xlu0
      %v1087 = vpop.trf.xlu0
      %v1088 = vpop.trf.xlu0
      %v1089 = vpop.trf.xlu0
      %v1090 = vpop.trf.xlu0
      %v1091 = vpop.trf.xlu0
      %v1092 = vpop.trf.xlu0
      %v1093 = vpack.c.bf16 %v1078, %v1077
      %1094 = vrot.lane.b32.xlu0 %v525, 80
      %v1095 = vpop.permute.xlu0 %1094
      %1096 = vrot.lane.b32.xlu0 %v526, 80
      %v1097 = vpop.permute.xlu0 %1096
      %v1099 = vsel %vm572, %v1095, 0
      %v1102 = vsel %vm572, %v1097, 0
      %1104 = vmatpush.bf16.msra.mxu0 0
      %1105 = vmatpush.bf16.msra.mxu0 0
      %1106 = vmatpush.bf16.msra.mxu0 0
      %1107 = vmatpush.bf16.msra.mxu0 0
      %1108 = vmatpush.bf16.msra.mxu0 0
      %1109 = vmatpush.bf16.msra.mxu0 0
      %1110 = vmatpush.bf16.msra.mxu0 0
      %1111 = vmatpush.bf16.msra.mxu0 %v1093
      %1112 = vmatmul.bf16.gmra.mxu0 %v1099
      %v1113 = vpop.f32.mrf.mxu0
      %v1114 = vadd.f32 0.0, %v1113
      %v1115 = vpop.f32.mrf.mxu0
      %v1116 = vadd.f32 0.0, %v1115
      %1117 = vmatmul.bf16.gmra.mxu0 %v1102
      %v1118 = vpop.f32.mrf.mxu0
      %v1119 = vadd.f32 0.0, %v1118
      %v1120 = vpop.f32.mrf.mxu0
      %1121 = vdwg.mxu0
      %v1122 = vmul.f32 %v1114, 0.25
      %v1123 = vmul.f32 %v1116, 0.25
      %v1124 = vmul.f32 %v1119, 0.25
      %v1125 = vsel %vm600, %v1122, -inf
      %1126 = vmax.xlane.f32.xlu0 %v1125
      %v1127 = vpop.xlane.xlu0 %1126
      %v1128 = vsel %vm600, %v1123, -inf
      %1129 = vmax.xlane.f32.xlu0 %v1128
      %v1130 = vpop.xlane.xlu0 %1129
      %v1131 = vsel %vm607, %v1124, -inf
      %1132 = vmax.xlane.f32.xlu0 %v1131
      %v1133 = vpop.xlane.xlu0 %1132
      %v1134 = vsub.f32 %v1122, %v1127
      %v1135 = vsub.f32 %v1123, %v1130
      %v1136 = vsub.f32 %v1124, %v1133
      %v1137 = vmul.f32 %v1134, 1.442695
      %v1138 = vpow.pop %v1137
      %v1139 = vmul.f32 %v1135, 1.442695
      %v1140 = vpow.pop %v1139
      %v1141 = vmul.f32 %v1136, 1.442695
      %v1142 = vpow.pop %v1141
      %v1143 = vsel %vm600, %v1138, 0.0
      %1144 = vadd.xlane.f32.xlu0 %v1143
      %v1145 = vpop.xlane.xlu0 %1144
      %v1146 = vsel %vm600, %v1140, 0.0
      %1147 = vadd.xlane.f32.xlu0 %v1146
      %v1148 = vpop.xlane.xlu0 %1147
      %v1149 = vsel %vm607, %v1142, 0.0
      %1150 = vadd.xlane.f32.xlu0 %v1149
      %v1151 = vpop.xlane.xlu0 %1150
      %v1152 = vrcp.pop %v1145
      %v1153 = vrcp.pop %v1148
      %v1154 = vrcp.pop %v1151
      %v1155 = vmul.f32 %v1138, %v1152
      %v1156 = vmul.f32 %v1140, %v1153
      %v1157 = vmul.f32 %v1142, %v1154
      %v1158 = vpack.c.bf16 %v1156, %v1155
      %v1159 = vpack.c.bf16 %v1157, %v1157
      %1160 = vrot.lane.b32.xlu0 %v637, 80
      %v1161 = vpop.permute.xlu0 %1160
      %1162 = vrot.lane.b32.xlu0 %v638, 80
      %v1163 = vpop.permute.xlu0 %1162
      %v1166 = vsel %vm600, %v1158, 0
      %v1169 = vsel %vm600, %v1159, 0
      %v1172 = vand.u32 %v1163, %v647
      %1174 = vmatpush.bf16.msra.mxu0 0
      %1175 = vmatpush.bf16.msra.mxu0 0
      %1176 = vmatpush.bf16.msra.mxu0 0
      %1177 = vmatpush.bf16.msra.mxu0 0
      %1178 = vmatpush.bf16.msra.mxu0 0
      %1179 = vmatpush.bf16.msra.mxu0 0
      %1180 = vmatpush.bf16.msra.mxu0 %v1172
      %1181 = vmatpush.bf16.msra.mxu0 %v1161
      %1182 = vmatmul.bf16.gmra.mxu0 %v1166
      %v1183 = vpop.f32.mrf.mxu0
      %v1184 = vadd.f32 0.0, %v1183
      %v1185 = vpop.f32.mrf.mxu0
      %v1186 = vadd.f32 0.0, %v1185
      %1187 = vmatmul.bf16.gmra.mxu0 %v1169
      %v1188 = vpop.f32.mrf.mxu0
      %v1189 = vadd.f32 0.0, %v1188
      %v1190 = vpop.f32.mrf.mxu0
      %1191 = vdwg.mxu0
      %v1192 = vpack.c.bf16 %v1186, %v1184
      %v1193 = vpack.c.bf16 %v1189, %v1189
      %v1196 = vunpack.c.l.b16 %v522
      %v1197 = vunpack.c.l.b16 %v523
      %v1198 = vpack.c.b16 %v1197, %v1196
      %v1201 = vsel %vm572, %v1192, 0
      %v1204 = vsel %vm572, %v1193, 0
      %1206 = vmatpush.bf16.msra.mxu0 0
      %1207 = vmatpush.bf16.msra.mxu0 0
      %1208 = vmatpush.bf16.msra.mxu0 0
      %1209 = vmatpush.bf16.msra.mxu0 0
      %1210 = vmatpush.bf16.msra.mxu0 0
      %1211 = vmatpush.bf16.msra.mxu0 0
      %1212 = vmatpush.bf16.msra.mxu0 0
      %1213 = vmatpush.bf16.msra.mxu0 %v1198
      %1214 = vmatmul.bf16.gmra.mxu0 %v1201
      %v1215 = vpop.f32.mrf.mxu0
      %v1216 = vadd.f32 0.0, %v1215
      %v1217 = vpop.f32.mrf.mxu0
      %v1218 = vadd.f32 0.0, %v1217
      %1219 = vmatmul.bf16.gmra.mxu0 %v1204
      %v1220 = vpop.f32.mrf.mxu0
      %v1221 = vadd.f32 0.0, %v1220
      %v1222 = vpop.f32.mrf.mxu0
      %1223 = vdwg.mxu0
      %v1224 = vadd.f32 %v1049, %v1216
      %v1225 = vadd.f32 %v1050, %v1218
      %v1226 = vadd.f32 %v1051, %v1221
      %v1228 = vperm.slane %v524, 0
      %v1230 = vadd.f32 %v1224, %v1228
      %v1231 = vadd.f32 %v1225, %v1228
      %v1232 = vadd.f32 %v1226, %v1228
      %v1233 = vld [vmem:[%s5] sm:$0x1]
      %v1234 = vld [vmem:[%s6] sm:$0x1]
      %v1235 = vadd.f32 %v442, %v1230
      %v1236 = vadd.f32 %v443, %v1231
      %v1237 = vadd.f32 %v444, %v1232
      %v1238 = vsel %vm465, %v1235, 0.0
      %1239 = vadd.xlane.f32.xlu0 %v1238
      %v1240 = vpop.xlane.xlu0 %1239
      %v1241 = vsel %vm465, %v1236, 0.0
      %1242 = vadd.xlane.f32.xlu0 %v1241
      %v1243 = vpop.xlane.xlu0 %1242
      %vm1244 = vcmask 253952
      %v1245 = vsel %vm1244, %v1237, 0.0
      %1246 = vadd.xlane.f32.xlu0 %v1245
      %v1247 = vpop.xlane.xlu0 %1246
      %v1248 = vrcp.pop 32.0
      %v1249 = vmul.f32 32.0, %v1248
      %v1250 = vsub.f32 1.0, %v1249
      %v1251 = vmul.f32 %v1248, %v1250
      %v1252 = vadd.f32 %v1248, %v1251
      %vm1253 = vweird.f32 %v1248
      %v1254 = vsel %vm1253, %v1248, %v1252
      %v1255 = vmul.f32 %v1240, %v1254
      %v1256 = vmul.f32 %v1243, %v1254
      %v1257 = vmul.f32 %v1247, %v1254
      %v1258 = vsub.f32 %v1235, %v1255
      %v1259 = vsub.f32 %v1236, %v1256
      %v1260 = vsub.f32 %v1237, %v1257
      %v1261 = vmul.f32 %v1258, %v1258
      %v1262 = vmul.f32 %v1259, %v1259
      %v1263 = vmul.f32 %v1260, %v1260
      %v1264 = vsel %vm465, %v1261, 0.0
      %1265 = vadd.xlane.f32.xlu0 %v1264
      %v1266 = vpop.xlane.xlu0 %1265
      %v1267 = vsel %vm465, %v1262, 0.0
      %1268 = vadd.xlane.f32.xlu0 %v1267
      %v1269 = vpop.xlane.xlu0 %1268
      %v1270 = vsel %vm1244, %v1263, 0.0
      %1271 = vadd.xlane.f32.xlu0 %v1270
      %v1272 = vpop.xlane.xlu0 %1271
      %v1273 = vmul.f32 %v1266, %v1254
      %v1274 = vmul.f32 %v1269, %v1254
      %v1275 = vmul.f32 %v1272, %v1254
      %v1276 = vadd.f32 %v1273, 1e-12
      %v1277 = vadd.f32 %v1274, 1e-12
      %v1278 = vadd.f32 %v1275, 1e-12
      %v1279 = vrsqrt.pop %v1276
      %v1280 = vmul.f32 %v1279, %v1276
      %v1281 = vmul.f32 %v1280, %v1279
      %v1282 = vmul.f32 0.5, %v1281
      %v1283 = vsub.f32 1.5, %v1282
      %v1284 = vmul.f32 %v1279, %v1283
      %vm1285 = vweird.f32 %v1276
      %vm1286 = vweird.f32 %v1279
      %vm1287 = vmor %vm1285, %vm1286
      %v1288 = vsel %vm1287, %v1279, %v1284
      %v1289 = vrsqrt.pop %v1277
      %v1290 = vmul.f32 %v1289, %v1277
      %v1291 = vmul.f32 %v1290, %v1289
      %v1292 = vmul.f32 0.5, %v1291
      %v1293 = vsub.f32 1.5, %v1292
      %v1294 = vmul.f32 %v1289, %v1293
      %vm1295 = vweird.f32 %v1277
      %vm1296 = vweird.f32 %v1289
      %vm1297 = vmor %vm1295, %vm1296
      %v1298 = vsel %vm1297, %v1289, %v1294
      %v1299 = vrsqrt.pop %v1278
      %v1300 = vmul.f32 %v1299, %v1278
      %v1301 = vmul.f32 %v1300, %v1299
      %v1302 = vmul.f32 0.5, %v1301
      %v1303 = vsub.f32 1.5, %v1302
      %v1304 = vmul.f32 %v1299, %v1303
      %vm1305 = vweird.f32 %v1278
      %vm1306 = vweird.f32 %v1299
      %vm1307 = vmor %vm1305, %vm1306
      %v1308 = vsel %vm1307, %v1299, %v1304
      %v1309 = vmul.f32 %v1258, %v1288
      %v1310 = vmul.f32 %v1259, %v1298
      %v1311 = vmul.f32 %v1260, %v1308
      %v1313 = vperm.slane %v1233, 0
      %v1315 = vmul.f32 %v1309, %v1313
      %v1316 = vmul.f32 %v1310, %v1313
      %v1317 = vmul.f32 %v1311, %v1313
      %v1319 = vperm.slane %v1234, 0
      %v1321 = vadd.f32 %v1315, %v1319
      %v1322 = vadd.f32 %v1316, %v1319
      %v1323 = vadd.f32 %v1317, %v1319
      %v1324 = vld [vmem:[%s7] sm:$0xff]
      %v1325 = vld [vmem:[%s7 + $0x8] sm:$0xff]
      %v1326 = vld [vmem:[%s7 + $0x10] sm:$0xff]
      %v1327 = vld [vmem:[%s7 + $0x18] sm:$0xff]
      %v1328 = vpack.c.bf16 %v1325, %v1324
      %v1329 = vpack.c.bf16 %v1327, %v1326
      %v1330 = vld [vmem:[%s8] sm:$0x1]
      %v1331 = vld [vmem:[%s9] sm:$0xff]
      %v1332 = vld [vmem:[%s9 + $0x8] sm:$0xff]
      %v1333 = vld [vmem:[%s9 + $0x10] sm:$0xff]
      %v1334 = vld [vmem:[%s9 + $0x18] sm:$0xff]
      %v1335 = vld [vmem:[%s9 + $0x20] sm:$0xff]
      %v1336 = vld [vmem:[%s9 + $0x28] sm:$0xff]
      %v1337 = vld [vmem:[%s9 + $0x30] sm:$0xff]
      %v1338 = vld [vmem:[%s9 + $0x38] sm:$0xff]
      %v1339 = vpack.c.bf16 %v1332, %v1331
      %v1340 = vpack.c.bf16 %v1334, %v1333
      %v1341 = vpack.c.bf16 %v1336, %v1335
      %v1342 = vpack.c.bf16 %v1338, %v1337
      %v1343 = vld [vmem:[%s10] sm:$0x1]
      %v1344 = vpack.c.bf16 %v1322, %v1321
      %v1345 = vpack.c.bf16 %v1323, %v1323
      %v1347 = vperm.slane %v1330, 0
      %v1350 = vsel %vm465, %v1344, 0
      %v1353 = vsel %vm465, %v1345, 0
      %1355 = vmatpush.bf16.msra.mxu0 0
      %1356 = vmatpush.bf16.msra.mxu0 0
      %1357 = vmatpush.bf16.msra.mxu0 0
      %1358 = vmatpush.bf16.msra.mxu0 0
      %1359 = vmatpush.bf16.msra.mxu0 0
      %1360 = vmatpush.bf16.msra.mxu0 0
      %1361 = vmatpush.bf16.msra.mxu0 %v1329
      %1362 = vmatpush.bf16.msra.mxu0 %v1328
      %1363 = vmatmul.bf16.gmra.mxu0 %v1350
      %v1364 = vpop.f32.mrf.mxu0
      %v1365 = vadd.f32 %v1347, %v1364
      %v1366 = vpop.f32.mrf.mxu0
      %v1367 = vadd.f32 %v1347, %v1366
      %1368 = vmatmul.bf16.gmra.mxu0 %v1353
      %v1369 = vpop.f32.mrf.mxu0
      %v1370 = vadd.f32 %v1347, %v1369
      %v1371 = vpop.f32.mrf.mxu0
      %1372 = vdwg.mxu0
      %v1373 = vmul.f32 %v1365, %v1365
      %v1374 = vmul.f32 %v1367, %v1367
      %v1375 = vmul.f32 %v1370, %v1370
      %v1376 = vmul.f32 %v1365, %v1373
      %v1377 = vmul.f32 %v1367, %v1374
      %v1378 = vmul.f32 %v1370, %v1375
      %v1379 = vmul.f32 %v1376, 0.044715
      %v1380 = vmul.f32 %v1377, 0.044715
      %v1381 = vmul.f32 %v1378, 0.044715
      %v1382 = vadd.f32 %v1365, %v1379
      %v1383 = vadd.f32 %v1367, %v1380
      %v1384 = vadd.f32 %v1370, %v1381
      %v1385 = vmul.f32 %v1382, 0.7978846
      %v1386 = vmul.f32 %v1383, 0.7978846
      %v1387 = vmul.f32 %v1384, 0.7978846
      %v1388 = vtanh.pop %v1385
      %v1389 = vtanh.pop %v1386
      %v1390 = vtanh.pop %v1387
      %v1391 = vadd.f32 %v1388, 1.0
      %v1392 = vadd.f32 %v1389, 1.0
      %v1393 = vadd.f32 %v1390, 1.0
      %v1394 = vmul.f32 %v1391, 0.5
      %v1395 = vmul.f32 %v1392, 0.5
      %v1396 = vmul.f32 %v1393, 0.5
      %v1397 = vmul.f32 %v1365, %v1394
      %v1398 = vmul.f32 %v1367, %v1395
      %v1399 = vmul.f32 %v1370, %v1396
      %v1400 = vpack.c.bf16 %v1398, %v1397
      %v1401 = vpack.c.bf16 %v1399, %v1399
      %v1403 = vperm.slane %v1343, 0
      %vm1405 = vcmask 523264
      %v1407 = vsel %vm1405, %v1400, 0
      %v1410 = vsel %vm1405, %v1401, 0
      %1412 = vmatpush.bf16.msra.mxu0 0
      %1413 = vmatpush.bf16.msra.mxu0 0
      %1414 = vmatpush.bf16.msra.mxu0 0
      %1415 = vmatpush.bf16.msra.mxu0 0
      %1416 = vmatpush.bf16.msra.mxu0 %v1342
      %1417 = vmatpush.bf16.msra.mxu0 %v1341
      %1418 = vmatpush.bf16.msra.mxu0 %v1340
      %1419 = vmatpush.bf16.msra.mxu0 %v1339
      %1420 = vmatmul.bf16.gmra.mxu0 %v1407
      %v1421 = vpop.f32.mrf.mxu0
      %v1422 = vadd.f32 %v1403, %v1421
      %v1423 = vpop.f32.mrf.mxu0
      %v1424 = vadd.f32 %v1403, %v1423
      %1425 = vmatmul.bf16.gmra.mxu0 %v1410
      %v1426 = vpop.f32.mrf.mxu0
      %v1427 = vadd.f32 %v1403, %v1426
      %v1428 = vpop.f32.mrf.mxu0
      %1429 = vdwg.mxu0
      %v1430 = vld [vmem:[%s11] sm:$0x1]
      %v1431 = vld [vmem:[%s12] sm:$0x1]
      %v1432 = vadd.f32 %v1422, %v1321
      %v1433 = vadd.f32 %v1424, %v1322
      %v1434 = vadd.f32 %v1427, %v1323
      %v1435 = vsel %vm465, %v1432, 0.0
      %1436 = vadd.xlane.f32.xlu0 %v1435
      %v1437 = vpop.xlane.xlu0 %1436
      %v1438 = vsel %vm465, %v1433, 0.0
      %1439 = vadd.xlane.f32.xlu0 %v1438
      %v1440 = vpop.xlane.xlu0 %1439
      %v1441 = vsel %vm1244, %v1434, 0.0
      %1442 = vadd.xlane.f32.xlu0 %v1441
      %v1443 = vpop.xlane.xlu0 %1442
      %v1444 = vmul.f32 %v1437, %v1254
      %v1445 = vmul.f32 %v1440, %v1254
      %v1446 = vmul.f32 %v1443, %v1254
      %v1447 = vsub.f32 %v1432, %v1444
      %v1448 = vsub.f32 %v1433, %v1445
      %v1449 = vsub.f32 %v1434, %v1446
      %v1450 = vmul.f32 %v1447, %v1447
      %v1451 = vmul.f32 %v1448, %v1448
      %v1452 = vmul.f32 %v1449, %v1449
      %v1453 = vsel %vm465, %v1450, 0.0
      %1454 = vadd.xlane.f32.xlu0 %v1453
      %v1455 = vpop.xlane.xlu0 %1454
      %v1456 = vsel %vm465, %v1451, 0.0
      %1457 = vadd.xlane.f32.xlu0 %v1456
      %v1458 = vpop.xlane.xlu0 %1457
      %v1459 = vsel %vm1244, %v1452, 0.0
      %1460 = vadd.xlane.f32.xlu0 %v1459
      %v1461 = vpop.xlane.xlu0 %1460
      %v1462 = vmul.f32 %v1455, %v1254
      %v1463 = vmul.f32 %v1458, %v1254
      %v1464 = vmul.f32 %v1461, %v1254
      %v1465 = vadd.f32 %v1462, 1e-12
      %v1466 = vadd.f32 %v1463, 1e-12
      %v1467 = vadd.f32 %v1464, 1e-12
      %v1468 = vrsqrt.pop %v1465
      %v1469 = vmul.f32 %v1468, %v1465
      %v1470 = vmul.f32 %v1469, %v1468
      %v1471 = vmul.f32 0.5, %v1470
      %v1472 = vsub.f32 1.5, %v1471
      %v1473 = vmul.f32 %v1468, %v1472
      %vm1474 = vweird.f32 %v1465
      %vm1475 = vweird.f32 %v1468
      %vm1476 = vmor %vm1474, %vm1475
      %v1477 = vsel %vm1476, %v1468, %v1473
      %v1478 = vrsqrt.pop %v1466
      %v1479 = vmul.f32 %v1478, %v1466
      %v1480 = vmul.f32 %v1479, %v1478
      %v1481 = vmul.f32 0.5, %v1480
      %v1482 = vsub.f32 1.5, %v1481
      %v1483 = vmul.f32 %v1478, %v1482
      %vm1484 = vweird.f32 %v1466
      %vm1485 = vweird.f32 %v1478
      %vm1486 = vmor %vm1484, %vm1485
      %v1487 = vsel %vm1486, %v1478, %v1483
      %v1488 = vrsqrt.pop %v1467
      %v1489 = vmul.f32 %v1488, %v1467
      %v1490 = vmul.f32 %v1489, %v1488
      %v1491 = vmul.f32 0.5, %v1490
      %v1492 = vsub.f32 1.5, %v1491
      %v1493 = vmul.f32 %v1488, %v1492
      %vm1494 = vweird.f32 %v1467
      %vm1495 = vweird.f32 %v1488
      %vm1496 = vmor %vm1494, %vm1495
      %v1497 = vsel %vm1496, %v1488, %v1493
      %v1498 = vmul.f32 %v1447, %v1477
      %v1499 = vmul.f32 %v1448, %v1487
      %v1500 = vmul.f32 %v1449, %v1497
      %v1502 = vperm.slane %v1430, 0
      %v1504 = vmul.f32 %v1498, %v1502
      %v1505 = vmul.f32 %v1499, %v1502
      %v1506 = vmul.f32 %v1500, %v1502
      %v1508 = vperm.slane %v1431, 0
      %v1510 = vadd.f32 %v1504, %v1508
      %v1511 = vadd.f32 %v1505, %v1508
      %v1512 = vadd.f32 %v1506, %v1508
      %1513 = vst.msk [vmem:[%s440] sm:$0xff] %vm465, %v1510
      %1514 = vst.msk [vmem:[%s440 + $0x8] sm:$0xff] %vm465, %v1511
      %1515 = vst.msk [vmem:[%s440 + $0x10] sm:$0x1] %vm1244, %v1512
      %p1516 = scmp.lt.s32.totalorder %s24, 1
      %s1517 = scalar_select %p1516, %s24, 1
      %s1518 = smul.addr %s1517, 3
      %s1519 = smul.addr %s1518, 8
      %s1520 = scalar_lea.vmem %s13, %s1519
      // Predicated region
      $region73: #{_lambda_.7} parent=71 // pred_check
        %p1521 = pneg %p320
      $region74: #{_lambda_.7} parent=71 // pred_check_branch
        %1523 = sbr.rel (%p1521) target = $region76
      $region75: #{_lambda_.7} parent=71 // pred_region
        _
      $region76: #{_lambda_.7} parent=71 // pred_fallthru
        _
    $region72: #{_lambda_.7} parent=5 // pred_fallthru
      _
    %p1524 = scmp.le.s32.totalorder 2, %s19
    // Predicated region
    $region77: #{_lambda_.7} parent=5 // pred_check
      %p1525 = pneg %p1524
    $region78: #{_lambda_.7} parent=5 // pred_check_branch
      %1527 = sbr.rel (%p1525) target = $region80
    $region79: #{_lambda_.7} parent=5 // pred_region
      %s1528 = ssub.s32 %s19, 2
      // Predicated region
      $region81: #{_lambda_.7} parent=79 // pred_check
        %p1529 = pneg %p326
      $region82: #{_lambda_.7} parent=79 // pred_check_branch
        %1531 = sbr.rel (%p1529) target = $region84
      $region83: #{_lambda_.7} parent=79 // pred_region
        %p1532 = scmp.lt.s32.totalorder %s25, 1
        %s1533 = scalar_select %p1532, %s25, 1
        %s1534 = smul.addr %s1533, 3
        %s1535 = smul.addr %s1534, 8
        %s1536 = scalar_lea.vmem %s13, %s1535
      $region84: #{_lambda_.7} parent=79 // pred_fallthru
        _
    $region80: #{_lambda_.7} parent=5 // pred_fallthru
      _
  $region6: #{_lambda_.7} parent=0 // loop_footer
    %s23 = sadd.s32 1, %s19
  $region7: #{_lambda_.7} parent=0 // loop_footer_branch
    %18 = sbr.rel target = $region3
  $region8: #{_lambda_.7} parent=0 // loop_exit
    _

// kernel: _lambda_.9
$region0: #{_lambda_.9}
  #allocation0 [shape = 'u32[]', space=smem, size = 0x4, offset = 0x4, fixed_abs, tag = 'smem constant byte address 0x4 - core index']
  #allocation1 [shape = 'u32[72,128]{1,0:T(1,128)}', space=vmem, size = 0x9000, scoped, tag = 'internal scratch']
  %s0 = inlined_call_operand.vmem [shape: f32[2,17,32], index: 0, kind: input, shape index: {}]
  %s1 = inlined_call_operand.vmem [shape: f32[2,17,32], index: 1, kind: input, shape index: {}]
  %s2 = inlined_call_operand.vmem [shape: f32[32,192], index: 2, kind: input, shape index: {}]
  %s3 = inlined_call_operand.vmem [shape: f32[1,192], index: 3, kind: input, shape index: {}]
  %s4 = inlined_call_operand.vmem [shape: f32[64,32], index: 4, kind: input, shape index: {}]
  %s5 = inlined_call_operand.vmem [shape: f32[1,32], index: 5, kind: input, shape index: {}]
  %s6 = inlined_call_operand.vmem [shape: f32[1,32], index: 6, kind: input, shape index: {}]
  %s7 = inlined_call_operand.vmem [shape: f32[1,32], index: 7, kind: input, shape index: {}]
  %s8 = inlined_call_operand.vmem [shape: f32[32,64], index: 8, kind: input, shape index: {}]
  %s9 = inlined_call_operand.vmem [shape: f32[1,64], index: 9, kind: input, shape index: {}]
  %s10 = inlined_call_operand.vmem [shape: f32[32,128], index: 10, kind: input, shape index: {}]
  %s11 = inlined_call_operand.vmem [shape: f32[1,128], index: 11, kind: input, shape index: {}]
  %s12 = inlined_call_operand.vmem [shape: f32[64,32], index: 12, kind: input, shape index: {}]
  %s13 = inlined_call_operand.vmem [shape: f32[1,32], index: 13, kind: input, shape index: {}]
  %s14 = inlined_call_operand.vmem [shape: f32[1,32], index: 14, kind: input, shape index: {}]
  %s15 = inlined_call_operand.vmem [shape: f32[1,32], index: 15, kind: input, shape index: {}]
  %s16 = inlined_call_operand.vmem [shape: f32[32,64], index: 16, kind: input, shape index: {}]
  %s17 = inlined_call_operand.vmem [shape: f32[1,64], index: 17, kind: input, shape index: {}]
  %s18 = inlined_call_operand.vmem [shape: f32[64,32], index: 18, kind: input, shape index: {}]
  %s19 = inlined_call_operand.vmem [shape: f32[1,32], index: 19, kind: input, shape index: {}]
  %s20 = inlined_call_operand.vmem [shape: f32[1,32], index: 20, kind: input, shape index: {}]
  %s21 = inlined_call_operand.vmem [shape: f32[1,32], index: 21, kind: input, shape index: {}]
  %s22 = inlined_call_operand.vmem [shape: f32[2,17,32], index: 22, kind: output, shape index: {}]
  %s23 = sld [smem:[#allocation0]]
  $region121: #{_lambda_.9} parent=0
    _
  %s25 = ssub.s32 1, %s23
  %s26 = scalar_select 0, %s25, %s23
  loop: start=0, step=1, limit=4
  $region2: #{_lambda_.9} parent=0 // loop_pre_header
    _
  $region3: #{_lambda_.9} parent=0 // loop_header
    %s28 = sphi 0, %s32
    %p29 = scmp.ge.s32.totalorder %s28, 4
    %s38 = sphi 0, %s40
    %s41 = sphi 0, %s38
    %s42 = sphi 0, %s41
    %s58 = sphi 0, %s42
    %s64 = sphi 0, %s66
    %s67 = sphi 0, %s64
    %s68 = sphi 0, %s67
    %s84 = sphi 0, %s68
    %s88 = sphi 0, %s88
    %s90 = sphi 0, %s88
    %s91 = sphi 0, %s90
    %s105 = sphi 0, %s91
    %s109 = sphi 0, %s109
    %s111 = sphi 0, %s109
    %s112 = sphi 0, %s111
    %s126 = sphi 0, %s112
    %s130 = sphi 0, %s130
    %s132 = sphi 0, %s130
    %s133 = sphi 0, %s132
    %s147 = sphi 0, %s133
    %s151 = sphi 0, %s151
    %s153 = sphi 0, %s151
    %s154 = sphi 0, %s153
    %s168 = sphi 0, %s154
    %s172 = sphi 0, %s172
    %s174 = sphi 0, %s172
    %s175 = sphi 0, %s174
    %s189 = sphi 0, %s175
    %s193 = sphi 0, %s193
    %s195 = sphi 0, %s193
    %s196 = sphi 0, %s195
    %s210 = sphi 0, %s196
    %s214 = sphi 0, %s214
    %s216 = sphi 0, %s214
    %s217 = sphi 0, %s216
    %s231 = sphi 0, %s217
    %s235 = sphi 0, %s235
    %s237 = sphi 0, %s235
    %s238 = sphi 0, %s237
    %s252 = sphi 0, %s238
    %s256 = sphi 0, %s256
    %s258 = sphi 0, %s256
    %s259 = sphi 0, %s258
    %s273 = sphi 0, %s259
    %s277 = sphi 0, %s277
    %s279 = sphi 0, %s277
    %s280 = sphi 0, %s279
    %s294 = sphi 0, %s280
    %s298 = sphi 0, %s298
    %s300 = sphi 0, %s298
    %s301 = sphi 0, %s300
    %s315 = sphi 0, %s301
    %s319 = sphi 0, %s319
    %s321 = sphi 0, %s319
    %s322 = sphi 0, %s321
    %s336 = sphi 0, %s322
    %s340 = sphi 0, %s340
    %s342 = sphi 0, %s340
    %s343 = sphi 0, %s342
    %s357 = sphi 0, %s343
    %s361 = sphi 0, %s361
    %s363 = sphi 0, %s361
    %s364 = sphi 0, %s363
    %s378 = sphi 0, %s364
    %s382 = sphi 0, %s382
    %s384 = sphi 0, %s382
    %s385 = sphi 0, %s384
    %s399 = sphi 0, %s385
    %s403 = sphi 0, %s403
    %s405 = sphi 0, %s403
    %s406 = sphi 0, %s405
    %s420 = sphi 0, %s406
    %s424 = sphi 0, %s424
    %s426 = sphi 0, %s424
    %s427 = sphi 0, %s426
    %s441 = sphi 0, %s427
    %s445 = sphi 0, %s445
    %s447 = sphi 0, %s445
    %s448 = sphi 0, %s447
    %s462 = sphi 0, %s448
    %s466 = sphi 0, %s466
    %s468 = sphi 0, %s466
    %s469 = sphi 0, %s468
    %s483 = sphi 0, %s469
    %s487 = sphi 0, %s487
    %s489 = sphi 0, %s487
    %s490 = sphi 0, %s489
    %s504 = sphi 0, %s490
    %s510 = sphi 0, %s512
    %s513 = sphi 0, %s510
    %s514 = sphi 0, %s513
    %s530 = sphi 0, %s514
  $region4: #{_lambda_.9} parent=0 // loop_header_branch
    %31 = sbr.rel (%p29) target = $region8
  $region5: #{_lambda_.9} parent=0 // loop_body
    %s33 = ssub.s32 %s28, 1
    %s34 = ssub.s32 %s28, 2
    %s35 = sadd.s32 %s28, 1
    %s36 = ssub.s32 %s28, %s35
    %p37 = scmp.eq.s32.totalorder %s36, 0
    %s39 = sadd.s32 %s38, 1
    %s40 = scalar_select %p37, %s38, %s39
    %p43 = pneg %p37
    %p44 = scmp.eq.s32.totalorder %s28, 1
    %p45 = por %p43, %p44
    %p46 = scmp.ne.s32.totalorder %s38, %s41
    %p47 = scmp.eq.s32.totalorder %s28, 0
    %p48 = por %p46, %p47
    %p49 = scmp.ne.s32.totalorder %s38, %s41
    %p50 = scmp.eq.s32.totalorder %s33, 1
    %p51 = por %p49, %p50
    %p52 = scmp.ne.s32.totalorder %s41, %s42
    %p53 = scmp.eq.s32.totalorder %s33, 0
    %p54 = por %p52, %p53
    %p55 = scmp.ne.s32.totalorder %s41, %s42
    %p56 = scmp.eq.s32.totalorder %s34, 1
    %p57 = por %p55, %p56
    %p59 = scmp.ne.s32.totalorder %s42, %s58
    %p60 = scmp.eq.s32.totalorder %s34, 0
    %p61 = por %p59, %p60
    %s62 = ssub.s32 %s28, %s35
    %p63 = scmp.eq.s32.totalorder %s62, 0
    %s65 = sadd.s32 %s64, 1
    %s66 = scalar_select %p63, %s64, %s65
    %p69 = pneg %p63
    %p70 = scmp.eq.s32.totalorder %s28, 1
    %p71 = por %p69, %p70
    %p72 = scmp.ne.s32.totalorder %s64, %s67
    %p73 = scmp.eq.s32.totalorder %s28, 0
    %p74 = por %p72, %p73
    %p75 = scmp.ne.s32.totalorder %s64, %s67
    %p76 = scmp.eq.s32.totalorder %s33, 1
    %p77 = por %p75, %p76
    %p78 = scmp.ne.s32.totalorder %s67, %s68
    %p79 = scmp.eq.s32.totalorder %s33, 0
    %p80 = por %p78, %p79
    %p81 = scmp.ne.s32.totalorder %s67, %s68
    %p82 = scmp.eq.s32.totalorder %s34, 1
    %p83 = por %p81, %p82
    %p85 = scmp.ne.s32.totalorder %s68, %s84
    %p86 = scmp.eq.s32.totalorder %s34, 0
    %p87 = por %p85, %p86
    %s89 = sadd.s32 %s88, 1
    %p92 = scmp.eq.s32.totalorder %s28, 1
    %p93 = scmp.ne.s32.totalorder %s88, %s90
    %p94 = scmp.eq.s32.totalorder %s28, 0
    %p95 = por %p93, %p94
    %p96 = scmp.ne.s32.totalorder %s88, %s90
    %p97 = scmp.eq.s32.totalorder %s33, 1
    %p98 = por %p96, %p97
    %p99 = scmp.ne.s32.totalorder %s90, %s91
    %p100 = scmp.eq.s32.totalorder %s33, 0
    %p101 = por %p99, %p100
    %p102 = scmp.ne.s32.totalorder %s90, %s91
    %p103 = scmp.eq.s32.totalorder %s34, 1
    %p104 = por %p102, %p103
    %p106 = scmp.ne.s32.totalorder %s91, %s105
    %p107 = scmp.eq.s32.totalorder %s34, 0
    %p108 = por %p106, %p107
    %s110 = sadd.s32 %s109, 1
    %p113 = scmp.eq.s32.totalorder %s28, 1
    %p114 = scmp.ne.s32.totalorder %s109, %s111
    %p115 = scmp.eq.s32.totalorder %s28, 0
    %p116 = por %p114, %p115
    %p117 = scmp.ne.s32.totalorder %s109, %s111
    %p118 = scmp.eq.s32.totalorder %s33, 1
    %p119 = por %p117, %p118
    %p120 = scmp.ne.s32.totalorder %s111, %s112
    %p121 = scmp.eq.s32.totalorder %s33, 0
    %p122 = por %p120, %p121
    %p123 = scmp.ne.s32.totalorder %s111, %s112
    %p124 = scmp.eq.s32.totalorder %s34, 1
    %p125 = por %p123, %p124
    %p127 = scmp.ne.s32.totalorder %s112, %s126
    %p128 = scmp.eq.s32.totalorder %s34, 0
    %p129 = por %p127, %p128
    %s131 = sadd.s32 %s130, 1
    %p134 = scmp.eq.s32.totalorder %s28, 1
    %p135 = scmp.ne.s32.totalorder %s130, %s132
    %p136 = scmp.eq.s32.totalorder %s28, 0
    %p137 = por %p135, %p136
    %p138 = scmp.ne.s32.totalorder %s130, %s132
    %p139 = scmp.eq.s32.totalorder %s33, 1
    %p140 = por %p138, %p139
    %p141 = scmp.ne.s32.totalorder %s132, %s133
    %p142 = scmp.eq.s32.totalorder %s33, 0
    %p143 = por %p141, %p142
    %p144 = scmp.ne.s32.totalorder %s132, %s133
    %p145 = scmp.eq.s32.totalorder %s34, 1
    %p146 = por %p144, %p145
    %p148 = scmp.ne.s32.totalorder %s133, %s147
    %p149 = scmp.eq.s32.totalorder %s34, 0
    %p150 = por %p148, %p149
    %s152 = sadd.s32 %s151, 1
    %p155 = scmp.eq.s32.totalorder %s28, 1
    %p156 = scmp.ne.s32.totalorder %s151, %s153
    %p157 = scmp.eq.s32.totalorder %s28, 0
    %p158 = por %p156, %p157
    %p159 = scmp.ne.s32.totalorder %s151, %s153
    %p160 = scmp.eq.s32.totalorder %s33, 1
    %p161 = por %p159, %p160
    %p162 = scmp.ne.s32.totalorder %s153, %s154
    %p163 = scmp.eq.s32.totalorder %s33, 0
    %p164 = por %p162, %p163
    %p165 = scmp.ne.s32.totalorder %s153, %s154
    %p166 = scmp.eq.s32.totalorder %s34, 1
    %p167 = por %p165, %p166
    %p169 = scmp.ne.s32.totalorder %s154, %s168
    %p170 = scmp.eq.s32.totalorder %s34, 0
    %p171 = por %p169, %p170
    %s173 = sadd.s32 %s172, 1
    %p176 = scmp.eq.s32.totalorder %s28, 1
    %p177 = scmp.ne.s32.totalorder %s172, %s174
    %p178 = scmp.eq.s32.totalorder %s28, 0
    %p179 = por %p177, %p178
    %p180 = scmp.ne.s32.totalorder %s172, %s174
    %p181 = scmp.eq.s32.totalorder %s33, 1
    %p182 = por %p180, %p181
    %p183 = scmp.ne.s32.totalorder %s174, %s175
    %p184 = scmp.eq.s32.totalorder %s33, 0
    %p185 = por %p183, %p184
    %p186 = scmp.ne.s32.totalorder %s174, %s175
    %p187 = scmp.eq.s32.totalorder %s34, 1
    %p188 = por %p186, %p187
    %p190 = scmp.ne.s32.totalorder %s175, %s189
    %p191 = scmp.eq.s32.totalorder %s34, 0
    %p192 = por %p190, %p191
    %s194 = sadd.s32 %s193, 1
    %p197 = scmp.eq.s32.totalorder %s28, 1
    %p198 = scmp.ne.s32.totalorder %s193, %s195
    %p199 = scmp.eq.s32.totalorder %s28, 0
    %p200 = por %p198, %p199
    %p201 = scmp.ne.s32.totalorder %s193, %s195
    %p202 = scmp.eq.s32.totalorder %s33, 1
    %p203 = por %p201, %p202
    %p204 = scmp.ne.s32.totalorder %s195, %s196
    %p205 = scmp.eq.s32.totalorder %s33, 0
    %p206 = por %p204, %p205
    %p207 = scmp.ne.s32.totalorder %s195, %s196
    %p208 = scmp.eq.s32.totalorder %s34, 1
    %p209 = por %p207, %p208
    %p211 = scmp.ne.s32.totalorder %s196, %s210
    %p212 = scmp.eq.s32.totalorder %s34, 0
    %p213 = por %p211, %p212
    %s215 = sadd.s32 %s214, 1
    %p218 = scmp.eq.s32.totalorder %s28, 1
    %p219 = scmp.ne.s32.totalorder %s214, %s216
    %p220 = scmp.eq.s32.totalorder %s28, 0
    %p221 = por %p219, %p220
    %p222 = scmp.ne.s32.totalorder %s214, %s216
    %p223 = scmp.eq.s32.totalorder %s33, 1
    %p224 = por %p222, %p223
    %p225 = scmp.ne.s32.totalorder %s216, %s217
    %p226 = scmp.eq.s32.totalorder %s33, 0
    %p227 = por %p225, %p226
    %p228 = scmp.ne.s32.totalorder %s216, %s217
    %p229 = scmp.eq.s32.totalorder %s34, 1
    %p230 = por %p228, %p229
    %p232 = scmp.ne.s32.totalorder %s217, %s231
    %p233 = scmp.eq.s32.totalorder %s34, 0
    %p234 = por %p232, %p233
    %s236 = sadd.s32 %s235, 1
    %p239 = scmp.eq.s32.totalorder %s28, 1
    %p240 = scmp.ne.s32.totalorder %s235, %s237
    %p241 = scmp.eq.s32.totalorder %s28, 0
    %p242 = por %p240, %p241
    %p243 = scmp.ne.s32.totalorder %s235, %s237
    %p244 = scmp.eq.s32.totalorder %s33, 1
    %p245 = por %p243, %p244
    %p246 = scmp.ne.s32.totalorder %s237, %s238
    %p247 = scmp.eq.s32.totalorder %s33, 0
    %p248 = por %p246, %p247
    %p249 = scmp.ne.s32.totalorder %s237, %s238
    %p250 = scmp.eq.s32.totalorder %s34, 1
    %p251 = por %p249, %p250
    %p253 = scmp.ne.s32.totalorder %s238, %s252
    %p254 = scmp.eq.s32.totalorder %s34, 0
    %p255 = por %p253, %p254
    %s257 = sadd.s32 %s256, 1
    %p260 = scmp.eq.s32.totalorder %s28, 1
    %p261 = scmp.ne.s32.totalorder %s256, %s258
    %p262 = scmp.eq.s32.totalorder %s28, 0
    %p263 = por %p261, %p262
    %p264 = scmp.ne.s32.totalorder %s256, %s258
    %p265 = scmp.eq.s32.totalorder %s33, 1
    %p266 = por %p264, %p265
    %p267 = scmp.ne.s32.totalorder %s258, %s259
    %p268 = scmp.eq.s32.totalorder %s33, 0
    %p269 = por %p267, %p268
    %p270 = scmp.ne.s32.totalorder %s258, %s259
    %p271 = scmp.eq.s32.totalorder %s34, 1
    %p272 = por %p270, %p271
    %p274 = scmp.ne.s32.totalorder %s259, %s273
    %p275 = scmp.eq.s32.totalorder %s34, 0
    %p276 = por %p274, %p275
    %s278 = sadd.s32 %s277, 1
    %p281 = scmp.eq.s32.totalorder %s28, 1
    %p282 = scmp.ne.s32.totalorder %s277, %s279
    %p283 = scmp.eq.s32.totalorder %s28, 0
    %p284 = por %p282, %p283
    %p285 = scmp.ne.s32.totalorder %s277, %s279
    %p286 = scmp.eq.s32.totalorder %s33, 1
    %p287 = por %p285, %p286
    %p288 = scmp.ne.s32.totalorder %s279, %s280
    %p289 = scmp.eq.s32.totalorder %s33, 0
    %p290 = por %p288, %p289
    %p291 = scmp.ne.s32.totalorder %s279, %s280
    %p292 = scmp.eq.s32.totalorder %s34, 1
    %p293 = por %p291, %p292
    %p295 = scmp.ne.s32.totalorder %s280, %s294
    %p296 = scmp.eq.s32.totalorder %s34, 0
    %p297 = por %p295, %p296
    %s299 = sadd.s32 %s298, 1
    %p302 = scmp.eq.s32.totalorder %s28, 1
    %p303 = scmp.ne.s32.totalorder %s298, %s300
    %p304 = scmp.eq.s32.totalorder %s28, 0
    %p305 = por %p303, %p304
    %p306 = scmp.ne.s32.totalorder %s298, %s300
    %p307 = scmp.eq.s32.totalorder %s33, 1
    %p308 = por %p306, %p307
    %p309 = scmp.ne.s32.totalorder %s300, %s301
    %p310 = scmp.eq.s32.totalorder %s33, 0
    %p311 = por %p309, %p310
    %p312 = scmp.ne.s32.totalorder %s300, %s301
    %p313 = scmp.eq.s32.totalorder %s34, 1
    %p314 = por %p312, %p313
    %p316 = scmp.ne.s32.totalorder %s301, %s315
    %p317 = scmp.eq.s32.totalorder %s34, 0
    %p318 = por %p316, %p317
    %s320 = sadd.s32 %s319, 1
    %p323 = scmp.eq.s32.totalorder %s28, 1
    %p324 = scmp.ne.s32.totalorder %s319, %s321
    %p325 = scmp.eq.s32.totalorder %s28, 0
    %p326 = por %p324, %p325
    %p327 = scmp.ne.s32.totalorder %s319, %s321
    %p328 = scmp.eq.s32.totalorder %s33, 1
    %p329 = por %p327, %p328
    %p330 = scmp.ne.s32.totalorder %s321, %s322
    %p331 = scmp.eq.s32.totalorder %s33, 0
    %p332 = por %p330, %p331
    %p333 = scmp.ne.s32.totalorder %s321, %s322
    %p334 = scmp.eq.s32.totalorder %s34, 1
    %p335 = por %p333, %p334
    %p337 = scmp.ne.s32.totalorder %s322, %s336
    %p338 = scmp.eq.s32.totalorder %s34, 0
    %p339 = por %p337, %p338
    %s341 = sadd.s32 %s340, 1
    %p344 = scmp.eq.s32.totalorder %s28, 1
    %p345 = scmp.ne.s32.totalorder %s340, %s342
    %p346 = scmp.eq.s32.totalorder %s28, 0
    %p347 = por %p345, %p346
    %p348 = scmp.ne.s32.totalorder %s340, %s342
    %p349 = scmp.eq.s32.totalorder %s33, 1
    %p350 = por %p348, %p349
    %p351 = scmp.ne.s32.totalorder %s342, %s343
    %p352 = scmp.eq.s32.totalorder %s33, 0
    %p353 = por %p351, %p352
    %p354 = scmp.ne.s32.totalorder %s342, %s343
    %p355 = scmp.eq.s32.totalorder %s34, 1
    %p356 = por %p354, %p355
    %p358 = scmp.ne.s32.totalorder %s343, %s357
    %p359 = scmp.eq.s32.totalorder %s34, 0
    %p360 = por %p358, %p359
    %s362 = sadd.s32 %s361, 1
    %p365 = scmp.eq.s32.totalorder %s28, 1
    %p366 = scmp.ne.s32.totalorder %s361, %s363
    %p367 = scmp.eq.s32.totalorder %s28, 0
    %p368 = por %p366, %p367
    %p369 = scmp.ne.s32.totalorder %s361, %s363
    %p370 = scmp.eq.s32.totalorder %s33, 1
    %p371 = por %p369, %p370
    %p372 = scmp.ne.s32.totalorder %s363, %s364
    %p373 = scmp.eq.s32.totalorder %s33, 0
    %p374 = por %p372, %p373
    %p375 = scmp.ne.s32.totalorder %s363, %s364
    %p376 = scmp.eq.s32.totalorder %s34, 1
    %p377 = por %p375, %p376
    %p379 = scmp.ne.s32.totalorder %s364, %s378
    %p380 = scmp.eq.s32.totalorder %s34, 0
    %p381 = por %p379, %p380
    %s383 = sadd.s32 %s382, 1
    %p386 = scmp.eq.s32.totalorder %s28, 1
    %p387 = scmp.ne.s32.totalorder %s382, %s384
    %p388 = scmp.eq.s32.totalorder %s28, 0
    %p389 = por %p387, %p388
    %p390 = scmp.ne.s32.totalorder %s382, %s384
    %p391 = scmp.eq.s32.totalorder %s33, 1
    %p392 = por %p390, %p391
    %p393 = scmp.ne.s32.totalorder %s384, %s385
    %p394 = scmp.eq.s32.totalorder %s33, 0
    %p395 = por %p393, %p394
    %p396 = scmp.ne.s32.totalorder %s384, %s385
    %p397 = scmp.eq.s32.totalorder %s34, 1
    %p398 = por %p396, %p397
    %p400 = scmp.ne.s32.totalorder %s385, %s399
    %p401 = scmp.eq.s32.totalorder %s34, 0
    %p402 = por %p400, %p401
    %s404 = sadd.s32 %s403, 1
    %p407 = scmp.eq.s32.totalorder %s28, 1
    %p408 = scmp.ne.s32.totalorder %s403, %s405
    %p409 = scmp.eq.s32.totalorder %s28, 0
    %p410 = por %p408, %p409
    %p411 = scmp.ne.s32.totalorder %s403, %s405
    %p412 = scmp.eq.s32.totalorder %s33, 1
    %p413 = por %p411, %p412
    %p414 = scmp.ne.s32.totalorder %s405, %s406
    %p415 = scmp.eq.s32.totalorder %s33, 0
    %p416 = por %p414, %p415
    %p417 = scmp.ne.s32.totalorder %s405, %s406
    %p418 = scmp.eq.s32.totalorder %s34, 1
    %p419 = por %p417, %p418
    %p421 = scmp.ne.s32.totalorder %s406, %s420
    %p422 = scmp.eq.s32.totalorder %s34, 0
    %p423 = por %p421, %p422
    %s425 = sadd.s32 %s424, 1
    %p428 = scmp.eq.s32.totalorder %s28, 1
    %p429 = scmp.ne.s32.totalorder %s424, %s426
    %p430 = scmp.eq.s32.totalorder %s28, 0
    %p431 = por %p429, %p430
    %p432 = scmp.ne.s32.totalorder %s424, %s426
    %p433 = scmp.eq.s32.totalorder %s33, 1
    %p434 = por %p432, %p433
    %p435 = scmp.ne.s32.totalorder %s426, %s427
    %p436 = scmp.eq.s32.totalorder %s33, 0
    %p437 = por %p435, %p436
    %p438 = scmp.ne.s32.totalorder %s426, %s427
    %p439 = scmp.eq.s32.totalorder %s34, 1
    %p440 = por %p438, %p439
    %p442 = scmp.ne.s32.totalorder %s427, %s441
    %p443 = scmp.eq.s32.totalorder %s34, 0
    %p444 = por %p442, %p443
    %s446 = sadd.s32 %s445, 1
    %p449 = scmp.eq.s32.totalorder %s28, 1
    %p450 = scmp.ne.s32.totalorder %s445, %s447
    %p451 = scmp.eq.s32.totalorder %s28, 0
    %p452 = por %p450, %p451
    %p453 = scmp.ne.s32.totalorder %s445, %s447
    %p454 = scmp.eq.s32.totalorder %s33, 1
    %p455 = por %p453, %p454
    %p456 = scmp.ne.s32.totalorder %s447, %s448
    %p457 = scmp.eq.s32.totalorder %s33, 0
    %p458 = por %p456, %p457
    %p459 = scmp.ne.s32.totalorder %s447, %s448
    %p460 = scmp.eq.s32.totalorder %s34, 1
    %p461 = por %p459, %p460
    %p463 = scmp.ne.s32.totalorder %s448, %s462
    %p464 = scmp.eq.s32.totalorder %s34, 0
    %p465 = por %p463, %p464
    %s467 = sadd.s32 %s466, 1
    %p470 = scmp.eq.s32.totalorder %s28, 1
    %p471 = scmp.ne.s32.totalorder %s466, %s468
    %p472 = scmp.eq.s32.totalorder %s28, 0
    %p473 = por %p471, %p472
    %p474 = scmp.ne.s32.totalorder %s466, %s468
    %p475 = scmp.eq.s32.totalorder %s33, 1
    %p476 = por %p474, %p475
    %p477 = scmp.ne.s32.totalorder %s468, %s469
    %p478 = scmp.eq.s32.totalorder %s33, 0
    %p479 = por %p477, %p478
    %p480 = scmp.ne.s32.totalorder %s468, %s469
    %p481 = scmp.eq.s32.totalorder %s34, 1
    %p482 = por %p480, %p481
    %p484 = scmp.ne.s32.totalorder %s469, %s483
    %p485 = scmp.eq.s32.totalorder %s34, 0
    %p486 = por %p484, %p485
    %s488 = sadd.s32 %s487, 1
    %p491 = scmp.eq.s32.totalorder %s28, 1
    %p492 = scmp.ne.s32.totalorder %s487, %s489
    %p493 = scmp.eq.s32.totalorder %s28, 0
    %p494 = por %p492, %p493
    %p495 = scmp.ne.s32.totalorder %s487, %s489
    %p496 = scmp.eq.s32.totalorder %s33, 1
    %p497 = por %p495, %p496
    %p498 = scmp.ne.s32.totalorder %s489, %s490
    %p499 = scmp.eq.s32.totalorder %s33, 0
    %p500 = por %p498, %p499
    %p501 = scmp.ne.s32.totalorder %s489, %s490
    %p502 = scmp.eq.s32.totalorder %s34, 1
    %p503 = por %p501, %p502
    %p505 = scmp.ne.s32.totalorder %s490, %s504
    %p506 = scmp.eq.s32.totalorder %s34, 0
    %p507 = por %p505, %p506
    %s508 = ssub.s32 %s28, %s35
    %p509 = scmp.eq.s32.totalorder %s508, 0
    %s511 = sadd.s32 %s510, 1
    %s512 = scalar_select %p509, %s510, %s511
    %p515 = pneg %p509
    %p516 = scmp.eq.s32.totalorder %s28, 1
    %p517 = por %p515, %p516
    %p518 = scmp.ne.s32.totalorder %s510, %s513
    %p519 = scmp.eq.s32.totalorder %s28, 0
    %p520 = por %p518, %p519
    %p521 = scmp.ne.s32.totalorder %s510, %s513
    %p522 = scmp.eq.s32.totalorder %s33, 1
    %p523 = por %p521, %p522
    %p524 = scmp.ne.s32.totalorder %s513, %s514
    %p525 = scmp.eq.s32.totalorder %s33, 0
    %p526 = por %p524, %p525
    %p527 = scmp.ne.s32.totalorder %s513, %s514
    %p528 = scmp.eq.s32.totalorder %s34, 1
    %p529 = por %p527, %p528
    %p531 = scmp.ne.s32.totalorder %s514, %s530
    %p532 = scmp.eq.s32.totalorder %s34, 0
    %p533 = por %p531, %p532
    %p534 = scmp.le.s32.totalorder 1, %s28
    %p535 = scmp.lt.s32.totalorder %s28, 3
    %p536 = pnand %p534, %p535
    %p537 = pneg %p536
    // Predicated region
    $region9: #{_lambda_.9} parent=5 // pred_check
      _
    $region10: #{_lambda_.9} parent=5 // pred_check_branch
      %539 = sbr.rel (%p536) target = $region12
    $region11: #{_lambda_.9} parent=5 // pred_region
      %s540 = ssub.s32 %s28, 1
      // Predicated region
      $region13: #{_lambda_.9} parent=11 // pred_check
        %p541 = pneg %p101
      $region14: #{_lambda_.9} parent=11 // pred_check_branch
        %543 = sbr.rel (%p541) target = $region16
      $region15: #{_lambda_.9} parent=11 // pred_region
        _
      $region16: #{_lambda_.9} parent=11 // pred_fallthru
        _
      // Predicated region
      $region17: #{_lambda_.9} parent=11 // pred_check
        %p544 = pneg %p122
      $region18: #{_lambda_.9} parent=11 // pred_check_branch
        %546 = sbr.rel (%p544) target = $region20
      $region19: #{_lambda_.9} parent=11 // pred_region
        _
      $region20: #{_lambda_.9} parent=11 // pred_fallthru
        _
      // Predicated region
      $region21: #{_lambda_.9} parent=11 // pred_check
        %p547 = pneg %p143
      $region22: #{_lambda_.9} parent=11 // pred_check_branch
        %549 = sbr.rel (%p547) target = $region24
      $region23: #{_lambda_.9} parent=11 // pred_region
        _
      $region24: #{_lambda_.9} parent=11 // pred_fallthru
        _
      // Predicated region
      $region25: #{_lambda_.9} parent=11 // pred_check
        %p550 = pneg %p164
      $region26: #{_lambda_.9} parent=11 // pred_check_branch
        %552 = sbr.rel (%p550) target = $region28
      $region27: #{_lambda_.9} parent=11 // pred_region
        _
      $region28: #{_lambda_.9} parent=11 // pred_fallthru
        _
      // Predicated region
      $region29: #{_lambda_.9} parent=11 // pred_check
        %p553 = pneg %p185
      $region30: #{_lambda_.9} parent=11 // pred_check_branch
        %555 = sbr.rel (%p553) target = $region32
      $region31: #{_lambda_.9} parent=11 // pred_region
        _
      $region32: #{_lambda_.9} parent=11 // pred_fallthru
        _
      // Predicated region
      $region33: #{_lambda_.9} parent=11 // pred_check
        %p556 = pneg %p206
      $region34: #{_lambda_.9} parent=11 // pred_check_branch
        %558 = sbr.rel (%p556) target = $region36
      $region35: #{_lambda_.9} parent=11 // pred_region
        _
      $region36: #{_lambda_.9} parent=11 // pred_fallthru
        _
      // Predicated region
      $region37: #{_lambda_.9} parent=11 // pred_check
        %p559 = pneg %p227
      $region38: #{_lambda_.9} parent=11 // pred_check_branch
        %561 = sbr.rel (%p559) target = $region40
      $region39: #{_lambda_.9} parent=11 // pred_region
        _
      $region40: #{_lambda_.9} parent=11 // pred_fallthru
        _
      // Predicated region
      $region41: #{_lambda_.9} parent=11 // pred_check
        %p562 = pneg %p248
      $region42: #{_lambda_.9} parent=11 // pred_check_branch
        %564 = sbr.rel (%p562) target = $region44
      $region43: #{_lambda_.9} parent=11 // pred_region
        _
      $region44: #{_lambda_.9} parent=11 // pred_fallthru
        _
      // Predicated region
      $region45: #{_lambda_.9} parent=11 // pred_check
        %p565 = pneg %p269
      $region46: #{_lambda_.9} parent=11 // pred_check_branch
        %567 = sbr.rel (%p565) target = $region48
      $region47: #{_lambda_.9} parent=11 // pred_region
        _
      $region48: #{_lambda_.9} parent=11 // pred_fallthru
        _
      // Predicated region
      $region49: #{_lambda_.9} parent=11 // pred_check
        %p568 = pneg %p290
      $region50: #{_lambda_.9} parent=11 // pred_check_branch
        %570 = sbr.rel (%p568) target = $region52
      $region51: #{_lambda_.9} parent=11 // pred_region
        _
      $region52: #{_lambda_.9} parent=11 // pred_fallthru
        _
      // Predicated region
      $region53: #{_lambda_.9} parent=11 // pred_check
        %p571 = pneg %p311
      $region54: #{_lambda_.9} parent=11 // pred_check_branch
        %573 = sbr.rel (%p571) target = $region56
      $region55: #{_lambda_.9} parent=11 // pred_region
        _
      $region56: #{_lambda_.9} parent=11 // pred_fallthru
        _
      // Predicated region
      $region57: #{_lambda_.9} parent=11 // pred_check
        %p574 = pneg %p332
      $region58: #{_lambda_.9} parent=11 // pred_check_branch
        %576 = sbr.rel (%p574) target = $region60
      $region59: #{_lambda_.9} parent=11 // pred_region
        _
      $region60: #{_lambda_.9} parent=11 // pred_fallthru
        _
      // Predicated region
      $region61: #{_lambda_.9} parent=11 // pred_check
        %p577 = pneg %p353
      $region62: #{_lambda_.9} parent=11 // pred_check_branch
        %579 = sbr.rel (%p577) target = $region64
      $region63: #{_lambda_.9} parent=11 // pred_region
        _
      $region64: #{_lambda_.9} parent=11 // pred_fallthru
        _
      // Predicated region
      $region65: #{_lambda_.9} parent=11 // pred_check
        %p580 = pneg %p374
      $region66: #{_lambda_.9} parent=11 // pred_check_branch
        %582 = sbr.rel (%p580) target = $region68
      $region67: #{_lambda_.9} parent=11 // pred_region
        _
      $region68: #{_lambda_.9} parent=11 // pred_fallthru
        _
      // Predicated region
      $region69: #{_lambda_.9} parent=11 // pred_check
        %p583 = pneg %p395
      $region70: #{_lambda_.9} parent=11 // pred_check_branch
        %585 = sbr.rel (%p583) target = $region72
      $region71: #{_lambda_.9} parent=11 // pred_region
        _
      $region72: #{_lambda_.9} parent=11 // pred_fallthru
        _
      // Predicated region
      $region73: #{_lambda_.9} parent=11 // pred_check
        %p586 = pneg %p416
      $region74: #{_lambda_.9} parent=11 // pred_check_branch
        %588 = sbr.rel (%p586) target = $region76
      $region75: #{_lambda_.9} parent=11 // pred_region
        _
      $region76: #{_lambda_.9} parent=11 // pred_fallthru
        _
      // Predicated region
      $region77: #{_lambda_.9} parent=11 // pred_check
        %p589 = pneg %p437
      $region78: #{_lambda_.9} parent=11 // pred_check_branch
        %591 = sbr.rel (%p589) target = $region80
      $region79: #{_lambda_.9} parent=11 // pred_region
        _
      $region80: #{_lambda_.9} parent=11 // pred_fallthru
        _
      // Predicated region
      $region81: #{_lambda_.9} parent=11 // pred_check
        %p592 = pneg %p458
      $region82: #{_lambda_.9} parent=11 // pred_check_branch
        %594 = sbr.rel (%p592) target = $region84
      $region83: #{_lambda_.9} parent=11 // pred_region
        _
      $region84: #{_lambda_.9} parent=11 // pred_fallthru
        _
      // Predicated region
      $region85: #{_lambda_.9} parent=11 // pred_check
        %p595 = pneg %p479
      $region86: #{_lambda_.9} parent=11 // pred_check_branch
        %597 = sbr.rel (%p595) target = $region88
      $region87: #{_lambda_.9} parent=11 // pred_region
        _
      $region88: #{_lambda_.9} parent=11 // pred_fallthru
        _
      // Predicated region
      $region89: #{_lambda_.9} parent=11 // pred_check
        %p598 = pneg %p500
      $region90: #{_lambda_.9} parent=11 // pred_check_branch
        %600 = sbr.rel (%p598) target = $region92
      $region91: #{_lambda_.9} parent=11 // pred_region
        _
      $region92: #{_lambda_.9} parent=11 // pred_fallthru
        _
    $region12: #{_lambda_.9} parent=5 // pred_fallthru
      _
    %p601 = scmp.lt.s32.totalorder %s28, 2
    // Predicated region
    $region93: #{_lambda_.9} parent=5 // pred_check
      %p602 = pneg %p601
    $region94: #{_lambda_.9} parent=5 // pred_check_branch
      %604 = sbr.rel (%p602) target = $region96
    $region95: #{_lambda_.9} parent=5 // pred_region
      // Predicated region
      $region97: #{_lambda_.9} parent=95 // pred_check
        %p605 = pneg %p48
      $region98: #{_lambda_.9} parent=95 // pred_check_branch
        %607 = sbr.rel (%p605) target = $region100
      $region99: #{_lambda_.9} parent=95 // pred_region
        %p608 = scmp.lt.s32.totalorder %s28, 1
        %s609 = scalar_select %p608, %s28, 1
        %s610 = smul.addr %s609, 3
        %s611 = smul.addr %s610, 8
        %s612 = scalar_lea.vmem %s0, %s611
      $region100: #{_lambda_.9} parent=95 // pred_fallthru
        _
      // Predicated region
      $region101: #{_lambda_.9} parent=95 // pred_check
        %p613 = pneg %p74
      $region102: #{_lambda_.9} parent=95 // pred_check_branch
        %615 = sbr.rel (%p613) target = $region104
      $region103: #{_lambda_.9} parent=95 // pred_region
        %p616 = scmp.lt.s32.totalorder %s28, 1
        %s617 = scalar_select %p616, %s28, 1
        %s618 = smul.addr %s617, 3
        %s619 = smul.addr %s618, 8
        %s620 = scalar_lea.vmem %s1, %s619
      $region104: #{_lambda_.9} parent=95 // pred_fallthru
        _
    $region96: #{_lambda_.9} parent=5 // pred_fallthru
      _
    %p621 = scmp.le.s32.totalorder 1, %s28
    %p622 = scmp.lt.s32.totalorder %s28, 3
    %p623 = pnand %p621, %p622
    %p624 = pneg %p623
    // Predicated region
    $region105: #{_lambda_.9} parent=5 // pred_check
      _
    $region106: #{_lambda_.9} parent=5 // pred_check_branch
      %626 = sbr.rel (%p623) target = $region108
    $region107: #{_lambda_.9} parent=5 // pred_region
      %s627 = ssub.s32 %s28, 1
      %p628 = scmp.lt.s32.totalorder %s33, 1
      %s629 = scalar_select %p628, %s33, 1
      %s630 = smul.addr %s629, 3
      %s631 = smul.addr %s630, 8
      %s632 = scalar_lea.vmem %s0, %s631
      %p633 = pneg %p54
      %p634 = pneg %p51
      %p635 = scmp.lt.s32.totalorder %s33, 1
      %s636 = scalar_select %p635, %s33, 1
      %s637 = smul.addr %s636, 3
      %s638 = smul.addr %s637, 8
      %s639 = scalar_lea.vmem %s1, %s638
      %p640 = pneg %p80
      %p641 = pneg %p77
      %p642 = pneg %p101
      %p643 = pneg %p98
      %p644 = pneg %p122
      %p645 = pneg %p119
      %p646 = pneg %p143
      %p647 = pneg %p140
      %p648 = pneg %p164
      %p649 = pneg %p161
      %p650 = pneg %p185
      %p651 = pneg %p182
      %p652 = pneg %p206
      %p653 = pneg %p203
      %p654 = pneg %p227
      %p655 = pneg %p224
      %p656 = pneg %p248
      %p657 = pneg %p245
      %p658 = pneg %p269
      %p659 = pneg %p266
      %p660 = pneg %p290
      %p661 = pneg %p287
      %p662 = pneg %p311
      %p663 = pneg %p308
      %p664 = pneg %p332
      %p665 = pneg %p329
      %p666 = pneg %p353
      %p667 = pneg %p350
      %p668 = pneg %p374
      %p669 = pneg %p371
      %p670 = pneg %p395
      %p671 = pneg %p392
      %p672 = pneg %p416
      %p673 = pneg %p413
      %p674 = pneg %p437
      %p675 = pneg %p434
      %p676 = pneg %p458
      %p677 = pneg %p455
      %p678 = pneg %p479
      %p679 = pneg %p476
      %p680 = pneg %p500
      %p681 = pneg %p497
      %p682 = pneg %p526
      %p683 = pneg %p523
      %p684 = scmp.lt.s32.totalorder %s33, 1
      %s685 = scalar_select %p684, %s33, 1
      %s686 = smul.addr %s685, 3
      %s687 = smul.addr %s686, 8
      %s688 = scalar_lea.vmem %s22, %s687
      %p689 = scmp.lt.s32.totalorder %s33, 1
      %s690 = scalar_select %p689, %s33, 1
      %s691 = smul.addr %s690, 3
      %s692 = smul.addr %s691, 8
      %s693 = scalar_lea.vmem %s0, %s692
      %p694 = scmp.lt.s32.totalorder %s33, 1
      %s695 = scalar_select %p694, %s33, 1
      %s696 = smul.addr %s695, 3
      %s697 = smul.addr %s696, 8
      %s698 = scalar_lea.vmem %s1, %s697
      %p699 = scmp.lt.s32.totalorder %s33, 1
      %s700 = scalar_select %p699, %s33, 1
      %s701 = smul.addr %s700, 3
      %s702 = smul.addr %s701, 8
      %s703 = scalar_lea.vmem %s22, %s702
      %v705 = vld [vmem:[%s693] sm:$0xff]
      %v706 = vld [vmem:[%s693 + $0x8] sm:$0xff]
      %v707 = vld [vmem:[%s693 + $0x10] sm:$0x1]
      %v708 = vld [vmem:[%s698] sm:$0xff]
      %v709 = vld [vmem:[%s698 + $0x8] sm:$0xff]
      %v710 = vld [vmem:[%s698 + $0x10] sm:$0x1]
      %v711 = vpack.c.bf16 %v706, %v705
      %v712 = vpack.c.bf16 %v707, %v707
      %v713 = vld [vmem:[%s2] sm:$0xff]
      %v714 = vld [vmem:[%s2 + $0x8] sm:$0xff]
      %v715 = vld [vmem:[%s2 + $0x10] sm:$0xff]
      %v716 = vld [vmem:[%s2 + $0x18] sm:$0xff]
      %v717 = vld [vmem:[%s2 + $0x20] sm:$0xff]
      %v718 = vld [vmem:[%s2 + $0x28] sm:$0xff]
      %v719 = vld [vmem:[%s2 + $0x30] sm:$0xff]
      %v720 = vld [vmem:[%s2 + $0x38] sm:$0xff]
      %v721 = vpack.c.bf16 %v715, %v713
      %v722 = vpack.c.bf16 %v716, %v714
      %v723 = vpack.c.bf16 %v719, %v717
      %v724 = vpack.c.bf16 %v720, %v718
      %v725 = vld [vmem:[%s3] sm:$0x3]
      %v727 = vperm.slane %v725, 0
      %v728 = vperm.slane %v725, 1
      %vm731 = vcmask 261120
      %v733 = vsel %vm731, %v711, 0
      %v736 = vsel %vm731, %v712, 0
      %738 = vmatpush.bf16.msra.mxu0 0
      %739 = vmatpush.bf16.msra.mxu0 0
      %740 = vmatpush.bf16.msra.mxu0 0
      %741 = vmatpush.bf16.msra.mxu0 0
      %742 = vmatpush.bf16.msra.mxu0 0
      %743 = vmatpush.bf16.msra.mxu0 0
      %744 = vmatpush.bf16.msra.mxu0 %v723
      %745 = vmatpush.bf16.msra.mxu0 %v721
      %746 = vmatmul.bf16.gmra.mxu0 %v733
      %v747 = vpop.f32.mrf.mxu0
      %v748 = vadd.f32 %v727, %v747
      %v749 = vpop.f32.mrf.mxu0
      %v750 = vadd.f32 %v727, %v749
      %751 = vmatmul.bf16.gmra.mxu0 %v736
      %v752 = vpop.f32.mrf.mxu0
      %v753 = vadd.f32 %v727, %v752
      %v754 = vpop.f32.mrf.mxu0
      %755 = vdwg.mxu0
      %756 = vmatpush.bf16.msra.mxu0 0
      %757 = vmatpush.bf16.msra.mxu0 0
      %758 = vmatpush.bf16.msra.mxu0 0
      %759 = vmatpush.bf16.msra.mxu0 0
      %760 = vmatpush.bf16.msra.mxu0 0
      %761 = vmatpush.bf16.msra.mxu0 0
      %762 = vmatpush.bf16.msra.mxu0 %v724
      %763 = vmatpush.bf16.msra.mxu0 %v722
      %764 = vmatmul.bf16.gmra.mxu0 %v733
      %v765 = vpop.f32.mrf.mxu0
      %v766 = vadd.f32 %v728, %v765
      %v767 = vpop.f32.mrf.mxu0
      %v768 = vadd.f32 %v728, %v767
      %769 = vmatmul.bf16.gmra.mxu0 %v736
      %v770 = vpop.f32.mrf.mxu0
      %v771 = vadd.f32 %v728, %v770
      %v772 = vpop.f32.mrf.mxu0
      %773 = vdwg.mxu0
      %v774 = vld [vmem:[%s4] sm:$0xff]
      %v775 = vld [vmem:[%s4 + $0x8] sm:$0xff]
      %v776 = vld [vmem:[%s4 + $0x10] sm:$0xff]
      %v777 = vld [vmem:[%s4 + $0x18] sm:$0xff]
      %v778 = vld [vmem:[%s4 + $0x20] sm:$0xff]
      %v779 = vld [vmem:[%s4 + $0x28] sm:$0xff]
      %v780 = vld [vmem:[%s4 + $0x30] sm:$0xff]
      %v781 = vld [vmem:[%s4 + $0x38] sm:$0xff]
      %v782 = vpack.c.bf16 %v774, %v774
      %v783 = vpack.c.bf16 %v775, %v775
      %v784 = vpack.c.bf16 %v776, %v776
      %v785 = vpack.c.bf16 %v777, %v777
      %v786 = vpack.c.bf16 %v778, %v778
      %v787 = vpack.c.bf16 %v779, %v779
      %v788 = vpack.c.bf16 %v780, %v780
      %v789 = vpack.c.bf16 %v781, %v781
      %v790 = vld [vmem:[%s5] sm:$0x1]
      %v791 = vlaneseq
      %v792 = vshrl.u32 %v791, 7
      %v793 = vadd.s32 %v792, 8
      %v794 = vadd.s32 %v792, 16
      %v795 = vlaneseq
      %v796 = vand.u32 %v795, 127
      %vm797 = vcmp.gt.s32.totalorder %v796, %v792
      %vm798 = vcmp.gt.s32.totalorder %v796, %v793
      %vm799 = vcmp.gt.s32.totalorder %v796, %v794
      %v800 = vpack.c.bf16 %v750, %v748
      %v801 = vpack.c.bf16 %v753, %v753
      %805 = vrot.lane.b32.xlu0 %v748, 64
      %v806 = vpop.permute.xlu0 %805
      %807 = vrot.lane.b32.xlu0 %v750, 64
      %v808 = vpop.permute.xlu0 %807
      %809 = vrot.lane.b32.xlu0 %v753, 64
      %v810 = vpop.permute.xlu0 %809
      %814 = vxpose.xlu0.b32.start [1/16] %v806, 128
      %815 = vxpose.xlu0.b32.cont [2/16] %v808, 128
      %816 = vxpose.xlu0.b32.cont [3/16] %v810, 128
      %817 = vxpose.xlu0.b32.cont [4/16] 0.0, 128
      %818 = vxpose.xlu0.b32.cont [5/16] 0.0, 128
      %819 = vxpose.xlu0.b32.cont [6/16] 0.0, 128
      %820 = vxpose.xlu0.b32.cont [7/16] 0.0, 128
      %821 = vxpose.xlu0.b32.cont [8/16] 0.0, 128
      %822 = vxpose.xlu0.b32.cont [9/16] 0.0, 128
      %823 = vxpose.xlu0.b32.cont [10/16] 0.0, 128
      %824 = vxpose.xlu0.b32.cont [11/16] 0.0, 128
      %825 = vxpose.xlu0.b32.cont [12/16] 0.0, 128
      %826 = vxpose.xlu0.b32.cont [13/16] 0.0, 128
      %827 = vxpose.xlu0.b32.cont [14/16] 0.0, 128
      %828 = vxpose.xlu0.b32.cont [15/16] 0.0, 128
      %829 = vxpose.xlu0.b32.end [16/16] 0.0, 128
      %v830 = vpop.trf.xlu0
      %v831 = vpop.trf.xlu0
      %v832 = vpop.trf.xlu0
      %v833 = vpop.trf.xlu0
      %v834 = vpop.trf.xlu0
      %v835 = vpop.trf.xlu0
      %v836 = vpop.trf.xlu0
      %v837 = vpop.trf.xlu0
      %v838 = vpop.trf.xlu0
      %v839 = vpop.trf.xlu0
      %v840 = vpop.trf.xlu0
      %v841 = vpop.trf.xlu0
      %v842 = vpop.trf.xlu0
      %v843 = vpop.trf.xlu0
      %v844 = vpop.trf.xlu0
      %v845 = vpop.trf.xlu0
      %v846 = vpack.c.bf16 %v831, %v830
      %vm847 = vcmask 130048
      %v849 = vsel %vm847, %v800, 0
      %v852 = vsel %vm847, %v801, 0
      %854 = vmatpush.bf16.msra.mxu0 0
      %855 = vmatpush.bf16.msra.mxu0 0
      %856 = vmatpush.bf16.msra.mxu0 0
      %857 = vmatpush.bf16.msra.mxu0 0
      %858 = vmatpush.bf16.msra.mxu0 0
      %859 = vmatpush.bf16.msra.mxu0 0
      %860 = vmatpush.bf16.msra.mxu0 0
      %861 = vmatpush.bf16.msra.mxu0 %v846
      %862 = vmatmul.bf16.gmra.mxu0 %v849
      %v863 = vpop.f32.mrf.mxu0
      %v864 = vadd.f32 0.0, %v863
      %v865 = vpop.f32.mrf.mxu0
      %v866 = vadd.f32 0.0, %v865
      %867 = vmatmul.bf16.gmra.mxu0 %v852
      %v868 = vpop.f32.mrf.mxu0
      %v869 = vadd.f32 0.0, %v868
      %v870 = vpop.f32.mrf.mxu0
      %871 = vdwg.mxu0
      %v872 = vmul.f32 %v864, 0.25
      %v873 = vmul.f32 %v866, 0.25
      %v874 = vmul.f32 %v869, 0.25
      %v875 = vsel %vm797, -1e+09, %v872
      %v876 = vsel %vm798, -1e+09, %v873
      %v877 = vsel %vm799, -1e+09, %v874
      %vm878 = vcmask 138240
      %v879 = vsel %vm878, %v875, -inf
      %880 = vmax.xlane.f32.xlu0 %v879
      %v881 = vpop.xlane.xlu0 %880
      %v882 = vsel %vm878, %v876, -inf
      %883 = vmax.xlane.f32.xlu0 %v882
      %v884 = vpop.xlane.xlu0 %883
      %vm885 = vcmask 131072
      %v886 = vsel %vm885, %v877, -inf
      %887 = vmax.xlane.f32.xlu0 %v886
      %v888 = vpop.xlane.xlu0 %887
      %v889 = vsub.f32 %v875, %v881
      %v890 = vsub.f32 %v876, %v884
      %v891 = vsub.f32 %v877, %v888
      %v892 = vmul.f32 %v889, 1.442695
      %v893 = vpow.pop %v892
      %v894 = vmul.f32 %v890, 1.442695
      %v895 = vpow.pop %v894
      %v896 = vmul.f32 %v891, 1.442695
      %v897 = vpow.pop %v896
      %v898 = vsel %vm878, %v893, 0.0
      %899 = vadd.xlane.f32.xlu0 %v898
      %v900 = vpop.xlane.xlu0 %899
      %v901 = vsel %vm878, %v895, 0.0
      %902 = vadd.xlane.f32.xlu0 %v901
      %v903 = vpop.xlane.xlu0 %902
      %v904 = vsel %vm885, %v897, 0.0
      %905 = vadd.xlane.f32.xlu0 %v904
      %v906 = vpop.xlane.xlu0 %905
      %v907 = vrcp.pop %v900
      %v908 = vrcp.pop %v903
      %v909 = vrcp.pop %v906
      %v910 = vmul.f32 %v893, %v907
      %v911 = vmul.f32 %v895, %v908
      %v912 = vmul.f32 %v897, %v909
      %v913 = vpack.c.bf16 %v911, %v910
      %v914 = vpack.c.bf16 %v912, %v912
      %v915 = vpack.c.bf16 %v768, %v766
      %v916 = vpack.c.bf16 %v771, %v771
      %v918 = vsel %vm878, %v913, 0
      %v921 = vsel %vm878, %v914, 0
      %vm923 = vcmask 1040384
      %v924 = vsel 0, 4294967295, 65535
      %v925 = vsel %vm923, %v924, 0
      %v927 = vand.u32 %v916, %v925
      %929 = vmatpush.bf16.msra.mxu0 0
      %930 = vmatpush.bf16.msra.mxu0 0
      %931 = vmatpush.bf16.msra.mxu0 0
      %932 = vmatpush.bf16.msra.mxu0 0
      %933 = vmatpush.bf16.msra.mxu0 0
      %934 = vmatpush.bf16.msra.mxu0 0
      %935 = vmatpush.bf16.msra.mxu0 %v927
      %936 = vmatpush.bf16.msra.mxu0 %v915
      %937 = vmatmul.bf16.gmra.mxu0 %v918
      %v938 = vpop.f32.mrf.mxu0
      %v939 = vadd.f32 0.0, %v938
      %v940 = vpop.f32.mrf.mxu0
      %v941 = vadd.f32 0.0, %v940
      %942 = vmatmul.bf16.gmra.mxu0 %v921
      %v943 = vpop.f32.mrf.mxu0
      %v944 = vadd.f32 0.0, %v943
      %v945 = vpop.f32.mrf.mxu0
      %946 = vdwg.mxu0
      %v947 = vpack.c.bf16 %v941, %v939
      %v948 = vpack.c.bf16 %v944, %v944
      %949 = vrot.lane.b32.xlu0 %v748, 48
      %v950 = vpop.permute.xlu0 %949
      %951 = vrot.lane.b32.xlu0 %v750, 48
      %v952 = vpop.permute.xlu0 %951
      %953 = vrot.lane.b32.xlu0 %v753, 48
      %v954 = vpop.permute.xlu0 %953
      %958 = vxpose.xlu0.b32.start [1/16] %v950, 128
      %959 = vxpose.xlu0.b32.cont [2/16] %v952, 128
      %960 = vxpose.xlu0.b32.cont [3/16] %v954, 128
      %961 = vxpose.xlu0.b32.cont [4/16] 0.0, 128
      %962 = vxpose.xlu0.b32.cont [5/16] 0.0, 128
      %963 = vxpose.xlu0.b32.cont [6/16] 0.0, 128
      %964 = vxpose.xlu0.b32.cont [7/16] 0.0, 128
      %965 = vxpose.xlu0.b32.cont [8/16] 0.0, 128
      %966 = vxpose.xlu0.b32.cont [9/16] 0.0, 128
      %967 = vxpose.xlu0.b32.cont [10/16] 0.0, 128
      %968 = vxpose.xlu0.b32.cont [11/16] 0.0, 128
      %969 = vxpose.xlu0.b32.cont [12/16] 0.0, 128
      %970 = vxpose.xlu0.b32.cont [13/16] 0.0, 128
      %971 = vxpose.xlu0.b32.cont [14/16] 0.0, 128
      %972 = vxpose.xlu0.b32.cont [15/16] 0.0, 128
      %973 = vxpose.xlu0.b32.end [16/16] 0.0, 128
      %v974 = vpop.trf.xlu0
      %v975 = vpop.trf.xlu0
      %v976 = vpop.trf.xlu0
      %v977 = vpop.trf.xlu0
      %v978 = vpop.trf.xlu0
      %v979 = vpop.trf.xlu0
      %v980 = vpop.trf.xlu0
      %v981 = vpop.trf.xlu0
      %v982 = vpop.trf.xlu0
      %v983 = vpop.trf.xlu0
      %v984 = vpop.trf.xlu0
      %v985 = vpop.trf.xlu0
      %v986 = vpop.trf.xlu0
      %v987 = vpop.trf.xlu0
      %v988 = vpop.trf.xlu0
      %v989 = vpop.trf.xlu0
      %v990 = vpack.c.bf16 %v975, %v974
      %993 = vrot.lane.b32.xlu0 %v800, 112
      %v994 = vpop.permute.xlu0 %993
      %995 = vrot.lane.b32.xlu0 %v801, 112
      %v996 = vpop.permute.xlu0 %995
      %v998 = vsel %vm847, %v994, 0
      %v1001 = vsel %vm847, %v996, 0
      %1003 = vmatpush.bf16.msra.mxu0 0
      %1004 = vmatpush.bf16.msra.mxu0 0
      %1005 = vmatpush.bf16.msra.mxu0 0
      %1006 = vmatpush.bf16.msra.mxu0 0
      %1007 = vmatpush.bf16.msra.mxu0 0
      %1008 = vmatpush.bf16.msra.mxu0 0
      %1009 = vmatpush.bf16.msra.mxu0 0
      %1010 = vmatpush.bf16.msra.mxu0 %v990
      %1011 = vmatmul.bf16.gmra.mxu0 %v998
      %v1012 = vpop.f32.mrf.mxu0
      %v1013 = vadd.f32 0.0, %v1012
      %v1014 = vpop.f32.mrf.mxu0
      %v1015 = vadd.f32 0.0, %v1014
      %1016 = vmatmul.bf16.gmra.mxu0 %v1001
      %v1017 = vpop.f32.mrf.mxu0
      %v1018 = vadd.f32 0.0, %v1017
      %v1019 = vpop.f32.mrf.mxu0
      %1020 = vdwg.mxu0
      %v1021 = vmul.f32 %v1013, 0.25
      %v1022 = vmul.f32 %v1015, 0.25
      %v1023 = vmul.f32 %v1018, 0.25
      %v1024 = vsel %vm797, -1e+09, %v1021
      %v1025 = vsel %vm798, -1e+09, %v1022
      %v1026 = vsel %vm799, -1e+09, %v1023
      %v1027 = vsel %vm878, %v1024, -inf
      %1028 = vmax.xlane.f32.xlu0 %v1027
      %v1029 = vpop.xlane.xlu0 %1028
      %v1030 = vsel %vm878, %v1025, -inf
      %1031 = vmax.xlane.f32.xlu0 %v1030
      %v1032 = vpop.xlane.xlu0 %1031
      %v1033 = vsel %vm885, %v1026, -inf
      %1034 = vmax.xlane.f32.xlu0 %v1033
      %v1035 = vpop.xlane.xlu0 %1034
      %v1036 = vsub.f32 %v1024, %v1029
      %v1037 = vsub.f32 %v1025, %v1032
      %v1038 = vsub.f32 %v1026, %v1035
      %v1039 = vmul.f32 %v1036, 1.442695
      %v1040 = vpow.pop %v1039
      %v1041 = vmul.f32 %v1037, 1.442695
      %v1042 = vpow.pop %v1041
      %v1043 = vmul.f32 %v1038, 1.442695
      %v1044 = vpow.pop %v1043
      %v1045 = vsel %vm878, %v1040, 0.0
      %1046 = vadd.xlane.f32.xlu0 %v1045
      %v1047 = vpop.xlane.xlu0 %1046
      %v1048 = vsel %vm878, %v1042, 0.0
      %1049 = vadd.xlane.f32.xlu0 %v1048
      %v1050 = vpop.xlane.xlu0 %1049
      %v1051 = vsel %vm885, %v1044, 0.0
      %1052 = vadd.xlane.f32.xlu0 %v1051
      %v1053 = vpop.xlane.xlu0 %1052
      %v1054 = vrcp.pop %v1047
      %v1055 = vrcp.pop %v1050
      %v1056 = vrcp.pop %v1053
      %v1057 = vmul.f32 %v1040, %v1054
      %v1058 = vmul.f32 %v1042, %v1055
      %v1059 = vmul.f32 %v1044, %v1056
      %v1060 = vpack.c.bf16 %v1058, %v1057
      %v1061 = vpack.c.bf16 %v1059, %v1059
      %1064 = vrot.lane.b32.xlu0 %v915, 112
      %v1065 = vpop.permute.xlu0 %1064
      %1066 = vrot.lane.b32.xlu0 %v916, 112
      %v1067 = vpop.permute.xlu0 %1066
      %v1070 = vsel %vm878, %v1060, 0
      %v1073 = vsel %vm878, %v1061, 0
      %v1076 = vand.u32 %v1067, %v925
      %1078 = vmatpush.bf16.msra.mxu0 0
      %1079 = vmatpush.bf16.msra.mxu0 0
      %1080 = vmatpush.bf16.msra.mxu0 0
      %1081 = vmatpush.bf16.msra.mxu0 0
      %1082 = vmatpush.bf16.msra.mxu0 0
      %1083 = vmatpush.bf16.msra.mxu0 0
      %1084 = vmatpush.bf16.msra.mxu0 %v1076
      %1085 = vmatpush.bf16.msra.mxu0 %v1065
      %1086 = vmatmul.bf16.gmra.mxu0 %v1070
      %v1087 = vpop.f32.mrf.mxu0
      %v1088 = vadd.f32 0.0, %v1087
      %v1089 = vpop.f32.mrf.mxu0
      %v1090 = vadd.f32 0.0, %v1089
      %1091 = vmatmul.bf16.gmra.mxu0 %v1073
      %v1092 = vpop.f32.mrf.mxu0
      %v1093 = vadd.f32 0.0, %v1092
      %v1094 = vpop.f32.mrf.mxu0
      %1095 = vdwg.mxu0
      %v1096 = vpack.c.bf16 %v1090, %v1088
      %v1097 = vpack.c.bf16 %v1093, %v1093
      %v1100 = vunpack.c.l.b16 %v784
      %v1101 = vunpack.c.l.b16 %v785
      %v1102 = vpack.c.b16 %v1101, %v1100
      %v1105 = vsel %vm847, %v1096, 0
      %v1108 = vsel %vm847, %v1097, 0
      %1110 = vmatpush.bf16.msra.mxu0 0
      %1111 = vmatpush.bf16.msra.mxu0 0
      %1112 = vmatpush.bf16.msra.mxu0 0
      %1113 = vmatpush.bf16.msra.mxu0 0
      %1114 = vmatpush.bf16.msra.mxu0 0
      %1115 = vmatpush.bf16.msra.mxu0 0
      %1116 = vmatpush.bf16.msra.mxu0 0
      %1117 = vmatpush.bf16.msra.mxu0 %v1102
      %1118 = vmatmul.bf16.gmra.mxu0 %v1105
      %v1119 = vpop.f32.mrf.mxu0
      %v1120 = vadd.f32 0.0, %v1119
      %v1121 = vpop.f32.mrf.mxu0
      %v1122 = vadd.f32 0.0, %v1121
      %1123 = vmatmul.bf16.gmra.mxu0 %v1108
      %v1124 = vpop.f32.mrf.mxu0
      %v1125 = vadd.f32 0.0, %v1124
      %v1126 = vpop.f32.mrf.mxu0
      %1127 = vdwg.mxu0
      %v1130 = vunpack.c.l.b16 %v782
      %v1131 = vunpack.c.l.b16 %v783
      %v1132 = vpack.c.b16 %v1131, %v1130
      %v1135 = vsel %vm847, %v947, 0
      %v1138 = vsel %vm847, %v948, 0
      %1140 = vmatpush.bf16.msra.mxu0 0
      %1141 = vmatpush.bf16.msra.mxu0 0
      %1142 = vmatpush.bf16.msra.mxu0 0
      %1143 = vmatpush.bf16.msra.mxu0 0
      %1144 = vmatpush.bf16.msra.mxu0 0
      %1145 = vmatpush.bf16.msra.mxu0 0
      %1146 = vmatpush.bf16.msra.mxu0 0
      %1147 = vmatpush.bf16.msra.mxu0 %v1132
      %1148 = vmatmul.bf16.gmra.mxu0 %v1135
      %v1149 = vpop.f32.mrf.mxu0
      %v1150 = vadd.f32 %v1120, %v1149
      %v1151 = vpop.f32.mrf.mxu0
      %v1152 = vadd.f32 %v1122, %v1151
      %1153 = vmatmul.bf16.gmra.mxu0 %v1138
      %v1154 = vpop.f32.mrf.mxu0
      %v1155 = vadd.f32 %v1125, %v1154
      %v1156 = vpop.f32.mrf.mxu0
      %1157 = vdwg.mxu0
      %1158 = vrot.lane.b32.xlu0 %v748, 32
      %v1159 = vpop.permute.xlu0 %1158
      %1160 = vrot.lane.b32.xlu0 %v750, 32
      %v1161 = vpop.permute.xlu0 %1160
      %1162 = vrot.lane.b32.xlu0 %v753, 32
      %v1163 = vpop.permute.xlu0 %1162
      %1167 = vxpose.xlu0.b32.start [1/16] %v1159, 128
      %1168 = vxpose.xlu0.b32.cont [2/16] %v1161, 128
      %1169 = vxpose.xlu0.b32.cont [3/16] %v1163, 128
      %1170 = vxpose.xlu0.b32.cont [4/16] 0.0, 128
      %1171 = vxpose.xlu0.b32.cont [5/16] 0.0, 128
      %1172 = vxpose.xlu0.b32.cont [6/16] 0.0, 128
      %1173 = vxpose.xlu0.b32.cont [7/16] 0.0, 128
      %1174 = vxpose.xlu0.b32.cont [8/16] 0.0, 128
      %1175 = vxpose.xlu0.b32.cont [9/16] 0.0, 128
      %1176 = vxpose.xlu0.b32.cont [10/16] 0.0, 128
      %1177 = vxpose.xlu0.b32.cont [11/16] 0.0, 128
      %1178 = vxpose.xlu0.b32.cont [12/16] 0.0, 128
      %1179 = vxpose.xlu0.b32.cont [13/16] 0.0, 128
      %1180 = vxpose.xlu0.b32.cont [14/16] 0.0, 128
      %1181 = vxpose.xlu0.b32.cont [15/16] 0.0, 128
      %1182 = vxpose.xlu0.b32.end [16/16] 0.0, 128
      %v1183 = vpop.trf.xlu0
      %v1184 = vpop.trf.xlu0
      %v1185 = vpop.trf.xlu0
      %v1186 = vpop.trf.xlu0
      %v1187 = vpop.trf.xlu0
      %v1188 = vpop.trf.xlu0
      %v1189 = vpop.trf.xlu0
      %v1190 = vpop.trf.xlu0
      %v1191 = vpop.trf.xlu0
      %v1192 = vpop.trf.xlu0
      %v1193 = vpop.trf.xlu0
      %v1194 = vpop.trf.xlu0
      %v1195 = vpop.trf.xlu0
      %v1196 = vpop.trf.xlu0
      %v1197 = vpop.trf.xlu0
      %v1198 = vpop.trf.xlu0
      %v1199 = vpack.c.bf16 %v1184, %v1183
      %1200 = vrot.lane.b32.xlu0 %v800, 96
      %v1201 = vpop.permute.xlu0 %1200
      %1202 = vrot.lane.b32.xlu0 %v801, 96
      %v1203 = vpop.permute.xlu0 %1202
      %v1205 = vsel %vm847, %v1201, 0
      %v1208 = vsel %vm847, %v1203, 0
      %1210 = vmatpush.bf16.msra.mxu0 0
      %1211 = vmatpush.bf16.msra.mxu0 0
      %1212 = vmatpush.bf16.msra.mxu0 0
      %1213 = vmatpush.bf16.msra.mxu0 0
      %1214 = vmatpush.bf16.msra.mxu0 0
      %1215 = vmatpush.bf16.msra.mxu0 0
      %1216 = vmatpush.bf16.msra.mxu0 0
      %1217 = vmatpush.bf16.msra.mxu0 %v1199
      %1218 = vmatmul.bf16.gmra.mxu0 %v1205
      %v1219 = vpop.f32.mrf.mxu0
      %v1220 = vadd.f32 0.0, %v1219
      %v1221 = vpop.f32.mrf.mxu0
      %v1222 = vadd.f32 0.0, %v1221
      %1223 = vmatmul.bf16.gmra.mxu0 %v1208
      %v1224 = vpop.f32.mrf.mxu0
      %v1225 = vadd.f32 0.0, %v1224
      %v1226 = vpop.f32.mrf.mxu0
      %1227 = vdwg.mxu0
      %v1228 = vmul.f32 %v1220, 0.25
      %v1229 = vmul.f32 %v1222, 0.25
      %v1230 = vmul.f32 %v1225, 0.25
      %v1231 = vsel %vm797, -1e+09, %v1228
      %v1232 = vsel %vm798, -1e+09, %v1229
      %v1233 = vsel %vm799, -1e+09, %v1230
      %v1234 = vsel %vm878, %v1231, -inf
      %1235 = vmax.xlane.f32.xlu0 %v1234
      %v1236 = vpop.xlane.xlu0 %1235
      %v1237 = vsel %vm878, %v1232, -inf
      %1238 = vmax.xlane.f32.xlu0 %v1237
      %v1239 = vpop.xlane.xlu0 %1238
      %v1240 = vsel %vm885, %v1233, -inf
      %1241 = vmax.xlane.f32.xlu0 %v1240
      %v1242 = vpop.xlane.xlu0 %1241
      %v1243 = vsub.f32 %v1231, %v1236
      %v1244 = vsub.f32 %v1232, %v1239
      %v1245 = vsub.f32 %v1233, %v1242
      %v1246 = vmul.f32 %v1243, 1.442695
      %v1247 = vpow.pop %v1246
      %v1248 = vmul.f32 %v1244, 1.442695
      %v1249 = vpow.pop %v1248
      %v1250 = vmul.f32 %v1245, 1.442695
      %v1251 = vpow.pop %v1250
      %v1252 = vsel %vm878, %v1247, 0.0
      %1253 = vadd.xlane.f32.xlu0 %v1252
      %v1254 = vpop.xlane.xlu0 %1253
      %v1255 = vsel %vm878, %v1249, 0.0
      %1256 = vadd.xlane.f32.xlu0 %v1255
      %v1257 = vpop.xlane.xlu0 %1256
      %v1258 = vsel %vm885, %v1251, 0.0
      %1259 = vadd.xlane.f32.xlu0 %v1258
      %v1260 = vpop.xlane.xlu0 %1259
      %v1261 = vrcp.pop %v1254
      %v1262 = vrcp.pop %v1257
      %v1263 = vrcp.pop %v1260
      %v1264 = vmul.f32 %v1247, %v1261
      %v1265 = vmul.f32 %v1249, %v1262
      %v1266 = vmul.f32 %v1251, %v1263
      %v1267 = vpack.c.bf16 %v1265, %v1264
      %v1268 = vpack.c.bf16 %v1266, %v1266
      %1269 = vrot.lane.b32.xlu0 %v915, 96
      %v1270 = vpop.permute.xlu0 %1269
      %1271 = vrot.lane.b32.xlu0 %v916, 96
      %v1272 = vpop.permute.xlu0 %1271
      %v1275 = vsel %vm878, %v1267, 0
      %v1278 = vsel %vm878, %v1268, 0
      %v1281 = vand.u32 %v1272, %v925
      %1283 = vmatpush.bf16.msra.mxu0 0
      %1284 = vmatpush.bf16.msra.mxu0 0
      %1285 = vmatpush.bf16.msra.mxu0 0
      %1286 = vmatpush.bf16.msra.mxu0 0
      %1287 = vmatpush.bf16.msra.mxu0 0
      %1288 = vmatpush.bf16.msra.mxu0 0
      %1289 = vmatpush.bf16.msra.mxu0 %v1281
      %1290 = vmatpush.bf16.msra.mxu0 %v1270
      %1291 = vmatmul.bf16.gmra.mxu0 %v1275
      %v1292 = vpop.f32.mrf.mxu0
      %v1293 = vadd.f32 0.0, %v1292
      %v1294 = vpop.f32.mrf.mxu0
      %v1295 = vadd.f32 0.0, %v1294
      %1296 = vmatmul.bf16.gmra.mxu0 %v1278
      %v1297 = vpop.f32.mrf.mxu0
      %v1298 = vadd.f32 0.0, %v1297
      %v1299 = vpop.f32.mrf.mxu0
      %1300 = vdwg.mxu0
      %v1301 = vpack.c.bf16 %v1295, %v1293
      %v1302 = vpack.c.bf16 %v1298, %v1298
      %v1305 = vunpack.c.l.b16 %v786
      %v1306 = vunpack.c.l.b16 %v787
      %v1307 = vpack.c.b16 %v1306, %v1305
      %v1310 = vsel %vm847, %v1301, 0
      %v1313 = vsel %vm847, %v1302, 0
      %1315 = vmatpush.bf16.msra.mxu0 0
      %1316 = vmatpush.bf16.msra.mxu0 0
      %1317 = vmatpush.bf16.msra.mxu0 0
      %1318 = vmatpush.bf16.msra.mxu0 0
      %1319 = vmatpush.bf16.msra.mxu0 0
      %1320 = vmatpush.bf16.msra.mxu0 0
      %1321 = vmatpush.bf16.msra.mxu0 0
      %1322 = vmatpush.bf16.msra.mxu0 %v1307
      %1323 = vmatmul.bf16.gmra.mxu0 %v1310
      %v1324 = vpop.f32.mrf.mxu0
      %v1325 = vadd.f32 0.0, %v1324
      %v1326 = vpop.f32.mrf.mxu0
      %v1327 = vadd.f32 0.0, %v1326
      %1328 = vmatmul.bf16.gmra.mxu0 %v1313
      %v1329 = vpop.f32.mrf.mxu0
      %v1330 = vadd.f32 0.0, %v1329
      %v1331 = vpop.f32.mrf.mxu0
      %1332 = vdwg.mxu0
      %v1333 = vadd.f32 %v1150, %v1325
      %v1334 = vadd.f32 %v1152, %v1327
      %v1335 = vadd.f32 %v1155, %v1330
      %1336 = vrot.lane.b32.xlu0 %v748, 16
      %v1337 = vpop.permute.xlu0 %1336
      %1338 = vrot.lane.b32.xlu0 %v750, 16
      %v1339 = vpop.permute.xlu0 %1338
      %1340 = vrot.lane.b32.xlu0 %v753, 16
      %v1341 = vpop.permute.xlu0 %1340
      %1345 = vxpose.xlu0.b32.start [1/16] %v1337, 128
      %1346 = vxpose.xlu0.b32.cont [2/16] %v1339, 128
      %1347 = vxpose.xlu0.b32.cont [3/16] %v1341, 128
      %1348 = vxpose.xlu0.b32.cont [4/16] 0.0, 128
      %1349 = vxpose.xlu0.b32.cont [5/16] 0.0, 128
      %1350 = vxpose.xlu0.b32.cont [6/16] 0.0, 128
      %1351 = vxpose.xlu0.b32.cont [7/16] 0.0, 128
      %1352 = vxpose.xlu0.b32.cont [8/16] 0.0, 128
      %1353 = vxpose.xlu0.b32.cont [9/16] 0.0, 128
      %1354 = vxpose.xlu0.b32.cont [10/16] 0.0, 128
      %1355 = vxpose.xlu0.b32.cont [11/16] 0.0, 128
      %1356 = vxpose.xlu0.b32.cont [12/16] 0.0, 128
      %1357 = vxpose.xlu0.b32.cont [13/16] 0.0, 128
      %1358 = vxpose.xlu0.b32.cont [14/16] 0.0, 128
      %1359 = vxpose.xlu0.b32.cont [15/16] 0.0, 128
      %1360 = vxpose.xlu0.b32.end [16/16] 0.0, 128
      %v1361 = vpop.trf.xlu0
      %v1362 = vpop.trf.xlu0
      %v1363 = vpop.trf.xlu0
      %v1364 = vpop.trf.xlu0
      %v1365 = vpop.trf.xlu0
      %v1366 = vpop.trf.xlu0
      %v1367 = vpop.trf.xlu0
      %v1368 = vpop.trf.xlu0
      %v1369 = vpop.trf.xlu0
      %v1370 = vpop.trf.xlu0
      %v1371 = vpop.trf.xlu0
      %v1372 = vpop.trf.xlu0
      %v1373 = vpop.trf.xlu0
      %v1374 = vpop.trf.xlu0
      %v1375 = vpop.trf.xlu0
      %v1376 = vpop.trf.xlu0
      %v1377 = vpack.c.bf16 %v1362, %v1361
      %1378 = vrot.lane.b32.xlu0 %v800, 80
      %v1379 = vpop.permute.xlu0 %1378
      %1380 = vrot.lane.b32.xlu0 %v801, 80
      %v1381 = vpop.permute.xlu0 %1380
      %v1383 = vsel %vm847, %v1379, 0
      %v1386 = vsel %vm847, %v1381, 0
      %1388 = vmatpush.bf16.msra.mxu0 0
      %1389 = vmatpush.bf16.msra.mxu0 0
      %1390 = vmatpush.bf16.msra.mxu0 0
      %1391 = vmatpush.bf16.msra.mxu0 0
      %1392 = vmatpush.bf16.msra.mxu0 0
      %1393 = vmatpush.bf16.msra.mxu0 0
      %1394 = vmatpush.bf16.msra.mxu0 0
      %1395 = vmatpush.bf16.msra.mxu0 %v1377
      %1396 = vmatmul.bf16.gmra.mxu0 %v1383
      %v1397 = vpop.f32.mrf.mxu0
      %v1398 = vadd.f32 0.0, %v1397
      %v1399 = vpop.f32.mrf.mxu0
      %v1400 = vadd.f32 0.0, %v1399
      %1401 = vmatmul.bf16.gmra.mxu0 %v1386
      %v1402 = vpop.f32.mrf.mxu0
      %v1403 = vadd.f32 0.0, %v1402
      %v1404 = vpop.f32.mrf.mxu0
      %1405 = vdwg.mxu0
      %v1406 = vmul.f32 %v1398, 0.25
      %v1407 = vmul.f32 %v1400, 0.25
      %v1408 = vmul.f32 %v1403, 0.25
      %v1409 = vsel %vm797, -1e+09, %v1406
      %v1410 = vsel %vm798, -1e+09, %v1407
      %v1411 = vsel %vm799, -1e+09, %v1408
      %v1412 = vsel %vm878, %v1409, -inf
      %1413 = vmax.xlane.f32.xlu0 %v1412
      %v1414 = vpop.xlane.xlu0 %1413
      %v1415 = vsel %vm878, %v1410, -inf
      %1416 = vmax.xlane.f32.xlu0 %v1415
      %v1417 = vpop.xlane.xlu0 %1416
      %v1418 = vsel %vm885, %v1411, -inf
      %1419 = vmax.xlane.f32.xlu0 %v1418
      %v1420 = vpop.xlane.xlu0 %1419
      %v1421 = vsub.f32 %v1409, %v1414
      %v1422 = vsub.f32 %v1410, %v1417
      %v1423 = vsub.f32 %v1411, %v1420
      %v1424 = vmul.f32 %v1421, 1.442695
      %v1425 = vpow.pop %v1424
      %v1426 = vmul.f32 %v1422, 1.442695
      %v1427 = vpow.pop %v1426
      %v1428 = vmul.f32 %v1423, 1.442695
      %v1429 = vpow.pop %v1428
      %v1430 = vsel %vm878, %v1425, 0.0
      %1431 = vadd.xlane.f32.xlu0 %v1430
      %v1432 = vpop.xlane.xlu0 %1431
      %v1433 = vsel %vm878, %v1427, 0.0
      %1434 = vadd.xlane.f32.xlu0 %v1433
      %v1435 = vpop.xlane.xlu0 %1434
      %v1436 = vsel %vm885, %v1429, 0.0
      %1437 = vadd.xlane.f32.xlu0 %v1436
      %v1438 = vpop.xlane.xlu0 %1437
      %v1439 = vrcp.pop %v1432
      %v1440 = vrcp.pop %v1435
      %v1441 = vrcp.pop %v1438
      %v1442 = vmul.f32 %v1425, %v1439
      %v1443 = vmul.f32 %v1427, %v1440
      %v1444 = vmul.f32 %v1429, %v1441
      %v1445 = vpack.c.bf16 %v1443, %v1442
      %v1446 = vpack.c.bf16 %v1444, %v1444
      %1447 = vrot.lane.b32.xlu0 %v915, 80
      %v1448 = vpop.permute.xlu0 %1447
      %1449 = vrot.lane.b32.xlu0 %v916, 80
      %v1450 = vpop.permute.xlu0 %1449
      %v1453 = vsel %vm878, %v1445, 0
      %v1456 = vsel %vm878, %v1446, 0
      %v1459 = vand.u32 %v1450, %v925
      %1461 = vmatpush.bf16.msra.mxu0 0
      %1462 = vmatpush.bf16.msra.mxu0 0
      %1463 = vmatpush.bf16.msra.mxu0 0
      %1464 = vmatpush.bf16.msra.mxu0 0
      %1465 = vmatpush.bf16.msra.mxu0 0
      %1466 = vmatpush.bf16.msra.mxu0 0
      %1467 = vmatpush.bf16.msra.mxu0 %v1459
      %1468 = vmatpush.bf16.msra.mxu0 %v1448
      %1469 = vmatmul.bf16.gmra.mxu0 %v1453
      %v1470 = vpop.f32.mrf.mxu0
      %v1471 = vadd.f32 0.0, %v1470
      %v1472 = vpop.f32.mrf.mxu0
      %v1473 = vadd.f32 0.0, %v1472
      %1474 = vmatmul.bf16.gmra.mxu0 %v1456
      %v1475 = vpop.f32.mrf.mxu0
      %v1476 = vadd.f32 0.0, %v1475
      %v1477 = vpop.f32.mrf.mxu0
      %1478 = vdwg.mxu0
      %v1479 = vpack.c.bf16 %v1473, %v1471
      %v1480 = vpack.c.bf16 %v1476, %v1476
      %v1483 = vunpack.c.l.b16 %v788
      %v1484 = vunpack.c.l.b16 %v789
      %v1485 = vpack.c.b16 %v1484, %v1483
      %v1488 = vsel %vm847, %v1479, 0
      %v1491 = vsel %vm847, %v1480, 0
      %1493 = vmatpush.bf16.msra.mxu0 0
      %1494 = vmatpush.bf16.msra.mxu0 0
      %1495 = vmatpush.bf16.msra.mxu0 0
      %1496 = vmatpush.bf16.msra.mxu0 0
      %1497 = vmatpush.bf16.msra.mxu0 0
      %1498 = vmatpush.bf16.msra.mxu0 0
      %1499 = vmatpush.bf16.msra.mxu0 0
      %1500 = vmatpush.bf16.msra.mxu0 %v1485
      %1501 = vmatmul.bf16.gmra.mxu0 %v1488
      %v1502 = vpop.f32.mrf.mxu0
      %v1503 = vadd.f32 0.0, %v1502
      %v1504 = vpop.f32.mrf.mxu0
      %v1505 = vadd.f32 0.0, %v1504
      %1506 = vmatmul.bf16.gmra.mxu0 %v1491
      %v1507 = vpop.f32.mrf.mxu0
      %v1508 = vadd.f32 0.0, %v1507
      %v1509 = vpop.f32.mrf.mxu0
      %1510 = vdwg.mxu0
      %v1511 = vadd.f32 %v1333, %v1503
      %v1512 = vadd.f32 %v1334, %v1505
      %v1513 = vadd.f32 %v1335, %v1508
      %v1515 = vperm.slane %v790, 0
      %v1517 = vadd.f32 %v1511, %v1515
      %v1518 = vadd.f32 %v1512, %v1515
      %v1519 = vadd.f32 %v1513, %v1515
      %v1520 = vld [vmem:[%s6] sm:$0x1]
      %v1521 = vld [vmem:[%s7] sm:$0x1]
      %v1522 = vadd.f32 %v705, %v1517
      %v1523 = vadd.f32 %v706, %v1518
      %v1524 = vadd.f32 %v707, %v1519
      %v1525 = vsel %vm731, %v1522, 0.0
      %1526 = vadd.xlane.f32.xlu0 %v1525
      %v1527 = vpop.xlane.xlu0 %1526
      %v1528 = vsel %vm731, %v1523, 0.0
      %1529 = vadd.xlane.f32.xlu0 %v1528
      %v1530 = vpop.xlane.xlu0 %1529
      %vm1531 = vcmask 253952
      %v1532 = vsel %vm1531, %v1524, 0.0
      %1533 = vadd.xlane.f32.xlu0 %v1532
      %v1534 = vpop.xlane.xlu0 %1533
      %v1535 = vrcp.pop 32.0
      %v1536 = vmul.f32 32.0, %v1535
      %v1537 = vsub.f32 1.0, %v1536
      %v1538 = vmul.f32 %v1535, %v1537
      %v1539 = vadd.f32 %v1535, %v1538
      %vm1540 = vweird.f32 %v1535
      %v1541 = vsel %vm1540, %v1535, %v1539
      %v1542 = vmul.f32 %v1527, %v1541
      %v1543 = vmul.f32 %v1530, %v1541
      %v1544 = vmul.f32 %v1534, %v1541
      %v1545 = vsub.f32 %v1522, %v1542
      %v1546 = vsub.f32 %v1523, %v1543
      %v1547 = vsub.f32 %v1524, %v1544
      %v1548 = vmul.f32 %v1545, %v1545
      %v1549 = vmul.f32 %v1546, %v1546
      %v1550 = vmul.f32 %v1547, %v1547
      %v1551 = vsel %vm731, %v1548, 0.0
      %1552 = vadd.xlane.f32.xlu0 %v1551
      %v1553 = vpop.xlane.xlu0 %1552
      %v1554 = vsel %vm731, %v1549, 0.0
      %1555 = vadd.xlane.f32.xlu0 %v1554
      %v1556 = vpop.xlane.xlu0 %1555
      %v1557 = vsel %vm1531, %v1550, 0.0
      %1558 = vadd.xlane.f32.xlu0 %v1557
      %v1559 = vpop.xlane.xlu0 %1558
      %v1560 = vmul.f32 %v1553, %v1541
      %v1561 = vmul.f32 %v1556, %v1541
      %v1562 = vmul.f32 %v1559, %v1541
      %v1563 = vadd.f32 %v1560, 1e-12
      %v1564 = vadd.f32 %v1561, 1e-12
      %v1565 = vadd.f32 %v1562, 1e-12
      %v1566 = vrsqrt.pop %v1563
      %v1567 = vmul.f32 %v1566, %v1563
      %v1568 = vmul.f32 %v1567, %v1566
      %v1569 = vmul.f32 0.5, %v1568
      %v1570 = vsub.f32 1.5, %v1569
      %v1571 = vmul.f32 %v1566, %v1570
      %vm1572 = vweird.f32 %v1563
      %vm1573 = vweird.f32 %v1566
      %vm1574 = vmor %vm1572, %vm1573
      %v1575 = vsel %vm1574, %v1566, %v1571
      %v1576 = vrsqrt.pop %v1564
      %v1577 = vmul.f32 %v1576, %v1564
      %v1578 = vmul.f32 %v1577, %v1576
      %v1579 = vmul.f32 0.5, %v1578
      %v1580 = vsub.f32 1.5, %v1579
      %v1581 = vmul.f32 %v1576, %v1580
      %vm1582 = vweird.f32 %v1564
      %vm1583 = vweird.f32 %v1576
      %vm1584 = vmor %vm1582, %vm1583
      %v1585 = vsel %vm1584, %v1576, %v1581
      %v1586 = vrsqrt.pop %v1565
      %v1587 = vmul.f32 %v1586, %v1565
      %v1588 = vmul.f32 %v1587, %v1586
      %v1589 = vmul.f32 0.5, %v1588
      %v1590 = vsub.f32 1.5, %v1589
      %v1591 = vmul.f32 %v1586, %v1590
      %vm1592 = vweird.f32 %v1565
      %vm1593 = vweird.f32 %v1586
      %vm1594 = vmor %vm1592, %vm1593
      %v1595 = vsel %vm1594, %v1586, %v1591
      %v1596 = vmul.f32 %v1545, %v1575
      %v1597 = vmul.f32 %v1546, %v1585
      %v1598 = vmul.f32 %v1547, %v1595
      %v1600 = vperm.slane %v1520, 0
      %v1602 = vmul.f32 %v1596, %v1600
      %v1603 = vmul.f32 %v1597, %v1600
      %v1604 = vmul.f32 %v1598, %v1600
      %v1606 = vperm.slane %v1521, 0
      %v1608 = vadd.f32 %v1602, %v1606
      %v1609 = vadd.f32 %v1603, %v1606
      %v1610 = vadd.f32 %v1604, %v1606
      %v1611 = vpack.c.bf16 %v1609, %v1608
      %v1612 = vpack.c.bf16 %v1610, %v1610
      %v1613 = vld [vmem:[%s8] sm:$0xff]
      %v1614 = vld [vmem:[%s8 + $0x8] sm:$0xff]
      %v1615 = vld [vmem:[%s8 + $0x10] sm:$0xff]
      %v1616 = vld [vmem:[%s8 + $0x18] sm:$0xff]
      %v1617 = vpack.c.bf16 %v1614, %v1613
      %v1618 = vpack.c.bf16 %v1616, %v1615
      %v1619 = vld [vmem:[%s9] sm:$0x1]
      %v1621 = vperm.slane %v1619, 0
      %v1624 = vsel %vm731, %v1611, 0
      %v1627 = vsel %vm731, %v1612, 0
      %1629 = vmatpush.bf16.msra.mxu0 0
      %1630 = vmatpush.bf16.msra.mxu0 0
      %1631 = vmatpush.bf16.msra.mxu0 0
      %1632 = vmatpush.bf16.msra.mxu0 0
      %1633 = vmatpush.bf16.msra.mxu0 0
      %1634 = vmatpush.bf16.msra.mxu0 0
      %1635 = vmatpush.bf16.msra.mxu0 %v1618
      %1636 = vmatpush.bf16.msra.mxu0 %v1617
      %1637 = vmatmul.bf16.gmra.mxu0 %v1624
      %v1638 = vpop.f32.mrf.mxu0
      %v1639 = vadd.f32 %v1621, %v1638
      %v1640 = vpop.f32.mrf.mxu0
      %v1641 = vadd.f32 %v1621, %v1640
      %1642 = vmatmul.bf16.gmra.mxu0 %v1627
      %v1643 = vpop.f32.mrf.mxu0
      %v1644 = vadd.f32 %v1621, %v1643
      %v1645 = vpop.f32.mrf.mxu0
      %1646 = vdwg.mxu0
      %v1647 = vpack.c.bf16 %v709, %v708
      %v1648 = vpack.c.bf16 %v710, %v710
      %v1649 = vld [vmem:[%s10] sm:$0xff]
      %v1650 = vld [vmem:[%s10 + $0x8] sm:$0xff]
      %v1651 = vld [vmem:[%s10 + $0x10] sm:$0xff]
      %v1652 = vld [vmem:[%s10 + $0x18] sm:$0xff]
      %v1653 = vpack.c.bf16 %v1650, %v1649
      %v1654 = vpack.c.bf16 %v1652, %v1651
      %v1655 = vld [vmem:[%s11] sm:$0x1]
      %v1657 = vperm.slane %v1655, 0
      %v1660 = vsel %vm731, %v1647, 0
      %v1663 = vsel %vm731, %v1648, 0
      %1665 = vmatpush.bf16.msra.mxu0 0
      %1666 = vmatpush.bf16.msra.mxu0 0
      %1667 = vmatpush.bf16.msra.mxu0 0
      %1668 = vmatpush.bf16.msra.mxu0 0
      %1669 = vmatpush.bf16.msra.mxu0 0
      %1670 = vmatpush.bf16.msra.mxu0 0
      %1671 = vmatpush.bf16.msra.mxu0 %v1654
      %1672 = vmatpush.bf16.msra.mxu0 %v1653
      %1673 = vmatmul.bf16.gmra.mxu0 %v1660
      %v1674 = vpop.f32.mrf.mxu0
      %v1675 = vadd.f32 %v1657, %v1674
      %v1676 = vpop.f32.mrf.mxu0
      %v1677 = vadd.f32 %v1657, %v1676
      %1678 = vmatmul.bf16.gmra.mxu0 %v1663
      %v1679 = vpop.f32.mrf.mxu0
      %v1680 = vadd.f32 %v1657, %v1679
      %v1681 = vpop.f32.mrf.mxu0
      %1682 = vdwg.mxu0
      %v1683 = vld [vmem:[%s12] sm:$0xff]
      %v1684 = vld [vmem:[%s12 + $0x8] sm:$0xff]
      %v1685 = vld [vmem:[%s12 + $0x10] sm:$0xff]
      %v1686 = vld [vmem:[%s12 + $0x18] sm:$0xff]
      %v1687 = vld [vmem:[%s12 + $0x20] sm:$0xff]
      %v1688 = vld [vmem:[%s12 + $0x28] sm:$0xff]
      %v1689 = vld [vmem:[%s12 + $0x30] sm:$0xff]
      %v1690 = vld [vmem:[%s12 + $0x38] sm:$0xff]
      %v1691 = vpack.c.bf16 %v1683, %v1683
      %v1692 = vpack.c.bf16 %v1684, %v1684
      %v1693 = vpack.c.bf16 %v1685, %v1685
      %v1694 = vpack.c.bf16 %v1686, %v1686
      %v1695 = vpack.c.bf16 %v1687, %v1687
      %v1696 = vpack.c.bf16 %v1688, %v1688
      %v1697 = vpack.c.bf16 %v1689, %v1689
      %v1698 = vpack.c.bf16 %v1690, %v1690
      %v1699 = vld [vmem:[%s13] sm:$0x1]
      %v1700 = vpack.c.bf16 %v1641, %v1639
      %v1701 = vpack.c.bf16 %v1644, %v1644
      %1702 = vxpose.xlu0.b32.start [1/16] %v1675, 128
      %1703 = vxpose.xlu0.b32.cont [2/16] %v1677, 128
      %1704 = vxpose.xlu0.b32.cont [3/16] %v1680, 128
      %1705 = vxpose.xlu0.b32.cont [4/16] 0.0, 128
      %1706 = vxpose.xlu0.b32.cont [5/16] 0.0, 128
      %1707 = vxpose.xlu0.b32.cont [6/16] 0.0, 128
      %1708 = vxpose.xlu0.b32.cont [7/16] 0.0, 128
      %1709 = vxpose.xlu0.b32.cont [8/16] 0.0, 128
      %1710 = vxpose.xlu0.b32.cont [9/16] 0.0, 128
      %1711 = vxpose.xlu0.b32.cont [10/16] 0.0, 128
      %1712 = vxpose.xlu0.b32.cont [11/16] 0.0, 128
      %1713 = vxpose.xlu0.b32.cont [12/16] 0.0, 128
      %1714 = vxpose.xlu0.b32.cont [13/16] 0.0, 128
      %1715 = vxpose.xlu0.b32.cont [14/16] 0.0, 128
      %1716 = vxpose.xlu0.b32.cont [15/16] 0.0, 128
      %1717 = vxpose.xlu0.b32.end [16/16] 0.0, 128
      %v1718 = vpop.trf.xlu0
      %v1719 = vpop.trf.xlu0
      %v1720 = vpop.trf.xlu0
      %v1721 = vpop.trf.xlu0
      %v1722 = vpop.trf.xlu0
      %v1723 = vpop.trf.xlu0
      %v1724 = vpop.trf.xlu0
      %v1725 = vpop.trf.xlu0
      %v1726 = vpop.trf.xlu0
      %v1727 = vpop.trf.xlu0
      %v1728 = vpop.trf.xlu0
      %v1729 = vpop.trf.xlu0
      %v1730 = vpop.trf.xlu0
      %v1731 = vpop.trf.xlu0
      %v1732 = vpop.trf.xlu0
      %v1733 = vpop.trf.xlu0
      %v1734 = vpack.c.bf16 %v1719, %v1718
      %v1736 = vsel %vm847, %v1700, 0
      %v1739 = vsel %vm847, %v1701, 0
      %1741 = vmatpush.bf16.msra.mxu0 0
      %1742 = vmatpush.bf16.msra.mxu0 0
      %1743 = vmatpush.bf16.msra.mxu0 0
      %1744 = vmatpush.bf16.msra.mxu0 0
      %1745 = vmatpush.bf16.msra.mxu0 0
      %1746 = vmatpush.bf16.msra.mxu0 0
      %1747 = vmatpush.bf16.msra.mxu0 0
      %1748 = vmatpush.bf16.msra.mxu0 %v1734
      %1749 = vmatmul.bf16.gmra.mxu0 %v1736
      %v1750 = vpop.f32.mrf.mxu0
      %v1751 = vadd.f32 0.0, %v1750
      %v1752 = vpop.f32.mrf.mxu0
      %v1753 = vadd.f32 0.0, %v1752
      %1754 = vmatmul.bf16.gmra.mxu0 %v1739
      %v1755 = vpop.f32.mrf.mxu0
      %v1756 = vadd.f32 0.0, %v1755
      %v1757 = vpop.f32.mrf.mxu0
      %1758 = vdwg.mxu0
      %v1759 = vmul.f32 %v1751, 0.25
      %v1760 = vmul.f32 %v1753, 0.25
      %v1761 = vmul.f32 %v1756, 0.25
      %v1762 = vsel %vm878, %v1759, -inf
      %1763 = vmax.xlane.f32.xlu0 %v1762
      %v1764 = vpop.xlane.xlu0 %1763
      %v1765 = vsel %vm878, %v1760, -inf
      %1766 = vmax.xlane.f32.xlu0 %v1765
      %v1767 = vpop.xlane.xlu0 %1766
      %v1768 = vsel %vm885, %v1761, -inf
      %1769 = vmax.xlane.f32.xlu0 %v1768
      %v1770 = vpop.xlane.xlu0 %1769
      %v1771 = vsub.f32 %v1759, %v1764
      %v1772 = vsub.f32 %v1760, %v1767
      %v1773 = vsub.f32 %v1761, %v1770
      %v1774 = vmul.f32 %v1771, 1.442695
      %v1775 = vpow.pop %v1774
      %v1776 = vmul.f32 %v1772, 1.442695
      %v1777 = vpow.pop %v1776
      %v1778 = vmul.f32 %v1773, 1.442695
      %v1779 = vpow.pop %v1778
      %v1780 = vsel %vm878, %v1775, 0.0
      %1781 = vadd.xlane.f32.xlu0 %v1780
      %v1782 = vpop.xlane.xlu0 %1781
      %v1783 = vsel %vm878, %v1777, 0.0
      %1784 = vadd.xlane.f32.xlu0 %v1783
      %v1785 = vpop.xlane.xlu0 %1784
      %v1786 = vsel %vm885, %v1779, 0.0
      %1787 = vadd.xlane.f32.xlu0 %v1786
      %v1788 = vpop.xlane.xlu0 %1787
      %v1789 = vrcp.pop %v1782
      %v1790 = vrcp.pop %v1785
      %v1791 = vrcp.pop %v1788
      %v1792 = vmul.f32 %v1775, %v1789
      %v1793 = vmul.f32 %v1777, %v1790
      %v1794 = vmul.f32 %v1779, %v1791
      %v1795 = vpack.c.bf16 %v1793, %v1792
      %v1796 = vpack.c.bf16 %v1794, %v1794
      %v1797 = vpack.c.bf16 %v1677, %v1675
      %v1798 = vpack.c.bf16 %v1680, %v1680
      %1801 = vrot.lane.b32.xlu0 %v1797, 64
      %v1802 = vpop.permute.xlu0 %1801
      %1803 = vrot.lane.b32.xlu0 %v1798, 64
      %v1804 = vpop.permute.xlu0 %1803
      %v1807 = vsel %vm878, %v1795, 0
      %v1810 = vsel %vm878, %v1796, 0
      %v1813 = vand.u32 %v1804, %v925
      %1815 = vmatpush.bf16.msra.mxu0 0
      %1816 = vmatpush.bf16.msra.mxu0 0
      %1817 = vmatpush.bf16.msra.mxu0 0
      %1818 = vmatpush.bf16.msra.mxu0 0
      %1819 = vmatpush.bf16.msra.mxu0 0
      %1820 = vmatpush.bf16.msra.mxu0 0
      %1821 = vmatpush.bf16.msra.mxu0 %v1813
      %1822 = vmatpush.bf16.msra.mxu0 %v1802
      %1823 = vmatmul.bf16.gmra.mxu0 %v1807
      %v1824 = vpop.f32.mrf.mxu0
      %v1825 = vadd.f32 0.0, %v1824
      %v1826 = vpop.f32.mrf.mxu0
      %v1827 = vadd.f32 0.0, %v1826
      %1828 = vmatmul.bf16.gmra.mxu0 %v1810
      %v1829 = vpop.f32.mrf.mxu0
      %v1830 = vadd.f32 0.0, %v1829
      %v1831 = vpop.f32.mrf.mxu0
      %1832 = vdwg.mxu0
      %v1833 = vpack.c.bf16 %v1827, %v1825
      %v1834 = vpack.c.bf16 %v1830, %v1830
      %1838 = vrot.lane.b32.xlu0 %v1675, 112
      %v1839 = vpop.permute.xlu0 %1838
      %1840 = vrot.lane.b32.xlu0 %v1677, 112
      %v1841 = vpop.permute.xlu0 %1840
      %1842 = vrot.lane.b32.xlu0 %v1680, 112
      %v1843 = vpop.permute.xlu0 %1842
      %1847 = vxpose.xlu0.b32.start [1/16] %v1839, 128
      %1848 = vxpose.xlu0.b32.cont [2/16] %v1841, 128
      %1849 = vxpose.xlu0.b32.cont [3/16] %v1843, 128
      %1850 = vxpose.xlu0.b32.cont [4/16] 0.0, 128
      %1851 = vxpose.xlu0.b32.cont [5/16] 0.0, 128
      %1852 = vxpose.xlu0.b32.cont [6/16] 0.0, 128
      %1853 = vxpose.xlu0.b32.cont [7/16] 0.0, 128
      %1854 = vxpose.xlu0.b32.cont [8/16] 0.0, 128
      %1855 = vxpose.xlu0.b32.cont [9/16] 0.0, 128
      %1856 = vxpose.xlu0.b32.cont [10/16] 0.0, 128
      %1857 = vxpose.xlu0.b32.cont [11/16] 0.0, 128
      %1858 = vxpose.xlu0.b32.cont [12/16] 0.0, 128
      %1859 = vxpose.xlu0.b32.cont [13/16] 0.0, 128
      %1860 = vxpose.xlu0.b32.cont [14/16] 0.0, 128
      %1861 = vxpose.xlu0.b32.cont [15/16] 0.0, 128
      %1862 = vxpose.xlu0.b32.end [16/16] 0.0, 128
      %v1863 = vpop.trf.xlu0
      %v1864 = vpop.trf.xlu0
      %v1865 = vpop.trf.xlu0
      %v1866 = vpop.trf.xlu0
      %v1867 = vpop.trf.xlu0
      %v1868 = vpop.trf.xlu0
      %v1869 = vpop.trf.xlu0
      %v1870 = vpop.trf.xlu0
      %v1871 = vpop.trf.xlu0
      %v1872 = vpop.trf.xlu0
      %v1873 = vpop.trf.xlu0
      %v1874 = vpop.trf.xlu0
      %v1875 = vpop.trf.xlu0
      %v1876 = vpop.trf.xlu0
      %v1877 = vpop.trf.xlu0
      %v1878 = vpop.trf.xlu0
      %v1879 = vpack.c.bf16 %v1864, %v1863
      %1882 = vrot.lane.b32.xlu0 %v1700, 112
      %v1883 = vpop.permute.xlu0 %1882
      %1884 = vrot.lane.b32.xlu0 %v1701, 112
      %v1885 = vpop.permute.xlu0 %1884
      %v1887 = vsel %vm847, %v1883, 0
      %v1890 = vsel %vm847, %v1885, 0
      %1892 = vmatpush.bf16.msra.mxu0 0
      %1893 = vmatpush.bf16.msra.mxu0 0
      %1894 = vmatpush.bf16.msra.mxu0 0
      %1895 = vmatpush.bf16.msra.mxu0 0
      %1896 = vmatpush.bf16.msra.mxu0 0
      %1897 = vmatpush.bf16.msra.mxu0 0
      %1898 = vmatpush.bf16.msra.mxu0 0
      %1899 = vmatpush.bf16.msra.mxu0 %v1879
      %1900 = vmatmul.bf16.gmra.mxu0 %v1887
      %v1901 = vpop.f32.mrf.mxu0
      %v1902 = vadd.f32 0.0, %v1901
      %v1903 = vpop.f32.mrf.mxu0
      %v1904 = vadd.f32 0.0, %v1903
      %1905 = vmatmul.bf16.gmra.mxu0 %v1890
      %v1906 = vpop.f32.mrf.mxu0
      %v1907 = vadd.f32 0.0, %v1906
      %v1908 = vpop.f32.mrf.mxu0
      %1909 = vdwg.mxu0
      %v1910 = vmul.f32 %v1902, 0.25
      %v1911 = vmul.f32 %v1904, 0.25
      %v1912 = vmul.f32 %v1907, 0.25
      %v1913 = vsel %vm878, %v1910, -inf
      %1914 = vmax.xlane.f32.xlu0 %v1913
      %v1915 = vpop.xlane.xlu0 %1914
      %v1916 = vsel %vm878, %v1911, -inf
      %1917 = vmax.xlane.f32.xlu0 %v1916
      %v1918 = vpop.xlane.xlu0 %1917
      %v1919 = vsel %vm885, %v1912, -inf
      %1920 = vmax.xlane.f32.xlu0 %v1919
      %v1921 = vpop.xlane.xlu0 %1920
      %v1922 = vsub.f32 %v1910, %v1915
      %v1923 = vsub.f32 %v1911, %v1918
      %v1924 = vsub.f32 %v1912, %v1921
      %v1925 = vmul.f32 %v1922, 1.442695
      %v1926 = vpow.pop %v1925
      %v1927 = vmul.f32 %v1923, 1.442695
      %v1928 = vpow.pop %v1927
      %v1929 = vmul.f32 %v1924, 1.442695
      %v1930 = vpow.pop %v1929
      %v1931 = vsel %vm878, %v1926, 0.0
      %1932 = vadd.xlane.f32.xlu0 %v1931
      %v1933 = vpop.xlane.xlu0 %1932
      %v1934 = vsel %vm878, %v1928, 0.0
      %1935 = vadd.xlane.f32.xlu0 %v1934
      %v1936 = vpop.xlane.xlu0 %1935
      %v1937 = vsel %vm885, %v1930, 0.0
      %1938 = vadd.xlane.f32.xlu0 %v1937
      %v1939 = vpop.xlane.xlu0 %1938
      %v1940 = vrcp.pop %v1933
      %v1941 = vrcp.pop %v1936
      %v1942 = vrcp.pop %v1939
      %v1943 = vmul.f32 %v1926, %v1940
      %v1944 = vmul.f32 %v1928, %v1941
      %v1945 = vmul.f32 %v1930, %v1942
      %v1946 = vpack.c.bf16 %v1944, %v1943
      %v1947 = vpack.c.bf16 %v1945, %v1945
      %1948 = vrot.lane.b32.xlu0 %v1797, 48
      %v1949 = vpop.permute.xlu0 %1948
      %1950 = vrot.lane.b32.xlu0 %v1798, 48
      %v1951 = vpop.permute.xlu0 %1950
      %v1954 = vsel %vm878, %v1946, 0
      %v1957 = vsel %vm878, %v1947, 0
      %v1960 = vand.u32 %v1951, %v925
      %1962 = vmatpush.bf16.msra.mxu0 0
      %1963 = vmatpush.bf16.msra.mxu0 0
      %1964 = vmatpush.bf16.msra.mxu0 0
      %1965 = vmatpush.bf16.msra.mxu0 0
      %1966 = vmatpush.bf16.msra.mxu0 0
      %1967 = vmatpush.bf16.msra.mxu0 0
      %1968 = vmatpush.bf16.msra.mxu0 %v1960
      %1969 = vmatpush.bf16.msra.mxu0 %v1949
      %1970 = vmatmul.bf16.gmra.mxu0 %v1954
      %v1971 = vpop.f32.mrf.mxu0
      %v1972 = vadd.f32 0.0, %v1971
      %v1973 = vpop.f32.mrf.mxu0
      %v1974 = vadd.f32 0.0, %v1973
      %1975 = vmatmul.bf16.gmra.mxu0 %v1957
      %v1976 = vpop.f32.mrf.mxu0
      %v1977 = vadd.f32 0.0, %v1976
      %v1978 = vpop.f32.mrf.mxu0
      %1979 = vdwg.mxu0
      %v1980 = vpack.c.bf16 %v1974, %v1972
      %v1981 = vpack.c.bf16 %v1977, %v1977
      %v1984 = vunpack.c.l.b16 %v1693
      %v1985 = vunpack.c.l.b16 %v1694
      %v1986 = vpack.c.b16 %v1985, %v1984
      %v1989 = vsel %vm847, %v1980, 0
      %v1992 = vsel %vm847, %v1981, 0
      %1994 = vmatpush.bf16.msra.mxu0 0
      %1995 = vmatpush.bf16.msra.mxu0 0
      %1996 = vmatpush.bf16.msra.mxu0 0
      %1997 = vmatpush.bf16.msra.mxu0 0
      %1998 = vmatpush.bf16.msra.mxu0 0
      %1999 = vmatpush.bf16.msra.mxu0 0
      %2000 = vmatpush.bf16.msra.mxu0 0
      %2001 = vmatpush.bf16.msra.mxu0 %v1986
      %2002 = vmatmul.bf16.gmra.mxu0 %v1989
      %v2003 = vpop.f32.mrf.mxu0
      %v2004 = vadd.f32 0.0, %v2003
      %v2005 = vpop.f32.mrf.mxu0
      %v2006 = vadd.f32 0.0, %v2005
      %2007 = vmatmul.bf16.gmra.mxu0 %v1992
      %v2008 = vpop.f32.mrf.mxu0
      %v2009 = vadd.f32 0.0, %v2008
      %v2010 = vpop.f32.mrf.mxu0
      %2011 = vdwg.mxu0
      %v2014 = vunpack.c.l.b16 %v1691
      %v2015 = vunpack.c.l.b16 %v1692
      %v2016 = vpack.c.b16 %v2015, %v2014
      %v2019 = vsel %vm847, %v1833, 0
      %v2022 = vsel %vm847, %v1834, 0
      %2024 = vmatpush.bf16.msra.mxu0 0
      %2025 = vmatpush.bf16.msra.mxu0 0
      %2026 = vmatpush.bf16.msra.mxu0 0
      %2027 = vmatpush.bf16.msra.mxu0 0
      %2028 = vmatpush.bf16.msra.mxu0 0
      %2029 = vmatpush.bf16.msra.mxu0 0
      %2030 = vmatpush.bf16.msra.mxu0 0
      %2031 = vmatpush.bf16.msra.mxu0 %v2016
      %2032 = vmatmul.bf16.gmra.mxu0 %v2019
      %v2033 = vpop.f32.mrf.mxu0
      %v2034 = vadd.f32 %v2004, %v2033
      %v2035 = vpop.f32.mrf.mxu0
      %v2036 = vadd.f32 %v2006, %v2035
      %2037 = vmatmul.bf16.gmra.mxu0 %v2022
      %v2038 = vpop.f32.mrf.mxu0
      %v2039 = vadd.f32 %v2009, %v2038
      %v2040 = vpop.f32.mrf.mxu0
      %2041 = vdwg.mxu0
      %2042 = vrot.lane.b32.xlu0 %v1675, 96
      %v2043 = vpop.permute.xlu0 %2042
      %2044 = vrot.lane.b32.xlu0 %v1677, 96
      %v2045 = vpop.permute.xlu0 %2044
      %2046 = vrot.lane.b32.xlu0 %v1680, 96
      %v2047 = vpop.permute.xlu0 %2046
      %2051 = vxpose.xlu0.b32.start [1/16] %v2043, 128
      %2052 = vxpose.xlu0.b32.cont [2/16] %v2045, 128
      %2053 = vxpose.xlu0.b32.cont [3/16] %v2047, 128
      %2054 = vxpose.xlu0.b32.cont [4/16] 0.0, 128
      %2055 = vxpose.xlu0.b32.cont [5/16] 0.0, 128
      %2056 = vxpose.xlu0.b32.cont [6/16] 0.0, 128
      %2057 = vxpose.xlu0.b32.cont [7/16] 0.0, 128
      %2058 = vxpose.xlu0.b32.cont [8/16] 0.0, 128
      %2059 = vxpose.xlu0.b32.cont [9/16] 0.0, 128
      %2060 = vxpose.xlu0.b32.cont [10/16] 0.0, 128
      %2061 = vxpose.xlu0.b32.cont [11/16] 0.0, 128
      %2062 = vxpose.xlu0.b32.cont [12/16] 0.0, 128
      %2063 = vxpose.xlu0.b32.cont [13/16] 0.0, 128
      %2064 = vxpose.xlu0.b32.cont [14/16] 0.0, 128
      %2065 = vxpose.xlu0.b32.cont [15/16] 0.0, 128
      %2066 = vxpose.xlu0.b32.end [16/16] 0.0, 128
      %v2067 = vpop.trf.xlu0
      %v2068 = vpop.trf.xlu0
      %v2069 = vpop.trf.xlu0
      %v2070 = vpop.trf.xlu0
      %v2071 = vpop.trf.xlu0
      %v2072 = vpop.trf.xlu0
      %v2073 = vpop.trf.xlu0
      %v2074 = vpop.trf.xlu0
      %v2075 = vpop.trf.xlu0
      %v2076 = vpop.trf.xlu0
      %v2077 = vpop.trf.xlu0
      %v2078 = vpop.trf.xlu0
      %v2079 = vpop.trf.xlu0
      %v2080 = vpop.trf.xlu0
      %v2081 = vpop.trf.xlu0
      %v2082 = vpop.trf.xlu0
      %v2083 = vpack.c.bf16 %v2068, %v2067
      %2084 = vrot.lane.b32.xlu0 %v1700, 96
      %v2085 = vpop.permute.xlu0 %2084
      %2086 = vrot.lane.b32.xlu0 %v1701, 96
      %v2087 = vpop.permute.xlu0 %2086
      %v2089 = vsel %vm847, %v2085, 0
      %v2092 = vsel %vm847, %v2087, 0
      %2094 = vmatpush.bf16.msra.mxu0 0
      %2095 = vmatpush.bf16.msra.mxu0 0
      %2096 = vmatpush.bf16.msra.mxu0 0
      %2097 = vmatpush.bf16.msra.mxu0 0
      %2098 = vmatpush.bf16.msra.mxu0 0
      %2099 = vmatpush.bf16.msra.mxu0 0
      %2100 = vmatpush.bf16.msra.mxu0 0
      %2101 = vmatpush.bf16.msra.mxu0 %v2083
      %2102 = vmatmul.bf16.gmra.mxu0 %v2089
      %v2103 = vpop.f32.mrf.mxu0
      %v2104 = vadd.f32 0.0, %v2103
      %v2105 = vpop.f32.mrf.mxu0
      %v2106 = vadd.f32 0.0, %v2105
      %2107 = vmatmul.bf16.gmra.mxu0 %v2092
      %v2108 = vpop.f32.mrf.mxu0
      %v2109 = vadd.f32 0.0, %v2108
      %v2110 = vpop.f32.mrf.mxu0
      %2111 = vdwg.mxu0
      %v2112 = vmul.f32 %v2104, 0.25
      %v2113 = vmul.f32 %v2106, 0.25
      %v2114 = vmul.f32 %v2109, 0.25
      %v2115 = vsel %vm878, %v2112, -inf
      %2116 = vmax.xlane.f32.xlu0 %v2115
      %v2117 = vpop.xlane.xlu0 %2116
      %v2118 = vsel %vm878, %v2113, -inf
      %2119 = vmax.xlane.f32.xlu0 %v2118
      %v2120 = vpop.xlane.xlu0 %2119
      %v2121 = vsel %vm885, %v2114, -inf
      %2122 = vmax.xlane.f32.xlu0 %v2121
      %v2123 = vpop.xlane.xlu0 %2122
      %v2124 = vsub.f32 %v2112, %v2117
      %v2125 = vsub.f32 %v2113, %v2120
      %v2126 = vsub.f32 %v2114, %v2123
      %v2127 = vmul.f32 %v2124, 1.442695
      %v2128 = vpow.pop %v2127
      %v2129 = vmul.f32 %v2125, 1.442695
      %v2130 = vpow.pop %v2129
      %v2131 = vmul.f32 %v2126, 1.442695
      %v2132 = vpow.pop %v2131
      %v2133 = vsel %vm878, %v2128, 0.0
      %2134 = vadd.xlane.f32.xlu0 %v2133
      %v2135 = vpop.xlane.xlu0 %2134
      %v2136 = vsel %vm878, %v2130, 0.0
      %2137 = vadd.xlane.f32.xlu0 %v2136
      %v2138 = vpop.xlane.xlu0 %2137
      %v2139 = vsel %vm885, %v2132, 0.0
      %2140 = vadd.xlane.f32.xlu0 %v2139
      %v2141 = vpop.xlane.xlu0 %2140
      %v2142 = vrcp.pop %v2135
      %v2143 = vrcp.pop %v2138
      %v2144 = vrcp.pop %v2141
      %v2145 = vmul.f32 %v2128, %v2142
      %v2146 = vmul.f32 %v2130, %v2143
      %v2147 = vmul.f32 %v2132, %v2144
      %v2148 = vpack.c.bf16 %v2146, %v2145
      %v2149 = vpack.c.bf16 %v2147, %v2147
      %2150 = vrot.lane.b32.xlu0 %v1797, 32
      %v2151 = vpop.permute.xlu0 %2150
      %2152 = vrot.lane.b32.xlu0 %v1798, 32
      %v2153 = vpop.permute.xlu0 %2152
      %v2156 = vsel %vm878, %v2148, 0
      %v2159 = vsel %vm878, %v2149, 0
      %v2162 = vand.u32 %v2153, %v925
      %2164 = vmatpush.bf16.msra.mxu0 0
      %2165 = vmatpush.bf16.msra.mxu0 0
      %2166 = vmatpush.bf16.msra.mxu0 0
      %2167 = vmatpush.bf16.msra.mxu0 0
      %2168 = vmatpush.bf16.msra.mxu0 0
      %2169 = vmatpush.bf16.msra.mxu0 0
      %2170 = vmatpush.bf16.msra.mxu0 %v2162
      %2171 = vmatpush.bf16.msra.mxu0 %v2151
      %2172 = vmatmul.bf16.gmra.mxu0 %v2156
      %v2173 = vpop.f32.mrf.mxu0
      %v2174 = vadd.f32 0.0, %v2173
      %v2175 = vpop.f32.mrf.mxu0
      %v2176 = vadd.f32 0.0, %v2175
      %2177 = vmatmul.bf16.gmra.mxu0 %v2159
      %v2178 = vpop.f32.mrf.mxu0
      %v2179 = vadd.f32 0.0, %v2178
      %v2180 = vpop.f32.mrf.mxu0
      %2181 = vdwg.mxu0
      %v2182 = vpack.c.bf16 %v2176, %v2174
      %v2183 = vpack.c.bf16 %v2179, %v2179
      %v2186 = vunpack.c.l.b16 %v1695
      %v2187 = vunpack.c.l.b16 %v1696
      %v2188 = vpack.c.b16 %v2187, %v2186
      %v2191 = vsel %vm847, %v2182, 0
      %v2194 = vsel %vm847, %v2183, 0
      %2196 = vmatpush.bf16.msra.mxu0 0
      %2197 = vmatpush.bf16.msra.mxu0 0
      %2198 = vmatpush.bf16.msra.mxu0 0
      %2199 = vmatpush.bf16.msra.mxu0 0
      %2200 = vmatpush.bf16.msra.mxu0 0
      %2201 = vmatpush.bf16.msra.mxu0 0
      %2202 = vmatpush.bf16.msra.mxu0 0
      %2203 = vmatpush.bf16.msra.mxu0 %v2188
      %2204 = vmatmul.bf16.gmra.mxu0 %v2191
      %v2205 = vpop.f32.mrf.mxu0
      %v2206 = vadd.f32 0.0, %v2205
      %v2207 = vpop.f32.mrf.mxu0
      %v2208 = vadd.f32 0.0, %v2207
      %2209 = vmatmul.bf16.gmra.mxu0 %v2194
      %v2210 = vpop.f32.mrf.mxu0
      %v2211 = vadd.f32 0.0, %v2210
      %v2212 = vpop.f32.mrf.mxu0
      %2213 = vdwg.mxu0
      %v2214 = vadd.f32 %v2034, %v2206
      %v2215 = vadd.f32 %v2036, %v2208
      %v2216 = vadd.f32 %v2039, %v2211
      %2217 = vrot.lane.b32.xlu0 %v1675, 80
      %v2218 = vpop.permute.xlu0 %2217
      %2219 = vrot.lane.b32.xlu0 %v1677, 80
      %v2220 = vpop.permute.xlu0 %2219
      %2221 = vrot.lane.b32.xlu0 %v1680, 80
      %v2222 = vpop.permute.xlu0 %2221
      %2226 = vxpose.xlu0.b32.start [1/16] %v2218, 128
      %2227 = vxpose.xlu0.b32.cont [2/16] %v2220, 128
      %2228 = vxpose.xlu0.b32.cont [3/16] %v2222, 128
      %2229 = vxpose.xlu0.b32.cont [4/16] 0.0, 128
      %2230 = vxpose.xlu0.b32.cont [5/16] 0.0, 128
      %2231 = vxpose.xlu0.b32.cont [6/16] 0.0, 128
      %2232 = vxpose.xlu0.b32.cont [7/16] 0.0, 128
      %2233 = vxpose.xlu0.b32.cont [8/16] 0.0, 128
      %2234 = vxpose.xlu0.b32.cont [9/16] 0.0, 128
      %2235 = vxpose.xlu0.b32.cont [10/16] 0.0, 128
      %2236 = vxpose.xlu0.b32.cont [11/16] 0.0, 128
      %2237 = vxpose.xlu0.b32.cont [12/16] 0.0, 128
      %2238 = vxpose.xlu0.b32.cont [13/16] 0.0, 128
      %2239 = vxpose.xlu0.b32.cont [14/16] 0.0, 128
      %2240 = vxpose.xlu0.b32.cont [15/16] 0.0, 128
      %2241 = vxpose.xlu0.b32.end [16/16] 0.0, 128
      %v2242 = vpop.trf.xlu0
      %v2243 = vpop.trf.xlu0
      %v2244 = vpop.trf.xlu0
      %v2245 = vpop.trf.xlu0
      %v2246 = vpop.trf.xlu0
      %v2247 = vpop.trf.xlu0
      %v2248 = vpop.trf.xlu0
      %v2249 = vpop.trf.xlu0
      %v2250 = vpop.trf.xlu0
      %v2251 = vpop.trf.xlu0
      %v2252 = vpop.trf.xlu0
      %v2253 = vpop.trf.xlu0
      %v2254 = vpop.trf.xlu0
      %v2255 = vpop.trf.xlu0
      %v2256 = vpop.trf.xlu0
      %v2257 = vpop.trf.xlu0
      %v2258 = vpack.c.bf16 %v2243, %v2242
      %2259 = vrot.lane.b32.xlu0 %v1700, 80
      %v2260 = vpop.permute.xlu0 %2259
      %2261 = vrot.lane.b32.xlu0 %v1701, 80
      %v2262 = vpop.permute.xlu0 %2261
      %v2264 = vsel %vm847, %v2260, 0
      %v2267 = vsel %vm847, %v2262, 0
      %2269 = vmatpush.bf16.msra.mxu0 0
      %2270 = vmatpush.bf16.msra.mxu0 0
      %2271 = vmatpush.bf16.msra.mxu0 0
      %2272 = vmatpush.bf16.msra.mxu0 0
      %2273 = vmatpush.bf16.msra.mxu0 0
      %2274 = vmatpush.bf16.msra.mxu0 0
      %2275 = vmatpush.bf16.msra.mxu0 0
      %2276 = vmatpush.bf16.msra.mxu0 %v2258
      %2277 = vmatmul.bf16.gmra.mxu0 %v2264
      %v2278 = vpop.f32.mrf.mxu0
      %v2279 = vadd.f32 0.0, %v2278
      %v2280 = vpop.f32.mrf.mxu0
      %v2281 = vadd.f32 0.0, %v2280
      %2282 = vmatmul.bf16.gmra.mxu0 %v2267
      %v2283 = vpop.f32.mrf.mxu0
      %v2284 = vadd.f32 0.0, %v2283
      %v2285 = vpop.f32.mrf.mxu0
      %2286 = vdwg.mxu0
      %v2287 = vmul.f32 %v2279, 0.25
      %v2288 = vmul.f32 %v2281, 0.25
      %v2289 = vmul.f32 %v2284, 0.25
      %v2290 = vsel %vm878, %v2287, -inf
      %2291 = vmax.xlane.f32.xlu0 %v2290
      %v2292 = vpop.xlane.xlu0 %2291
      %v2293 = vsel %vm878, %v2288, -inf
      %2294 = vmax.xlane.f32.xlu0 %v2293
      %v2295 = vpop.xlane.xlu0 %2294
      %v2296 = vsel %vm885, %v2289, -inf
      %2297 = vmax.xlane.f32.xlu0 %v2296
      %v2298 = vpop.xlane.xlu0 %2297
      %v2299 = vsub.f32 %v2287, %v2292
      %v2300 = vsub.f32 %v2288, %v2295
      %v2301 = vsub.f32 %v2289, %v2298
      %v2302 = vmul.f32 %v2299, 1.442695
      %v2303 = vpow.pop %v2302
      %v2304 = vmul.f32 %v2300, 1.442695
      %v2305 = vpow.pop %v2304
      %v2306 = vmul.f32 %v2301, 1.442695
      %v2307 = vpow.pop %v2306
      %v2308 = vsel %vm878, %v2303, 0.0
      %2309 = vadd.xlane.f32.xlu0 %v2308
      %v2310 = vpop.xlane.xlu0 %2309
      %v2311 = vsel %vm878, %v2305, 0.0
      %2312 = vadd.xlane.f32.xlu0 %v2311
      %v2313 = vpop.xlane.xlu0 %2312
      %v2314 = vsel %vm885, %v2307, 0.0
      %2315 = vadd.xlane.f32.xlu0 %v2314
      %v2316 = vpop.xlane.xlu0 %2315
      %v2317 = vrcp.pop %v2310
      %v2318 = vrcp.pop %v2313
      %v2319 = vrcp.pop %v2316
      %v2320 = vmul.f32 %v2303, %v2317
      %v2321 = vmul.f32 %v2305, %v2318
      %v2322 = vmul.f32 %v2307, %v2319
      %v2323 = vpack.c.bf16 %v2321, %v2320
      %v2324 = vpack.c.bf16 %v2322, %v2322
      %2325 = vrot.lane.b32.xlu0 %v1797, 16
      %v2326 = vpop.permute.xlu0 %2325
      %2327 = vrot.lane.b32.xlu0 %v1798, 16
      %v2328 = vpop.permute.xlu0 %2327
      %v2331 = vsel %vm878, %v2323, 0
      %v2334 = vsel %vm878, %v2324, 0
      %v2337 = vand.u32 %v2328, %v925
      %2339 = vmatpush.bf16.msra.mxu0 0
      %2340 = vmatpush.bf16.msra.mxu0 0
      %2341 = vmatpush.bf16.msra.mxu0 0
      %2342 = vmatpush.bf16.msra.mxu0 0
      %2343 = vmatpush.bf16.msra.mxu0 0
      %2344 = vmatpush.bf16.msra.mxu0 0
      %2345 = vmatpush.bf16.msra.mxu0 %v2337
      %2346 = vmatpush.bf16.msra.mxu0 %v2326
      %2347 = vmatmul.bf16.gmra.mxu0 %v2331
      %v2348 = vpop.f32.mrf.mxu0
      %v2349 = vadd.f32 0.0, %v2348
      %v2350 = vpop.f32.mrf.mxu0
      %v2351 = vadd.f32 0.0, %v2350
      %2352 = vmatmul.bf16.gmra.mxu0 %v2334
      %v2353 = vpop.f32.mrf.mxu0
      %v2354 = vadd.f32 0.0, %v2353
      %v2355 = vpop.f32.mrf.mxu0
      %2356 = vdwg.mxu0
      %v2357 = vpack.c.bf16 %v2351, %v2349
      %v2358 = vpack.c.bf16 %v2354, %v2354
      %v2361 = vunpack.c.l.b16 %v1697
      %v2362 = vunpack.c.l.b16 %v1698
      %v2363 = vpack.c.b16 %v2362, %v2361
      %v2366 = vsel %vm847, %v2357, 0
      %v2369 = vsel %vm847, %v2358, 0
      %2371 = vmatpush.bf16.msra.mxu0 0
      %2372 = vmatpush.bf16.msra.mxu0 0
      %2373 = vmatpush.bf16.msra.mxu0 0
      %2374 = vmatpush.bf16.msra.mxu0 0
      %2375 = vmatpush.bf16.msra.mxu0 0
      %2376 = vmatpush.bf16.msra.mxu0 0
      %2377 = vmatpush.bf16.msra.mxu0 0
      %2378 = vmatpush.bf16.msra.mxu0 %v2363
      %2379 = vmatmul.bf16.gmra.mxu0 %v2366
      %v2380 = vpop.f32.mrf.mxu0
      %v2381 = vadd.f32 0.0, %v2380
      %v2382 = vpop.f32.mrf.mxu0
      %v2383 = vadd.f32 0.0, %v2382
      %2384 = vmatmul.bf16.gmra.mxu0 %v2369
      %v2385 = vpop.f32.mrf.mxu0
      %v2386 = vadd.f32 0.0, %v2385
      %v2387 = vpop.f32.mrf.mxu0
      %2388 = vdwg.mxu0
      %v2389 = vadd.f32 %v2214, %v2381
      %v2390 = vadd.f32 %v2215, %v2383
      %v2391 = vadd.f32 %v2216, %v2386
      %v2393 = vperm.slane %v1699, 0
      %v2395 = vadd.f32 %v2389, %v2393
      %v2396 = vadd.f32 %v2390, %v2393
      %v2397 = vadd.f32 %v2391, %v2393
      %v2398 = vld [vmem:[%s14] sm:$0x1]
      %v2399 = vld [vmem:[%s15] sm:$0x1]
      %v2400 = vadd.f32 %v1608, %v2395
      %v2401 = vadd.f32 %v1609, %v2396
      %v2402 = vadd.f32 %v1610, %v2397
      %v2403 = vsel %vm731, %v2400, 0.0
      %2404 = vadd.xlane.f32.xlu0 %v2403
      %v2405 = vpop.xlane.xlu0 %2404
      %v2406 = vsel %vm731, %v2401, 0.0
      %2407 = vadd.xlane.f32.xlu0 %v2406
      %v2408 = vpop.xlane.xlu0 %2407
      %v2409 = vsel %vm1531, %v2402, 0.0
      %2410 = vadd.xlane.f32.xlu0 %v2409
      %v2411 = vpop.xlane.xlu0 %2410
      %v2412 = vmul.f32 %v2405, %v1541
      %v2413 = vmul.f32 %v2408, %v1541
      %v2414 = vmul.f32 %v2411, %v1541
      %v2415 = vsub.f32 %v2400, %v2412
      %v2416 = vsub.f32 %v2401, %v2413
      %v2417 = vsub.f32 %v2402, %v2414
      %v2418 = vmul.f32 %v2415, %v2415
      %v2419 = vmul.f32 %v2416, %v2416
      %v2420 = vmul.f32 %v2417, %v2417
      %v2421 = vsel %vm731, %v2418, 0.0
      %2422 = vadd.xlane.f32.xlu0 %v2421
      %v2423 = vpop.xlane.xlu0 %2422
      %v2424 = vsel %vm731, %v2419, 0.0
      %2425 = vadd.xlane.f32.xlu0 %v2424
      %v2426 = vpop.xlane.xlu0 %2425
      %v2427 = vsel %vm1531, %v2420, 0.0
      %2428 = vadd.xlane.f32.xlu0 %v2427
      %v2429 = vpop.xlane.xlu0 %2428
      %v2430 = vmul.f32 %v2423, %v1541
      %v2431 = vmul.f32 %v2426, %v1541
      %v2432 = vmul.f32 %v2429, %v1541
      %v2433 = vadd.f32 %v2430, 1e-12
      %v2434 = vadd.f32 %v2431, 1e-12
      %v2435 = vadd.f32 %v2432, 1e-12
      %v2436 = vrsqrt.pop %v2433
      %v2437 = vmul.f32 %v2436, %v2433
      %v2438 = vmul.f32 %v2437, %v2436
      %v2439 = vmul.f32 0.5, %v2438
      %v2440 = vsub.f32 1.5, %v2439
      %v2441 = vmul.f32 %v2436, %v2440
      %vm2442 = vweird.f32 %v2433
      %vm2443 = vweird.f32 %v2436
      %vm2444 = vmor %vm2442, %vm2443
      %v2445 = vsel %vm2444, %v2436, %v2441
      %v2446 = vrsqrt.pop %v2434
      %v2447 = vmul.f32 %v2446, %v2434
      %v2448 = vmul.f32 %v2447, %v2446
      %v2449 = vmul.f32 0.5, %v2448
      %v2450 = vsub.f32 1.5, %v2449
      %v2451 = vmul.f32 %v2446, %v2450
      %vm2452 = vweird.f32 %v2434
      %vm2453 = vweird.f32 %v2446
      %vm2454 = vmor %vm2452, %vm2453
      %v2455 = vsel %vm2454, %v2446, %v2451
      %v2456 = vrsqrt.pop %v2435
      %v2457 = vmul.f32 %v2456, %v2435
      %v2458 = vmul.f32 %v2457, %v2456
      %v2459 = vmul.f32 0.5, %v2458
      %v2460 = vsub.f32 1.5, %v2459
      %v2461 = vmul.f32 %v2456, %v2460
      %vm2462 = vweird.f32 %v2435
      %vm2463 = vweird.f32 %v2456
      %vm2464 = vmor %vm2462, %vm2463
      %v2465 = vsel %vm2464, %v2456, %v2461
      %v2466 = vmul.f32 %v2415, %v2445
      %v2467 = vmul.f32 %v2416, %v2455
      %v2468 = vmul.f32 %v2417, %v2465
      %v2470 = vperm.slane %v2398, 0
      %v2472 = vmul.f32 %v2466, %v2470
      %v2473 = vmul.f32 %v2467, %v2470
      %v2474 = vmul.f32 %v2468, %v2470
      %v2476 = vperm.slane %v2399, 0
      %v2478 = vadd.f32 %v2472, %v2476
      %v2479 = vadd.f32 %v2473, %v2476
      %v2480 = vadd.f32 %v2474, %v2476
      %v2481 = vld [vmem:[%s16] sm:$0xff]
      %v2482 = vld [vmem:[%s16 + $0x8] sm:$0xff]
      %v2483 = vld [vmem:[%s16 + $0x10] sm:$0xff]
      %v2484 = vld [vmem:[%s16 + $0x18] sm:$0xff]
      %v2485 = vpack.c.bf16 %v2482, %v2481
      %v2486 = vpack.c.bf16 %v2484, %v2483
      %v2487 = vld [vmem:[%s17] sm:$0x1]
      %v2488 = vld [vmem:[%s18] sm:$0xff]
      %v2489 = vld [vmem:[%s18 + $0x8] sm:$0xff]
      %v2490 = vld [vmem:[%s18 + $0x10] sm:$0xff]
      %v2491 = vld [vmem:[%s18 + $0x18] sm:$0xff]
      %v2492 = vld [vmem:[%s18 + $0x20] sm:$0xff]
      %v2493 = vld [vmem:[%s18 + $0x28] sm:$0xff]
      %v2494 = vld [vmem:[%s18 + $0x30] sm:$0xff]
      %v2495 = vld [vmem:[%s18 + $0x38] sm:$0xff]
      %v2496 = vpack.c.bf16 %v2489, %v2488
      %v2497 = vpack.c.bf16 %v2491, %v2490
      %v2498 = vpack.c.bf16 %v2493, %v2492
      %v2499 = vpack.c.bf16 %v2495, %v2494
      %v2500 = vld [vmem:[%s19] sm:$0x1]
      %v2501 = vpack.c.bf16 %v2479, %v2478
      %v2502 = vpack.c.bf16 %v2480, %v2480
      %v2504 = vperm.slane %v2487, 0
      %v2507 = vsel %vm731, %v2501, 0
      %v2510 = vsel %vm731, %v2502, 0
      %2512 = vmatpush.bf16.msra.mxu0 0
      %2513 = vmatpush.bf16.msra.mxu0 0
      %2514 = vmatpush.bf16.msra.mxu0 0
      %2515 = vmatpush.bf16.msra.mxu0 0
      %2516 = vmatpush.bf16.msra.mxu0 0
      %2517 = vmatpush.bf16.msra.mxu0 0
      %2518 = vmatpush.bf16.msra.mxu0 %v2486
      %2519 = vmatpush.bf16.msra.mxu0 %v2485
      %2520 = vmatmul.bf16.gmra.mxu0 %v2507
      %v2521 = vpop.f32.mrf.mxu0
      %v2522 = vadd.f32 %v2504, %v2521
      %v2523 = vpop.f32.mrf.mxu0
      %v2524 = vadd.f32 %v2504, %v2523
      %2525 = vmatmul.bf16.gmra.mxu0 %v2510
      %v2526 = vpop.f32.mrf.mxu0
      %v2527 = vadd.f32 %v2504, %v2526
      %v2528 = vpop.f32.mrf.mxu0
      %2529 = vdwg.mxu0
      %v2530 = vmul.f32 %v2522, %v2522
      %v2531 = vmul.f32 %v2524, %v2524
      %v2532 = vmul.f32 %v2527, %v2527
      %v2533 = vmul.f32 %v2522, %v2530
      %v2534 = vmul.f32 %v2524, %v2531
      %v2535 = vmul.f32 %v2527, %v2532
      %v2536 = vmul.f32 %v2533, 0.044715
      %v2537 = vmul.f32 %v2534, 0.044715
      %v2538 = vmul.f32 %v2535, 0.044715
      %v2539 = vadd.f32 %v2522, %v2536
      %v2540 = vadd.f32 %v2524, %v2537
      %v2541 = vadd.f32 %v2527, %v2538
      %v2542 = vmul.f32 %v2539, 0.7978846
      %v2543 = vmul.f32 %v2540, 0.7978846
      %v2544 = vmul.f32 %v2541, 0.7978846
      %v2545 = vtanh.pop %v2542
      %v2546 = vtanh.pop %v2543
      %v2547 = vtanh.pop %v2544
      %v2548 = vadd.f32 %v2545, 1.0
      %v2549 = vadd.f32 %v2546, 1.0
      %v2550 = vadd.f32 %v2547, 1.0
      %v2551 = vmul.f32 %v2548, 0.5
      %v2552 = vmul.f32 %v2549, 0.5
      %v2553 = vmul.f32 %v2550, 0.5
      %v2554 = vmul.f32 %v2522, %v2551
      %v2555 = vmul.f32 %v2524, %v2552
      %v2556 = vmul.f32 %v2527, %v2553
      %v2557 = vpack.c.bf16 %v2555, %v2554
      %v2558 = vpack.c.bf16 %v2556, %v2556
      %v2560 = vperm.slane %v2500, 0
      %vm2562 = vcmask 523264
      %v2564 = vsel %vm2562, %v2557, 0
      %v2567 = vsel %vm2562, %v2558, 0
      %2569 = vmatpush.bf16.msra.mxu0 0
      %2570 = vmatpush.bf16.msra.mxu0 0
      %2571 = vmatpush.bf16.msra.mxu0 0
      %2572 = vmatpush.bf16.msra.mxu0 0
      %2573 = vmatpush.bf16.msra.mxu0 %v2499
      %2574 = vmatpush.bf16.msra.mxu0 %v2498
      %2575 = vmatpush.bf16.msra.mxu0 %v2497
      %2576 = vmatpush.bf16.msra.mxu0 %v2496
      %2577 = vmatmul.bf16.gmra.mxu0 %v2564
      %v2578 = vpop.f32.mrf.mxu0
      %v2579 = vadd.f32 %v2560, %v2578
      %v2580 = vpop.f32.mrf.mxu0
      %v2581 = vadd.f32 %v2560, %v2580
      %2582 = vmatmul.bf16.gmra.mxu0 %v2567
      %v2583 = vpop.f32.mrf.mxu0
      %v2584 = vadd.f32 %v2560, %v2583
      %v2585 = vpop.f32.mrf.mxu0
      %2586 = vdwg.mxu0
      %v2587 = vld [vmem:[%s20] sm:$0x1]
      %v2588 = vld [vmem:[%s21] sm:$0x1]
      %v2589 = vadd.f32 %v2478, %v2579
      %v2590 = vadd.f32 %v2479, %v2581
      %v2591 = vadd.f32 %v2480, %v2584
      %v2592 = vsel %vm731, %v2589, 0.0
      %2593 = vadd.xlane.f32.xlu0 %v2592
      %v2594 = vpop.xlane.xlu0 %2593
      %v2595 = vsel %vm731, %v2590, 0.0
      %2596 = vadd.xlane.f32.xlu0 %v2595
      %v2597 = vpop.xlane.xlu0 %2596
      %v2598 = vsel %vm1531, %v2591, 0.0
      %2599 = vadd.xlane.f32.xlu0 %v2598
      %v2600 = vpop.xlane.xlu0 %2599
      %v2601 = vmul.f32 %v2594, %v1541
      %v2602 = vmul.f32 %v2597, %v1541
      %v2603 = vmul.f32 %v2600, %v1541
      %v2604 = vsub.f32 %v2589, %v2601
      %v2605 = vsub.f32 %v2590, %v2602
      %v2606 = vsub.f32 %v2591, %v2603
      %v2607 = vmul.f32 %v2604, %v2604
      %v2608 = vmul.f32 %v2605, %v2605
      %v2609 = vmul.f32 %v2606, %v2606
      %v2610 = vsel %vm731, %v2607, 0.0
      %2611 = vadd.xlane.f32.xlu0 %v2610
      %v2612 = vpop.xlane.xlu0 %2611
      %v2613 = vsel %vm731, %v2608, 0.0
      %2614 = vadd.xlane.f32.xlu0 %v2613
      %v2615 = vpop.xlane.xlu0 %2614
      %v2616 = vsel %vm1531, %v2609, 0.0
      %2617 = vadd.xlane.f32.xlu0 %v2616
      %v2618 = vpop.xlane.xlu0 %2617
      %v2619 = vmul.f32 %v2612, %v1541
      %v2620 = vmul.f32 %v2615, %v1541
      %v2621 = vmul.f32 %v2618, %v1541
      %v2622 = vadd.f32 %v2619, 1e-12
      %v2623 = vadd.f32 %v2620, 1e-12
      %v2624 = vadd.f32 %v2621, 1e-12
      %v2625 = vrsqrt.pop %v2622
      %v2626 = vmul.f32 %v2625, %v2622
      %v2627 = vmul.f32 %v2626, %v2625
      %v2628 = vmul.f32 0.5, %v2627
      %v2629 = vsub.f32 1.5, %v2628
      %v2630 = vmul.f32 %v2625, %v2629
      %vm2631 = vweird.f32 %v2622
      %vm2632 = vweird.f32 %v2625
      %vm2633 = vmor %vm2631, %vm2632
      %v2634 = vsel %vm2633, %v2625, %v2630
      %v2635 = vrsqrt.pop %v2623
      %v2636 = vmul.f32 %v2635, %v2623
      %v2637 = vmul.f32 %v2636, %v2635
      %v2638 = vmul.f32 0.5, %v2637
      %v2639 = vsub.f32 1.5, %v2638
      %v2640 = vmul.f32 %v2635, %v2639
      %vm2641 = vweird.f32 %v2623
      %vm2642 = vweird.f32 %v2635
      %vm2643 = vmor %vm2641, %vm2642
      %v2644 = vsel %vm2643, %v2635, %v2640
      %v2645 = vrsqrt.pop %v2624
      %v2646 = vmul.f32 %v2645, %v2624
      %v2647 = vmul.f32 %v2646, %v2645
      %v2648 = vmul.f32 0.5, %v2647
      %v2649 = vsub.f32 1.5, %v2648
      %v2650 = vmul.f32 %v2645, %v2649
      %vm2651 = vweird.f32 %v2624
      %vm2652 = vweird.f32 %v2645
      %vm2653 = vmor %vm2651, %vm2652
      %v2654 = vsel %vm2653, %v2645, %v2650
      %v2655 = vmul.f32 %v2604, %v2634
      %v2656 = vmul.f32 %v2605, %v2644
      %v2657 = vmul.f32 %v2606, %v2654
      %v2659 = vperm.slane %v2587, 0
      %v2661 = vmul.f32 %v2655, %v2659
      %v2662 = vmul.f32 %v2656, %v2659
      %v2663 = vmul.f32 %v2657, %v2659
      %v2665 = vperm.slane %v2588, 0
      %v2667 = vadd.f32 %v2661, %v2665
      %v2668 = vadd.f32 %v2662, %v2665
      %v2669 = vadd.f32 %v2663, %v2665
      %2670 = vst.msk [vmem:[%s703] sm:$0xff] %vm731, %v2667
      %2671 = vst.msk [vmem:[%s703 + $0x8] sm:$0xff] %vm731, %v2668
      %2672 = vst.msk [vmem:[%s703 + $0x10] sm:$0x1] %vm1531, %v2669
      %p2673 = scmp.lt.s32.totalorder %s33, 1
      %s2674 = scalar_select %p2673, %s33, 1
      %s2675 = smul.addr %s2674, 3
      %s2676 = smul.addr %s2675, 8
      %s2677 = scalar_lea.vmem %s22, %s2676
      // Predicated region
      $region109: #{_lambda_.9} parent=107 // pred_check
        %p2678 = pneg %p523
      $region110: #{_lambda_.9} parent=107 // pred_check_branch
        %2680 = sbr.rel (%p2678) target = $region112
      $region111: #{_lambda_.9} parent=107 // pred_region
        _
      $region112: #{_lambda_.9} parent=107 // pred_fallthru
        _
    $region108: #{_lambda_.9} parent=5 // pred_fallthru
      _
    %p2681 = scmp.le.s32.totalorder 2, %s28
    // Predicated region
    $region113: #{_lambda_.9} parent=5 // pred_check
      %p2682 = pneg %p2681
    $region114: #{_lambda_.9} parent=5 // pred_check_branch
      %2684 = sbr.rel (%p2682) target = $region116
    $region115: #{_lambda_.9} parent=5 // pred_region
      %s2685 = ssub.s32 %s28, 2
      // Predicated region
      $region117: #{_lambda_.9} parent=115 // pred_check
        %p2686 = pneg %p529
      $region118: #{_lambda_.9} parent=115 // pred_check_branch
        %2688 = sbr.rel (%p2686) target = $region120
      $region119: #{_lambda_.9} parent=115 // pred_region
        %p2689 = scmp.lt.s32.totalorder %s34, 1
        %s2690 = scalar_select %p2689, %s34, 1
        %s2691 = smul.addr %s2690, 3
        %s2692 = smul.addr %s2691, 8
        %s2693 = scalar_lea.vmem %s22, %s2692
      $region120: #{_lambda_.9} parent=115 // pred_fallthru
        _
    $region116: #{_lambda_.9} parent=5 // pred_fallthru
      _
  $region6: #{_lambda_.9} parent=0 // loop_footer
    %s32 = sadd.s32 1, %s28
  $region7: #{_lambda_.9} parent=0 // loop_footer_branch
    %27 = sbr.rel target = $region3
  $region8: #{_lambda_.9} parent=0 // loop_exit
    _

</llo_original>
